<compile_context>
chip_gen: v6e
topology: v6e:2x2x1
jax: 0.10.0
libtpu: 0.0.40
codegen_flags: <defaults>
</compile_context>

<pallas_src>
import functools
import math

import jax
import jax.numpy as jnp
from jax import lax
from jax.experimental import pallas as pl
from jax.experimental.pallas import tpu as pltpu

F32 = jnp.float32
BF16 = jnp.bfloat16
_SQRT1_2 = 0.7071067811865476
_NEG = -1e9      # finite large-negative mask value (avoids -inf -> NaN rows)
_M_INIT = -1e30  # online-softmax running-max init (finite; exp underflows to 0)


# --------------------------------------------------------------------------- helpers

def _gelu(y):
    # exact (erf-based) GELU == torch.nn.functional.gelu default
    return 0.5 * y * (1.0 + jax.lax.erf(y * _SQRT1_2))


def _tile_and_pad(dim, target, align=8):
    """Return (tile, padded_dim). Full-extent block if dim <= target, else `target`."""
    if dim <= target:
        padded = -(-dim // align) * align
        return padded, padded
    padded = -(-dim // target) * target
    return target, padded


def _pad2d(a, rows, cols):
    r, c = a.shape
    if r == rows and c == cols:
        return a
    return jnp.pad(a, ((0, rows - r), (0, cols - c)))


def _default_vmem_limit():
    """Scoped-VMEM budget per pallas_call, sized from the actual chip generation."""
    limit = 64 * 1024 * 1024
    try:
        info = pltpu.get_tpu_info()
        cap = int(getattr(info, "vmem_capacity_bytes", 128 * 1024 * 1024))
        limit = min(cap * 3 // 4, 96 * 1024 * 1024)
    except Exception:
        pass
    return int(limit)


_VMEM_LIMIT = _default_vmem_limit()


# ------------------------------------------------------------------ tiled fused linear

def _linear_kernel(*refs, fuse_ln, prologue_add, eps):
    it = iter(refs)
    x_ref = next(it)
    x2_ref = next(it) if prologue_add else None
    w_ref = next(it)
    b_ref = next(it)
    if fuse_ln:
        r_ref = next(it)
        g_ref = next(it)
        bt_ref = next(it)
    o_ref = next(it)
    acc_ref = next(it)

    k = pl.program_id(2)

    @pl.when(k == 0)
    def _init():
        acc_ref[...] = jnp.zeros_like(acc_ref)

    x = x_ref[...]
    if prologue_add:
        x = x + x2_ref[...]
    acc_ref[...] += jnp.dot(x, w_ref[...], preferred_element_type=jnp.float32)

    @pl.when(k == pl.num_programs(2) - 1)
    def _finish():
        y = acc_ref[...] + b_ref[...].astype(jnp.float32)
        if fuse_ln:
            y = y + r_ref[...].astype(jnp.float32)
            mu = jnp.mean(y, axis=-1, keepdims=True)
            var = jnp.mean(jnp.square(y - mu), axis=-1, keepdims=True)
            y = ((y - mu) * jax.lax.rsqrt(var + eps)
                 * g_ref[...].astype(jnp.float32) + bt_ref[...].astype(jnp.float32))
        o_ref[...] = y.astype(o_ref.dtype)


def fused_linear(x, w, b, *, x2=None, residual=None, gamma=None, beta=None,
                 eps=1e-5, out_dtype=BF16, tm_target=512, tn_target=512, tk_target=512):
    """out = [LN_{gamma,beta}(residual +)] ((x [+ x2]) @ w + b)

    Grid is (N, M, K) with K innermost: when K fits a single tile the weight block
    index is unchanged across the M sweep, so Pallas skips the weight DMA and the
    (tk, tn) weight tile stays resident in VMEM across all M tiles.
    """
    M, K = x.shape
    N = w.shape[1]
    fuse_ln = gamma is not None
    prologue_add = x2 is not None

    tm, M_pad = _tile_and_pad(M, tm_target)
    tk, K_pad = _tile_and_pad(K, tk_target)
    if fuse_ln:
        tn, N_pad = N, N                      # LayerNorm needs the whole row per block
    else:
        tn, N_pad = _tile_and_pad(N, tn_target)

    xp = _pad2d(x, M_pad, K_pad)
    wp = _pad2d(w, K_pad, N_pad)
    bp = _pad2d(b.reshape(1, N).astype(F32), 1, N_pad)

    specs = [pl.BlockSpec((tm, tk), lambda j, i, k: (i, k))]
    args = [xp]
    if prologue_add:
        specs.append(pl.BlockSpec((tm, tk), lambda j, i, k: (i, k)))
        args.append(_pad2d(x2, M_pad, K_pad))
    specs.append(pl.BlockSpec((tk, tn), lambda j, i, k: (k, j)))
    args.append(wp)
    specs.append(pl.BlockSpec((1, tn), lambda j, i, k: (0, j)))
    args.append(bp)
    if fuse_ln:
        specs.append(pl.BlockSpec((tm, tn), lambda j, i, k: (i, j)))
        args.append(_pad2d(residual, M_pad, N_pad))
        specs.append(pl.BlockSpec((1, tn), lambda j, i, k: (0, j)))
        args.append(gamma.reshape(1, N).astype(F32))
        specs.append(pl.BlockSpec((1, tn), lambda j, i, k: (0, j)))
        args.append(beta.reshape(1, N).astype(F32))

    kern = functools.partial(_linear_kernel, fuse_ln=fuse_ln,
                             prologue_add=prologue_add, eps=eps)
    out = pl.pallas_call(
        kern,
        out_shape=jax.ShapeDtypeStruct((M_pad, N_pad), out_dtype),
        grid=(N_pad // tn, M_pad // tm, K_pad // tk),
        in_specs=specs,
        out_specs=pl.BlockSpec((tm, tn), lambda j, i, k: (i, j)),
        scratch_shapes=[pltpu.VMEM((tm, tn), jnp.float32)],
        compiler_params=pltpu.CompilerParams(
            dimension_semantics=("parallel", "parallel", "arbitrary"),
            vmem_limit_bytes=_VMEM_LIMIT),
    )(*args)

    if M_pad != M or N_pad != N:
        out = out[:M, :N]
    return out


# -------------------------------------------------------------------------- fused FFN

def _ffn_kernel(x_ref, w1_ref, b1_ref, w2_ref, b2_ref, g_ref, bt_ref, o_ref, acc_ref,
                *, eps):
    f = pl.program_id(1)

    @pl.when(f == 0)
    def _init():
        acc_ref[...] = jnp.zeros_like(acc_ref)

    x = x_ref[...]
    h = jnp.dot(x, w1_ref[...], preferred_element_type=jnp.float32)
    h = _gelu(h + b1_ref[...].astype(jnp.float32))
    acc_ref[...] += jnp.dot(h.astype(x.dtype), w2_ref[...],
                            preferred_element_type=jnp.float32)

    @pl.when(f == pl.num_programs(1) - 1)
    def _finish():
        y = acc_ref[...] + b2_ref[...].astype(jnp.float32) + x.astype(jnp.float32)
        mu = jnp.mean(y, axis=-1, keepdims=True)
        var = jnp.mean(jnp.square(y - mu), axis=-1, keepdims=True)
        y = ((y - mu) * jax.lax.rsqrt(var + eps)
             * g_ref[...].astype(jnp.float32) + bt_ref[...].astype(jnp.float32))
        o_ref[...] = y.astype(o_ref.dtype)


def ffn_fused(x, w1, b1, w2, b2, gamma, beta, eps, *, tm_target=256, tf_target=2048):
    """LayerNorm(x + GELU(x @ w1 + b1) @ w2 + b2), one pallas_call.

    With dff <= tf_target the dff grid axis collapses to 1, so w1/w2 block indices are
    constant and the weights are DMA'd from HBM exactly once (resident across M tiles).
    """
    B, S, D = x.shape
    M = B * S
    dff = w1.shape[1]

    tm, M_pad = _tile_and_pad(M, tm_target)
    tf, F_pad = _tile_and_pad(dff, tf_target)

    xf = _pad2d(x.reshape(M, D), M_pad, D)
    w1p = _pad2d(w1, D, F_pad)
    b1p = _pad2d(b1.reshape(1, dff).astype(F32), 1, F_pad)
    w2p = _pad2d(w2, F_pad, D)

    out = pl.pallas_call(
        functools.partial(_ffn_kernel, eps=eps),
        out_shape=jax.ShapeDtypeStruct((M_pad, D), x.dtype),
        grid=(M_pad // tm, F_pad // tf),
        in_specs=[
            pl.BlockSpec((tm, D), lambda i, f: (i, 0)),
            pl.BlockSpec((D, tf), lambda i, f: (0, f)),
            pl.BlockSpec((1, tf), lambda i, f: (0, f)),
            pl.BlockSpec((tf, D), lambda i, f: (f, 0)),
            pl.BlockSpec((1, D), lambda i, f: (0, 0)),
            pl.BlockSpec((1, D), lambda i, f: (0, 0)),
            pl.BlockSpec((1, D), lambda i, f: (0, 0)),
        ],
        out_specs=pl.BlockSpec((tm, D), lambda i, f: (i, 0)),
        scratch_shapes=[pltpu.VMEM((tm, D), jnp.float32)],
        compiler_params=pltpu.CompilerParams(
            dimension_semantics=("parallel", "arbitrary"),
            vmem_limit_bytes=_VMEM_LIMIT),
    )(xf, w1p, b1p, w2p, b2.reshape(1, D).astype(F32),
      gamma.reshape(1, D).astype(F32), beta.reshape(1, D).astype(F32))

    if M_pad != M:
        out = out[:M]
    return out.reshape(B, S, D)


# ---------------------------------------------------------------- flash-style attention

def _attn_kernel(*refs, scale, causal, n_heads, has_bias):
    if has_bias:
        pb_ref, q_ref, k_ref, v_ref, o_ref, m_sc, l_sc, acc_sc = refs
    else:
        q_ref, k_ref, v_ref, o_ref, m_sc, l_sc, acc_sc = refs

    kvi = pl.program_id(2)

    @pl.when(kvi == 0)
    def _init():
        m_sc[...] = jnp.full_like(m_sc, _M_INIT)
        l_sc[...] = jnp.zeros_like(l_sc)
        acc_sc[...] = jnp.zeros_like(acc_sc)

    q = q_ref[0] * scale              # fold 1/sqrt(Dh) into q once (not per-head scores)
    k = k_ref[0]                      # (tk, D) bf16
    v = v_ref[0]
    tq, D = q.shape
    tk = k.shape[0]
    Dh = D // n_heads

    bias = None
    if has_bias:
        bias = pb_ref[0].astype(jnp.float32)              # (1, tk), broadcasts over rows
    if causal:
        q0 = pl.program_id(1) * tq
        k0 = kvi * tk
        qpos = q0 + lax.broadcasted_iota(jnp.int32, (tq, tk), 0)
        kpos = k0 + lax.broadcasted_iota(jnp.int32, (tq, tk), 1)
        cb = jnp.where(qpos >= kpos, 0.0, _NEG).astype(jnp.float32)
        bias = cb if bias is None else bias + cb

    contract = (((1,), (1,)), ((), ()))   # q_h @ k_h^T without materializing a transpose
    for h in range(n_heads):
        lo = h * Dh
        s = lax.dot_general(q[:, lo:lo + Dh], k[:, lo:lo + Dh], contract,
                            preferred_element_type=jnp.float32)        # (tq, tk)
        if bias is not None:
            s = s + bias
        m_prev = m_sc[h]                                                # (tq, 1)
        m_new = jnp.maximum(m_prev, jnp.max(s, axis=-1, keepdims=True))
        alpha = jnp.exp(m_prev - m_new)
        p = jnp.exp(s - m_new)
        l_sc[h] = alpha * l_sc[h] + jnp.sum(p, axis=-1, keepdims=True)
        m_sc[h] = m_new
        pv = jnp.dot(p.astype(v.dtype), v[:, lo:lo + Dh],
                     preferred_element_type=jnp.float32)                # (tq, Dh)
        acc_sc[:, lo:lo + Dh] = alpha * acc_sc[:, lo:lo + Dh] + pv

    @pl.when(kvi == pl.num_programs(2) - 1)
    def _finish():
        for h in range(n_heads):
            lo = h * Dh
            acc_sc[:, lo:lo + Dh] = acc_sc[:, lo:lo + Dh] / l_sc[h]
        o_ref[0] = acc_sc[...].astype(o_ref.dtype)       # single lane-dense (tq, D) store


def attention(q, k, v, pad_bias, causal, n_heads, *, tq_target=256, tk_target=512):
    """q: (B,Sq,D), k/v: (B,Skv,D); pad_bias: (B,1,Skv) additive f32 row or None.

    Flash-style: grid (B, Sq tiles, Skv tiles) with online-softmax state in VMEM
    scratch; Sq/Skv are padded to tile multiples (padded keys get a -1e9 bias,
    padded query rows are sliced off).
    """
    B, Sq, D = q.shape
    Skv = k.shape[1]
    Dh = D // n_heads
    scale = 1.0 / math.sqrt(Dh)

    def _seq_tile(s, target):
        if s <= target:
            sp = -(-s // 8) * 8
            return sp, sp
        sp = -(-s // target) * target
        return target, sp

    tq, Sq_pad = _seq_tile(Sq, tq_target)
    tk, Skv_pad = _seq_tile(Skv, tk_target)

    if Sq_pad != Sq:
        q = jnp.pad(q, ((0, 0), (0, Sq_pad - Sq), (0, 0)))
    if Skv_pad != Skv:
        k = jnp.pad(k, ((0, 0), (0, Skv_pad - Skv), (0, 0)))
        v = jnp.pad(v, ((0, 0), (0, Skv_pad - Skv), (0, 0)))
        if pad_bias is None:                              # must mask the padded keys
            pad_bias = jnp.zeros((B, 1, Skv), F32)
    if pad_bias is not None:
        pad_bias = pad_bias.astype(F32)
        if Skv_pad != Skv:
            pad_bias = jnp.pad(pad_bias, ((0, 0), (0, 0), (0, Skv_pad - Skv)),
                               constant_values=_NEG)

    has_bias = pad_bias is not None
    specs, args = [], []
    if has_bias:
        specs.append(pl.BlockSpec((1, 1, tk), lambda b, qi, kv: (b, 0, kv)))
        args.append(pad_bias)
    specs += [
        pl.BlockSpec((1, tq, D), lambda b, qi, kv: (b, qi, 0)),
        pl.BlockSpec((1, tk, D), lambda b, qi, kv: (b, kv, 0)),
        pl.BlockSpec((1, tk, D), lambda b, qi, kv: (b, kv, 0)),
    ]
    args += [q, k, v]

    kern = functools.partial(_attn_kernel, scale=scale, causal=causal,
                             n_heads=n_heads, has_bias=has_bias)
    out = pl.pallas_call(
        kern,
        out_shape=jax.ShapeDtypeStruct((B, Sq_pad, D), q.dtype),
        grid=(B, Sq_pad // tq, Skv_pad // tk),
        in_specs=specs,
        out_specs=pl.BlockSpec((1, tq, D), lambda b, qi, kv: (b, qi, 0)),
        scratch_shapes=[pltpu.VMEM((n_heads, tq, 1), jnp.float32),   # running max
                        pltpu.VMEM((n_heads, tq, 1), jnp.float32),   # running denom
                        pltpu.VMEM((tq, D), jnp.float32)],           # output accumulator
        compiler_params=pltpu.CompilerParams(
            dimension_semantics=("parallel", "parallel", "arbitrary"),
            vmem_limit_bytes=_VMEM_LIMIT),
    )(*args)

    if Sq_pad != Sq:
        out = out[:, :Sq]
    return out


# --------------------------------------------------------------------- transformer glue

def _mha_block(x_q, x_kv, pad_bias, causal, p, ln, n_heads, eps):
    """Q/K/V projections + attention + out-proj fused with residual + LayerNorm."""
    B, Sq, D = x_q.shape
    Skv = x_kv.shape[1]
    xq_f = x_q.reshape(-1, D)
    xkv_f = x_kv.reshape(-1, D)
    # Separate weight-resident projections (no packed-QKV output + lane-slice copies).
    q = fused_linear(xq_f, p["wq"], p["bq"]).reshape(B, Sq, D)
    k = fused_linear(xkv_f, p["wk"], p["bk"]).reshape(B, Skv, D)
    v = fused_linear(xkv_f, p["wv"], p["bv"]).reshape(B, Skv, D)
    ctx = attention(q, k, v, pad_bias, causal, n_heads)
    out = fused_linear(ctx.reshape(-1, D), p["wo"], p["bo"],
                       residual=xq_f, gamma=ln["g"], beta=ln["b"], eps=eps)
    return out.reshape(B, Sq, D)


def encoder_layer(x, src_pad_bias, p, n_heads, eps):
    # post-norm (PyTorch default norm_first=False), dropout = identity (eval)
    x = _mha_block(x, x, src_pad_bias, False, p["sa"], p["ln1"], n_heads, eps)
    x = ffn_fused(x, p["w1"], p["b1"], p["w2"], p["b2"], p["ln2"]["g"], p["ln2"]["b"], eps)
    return x


def decoder_layer(x, memory, tgt_pad_bias, p, n_heads, eps):
    x = _mha_block(x, x, tgt_pad_bias, True, p["sa"], p["ln1"], n_heads, eps)
    x = _mha_block(x, memory, None, False, p["ca"], p["ln2"], n_heads, eps)
    x = ffn_fused(x, p["w1"], p["b1"], p["w2"], p["b2"], p["ln3"]["g"], p["ln3"]["b"], eps)
    return x


def graformer_forward(encoder_hidden, decoder_hidden, src_mask, tgt_mask, params,
                      n_heads, layer_norm_eps):
    """Pallas implementation of CustomGraformer.forward AFTER the pretrained LMs.

    encoder_hidden ~ masked_encoder(source, src_mask).last_hidden_state   (B, S_src, D)
    decoder_hidden ~ causal_decoder(target, tgt_mask).last_hidden_state   (B, S_tgt, D)
    src_mask / tgt_mask: HF attention masks (1 = valid token, 0 = padding).
    """
    B, S_src, D = encoder_hidden.shape
    S_tgt = decoder_hidden.shape[1]

    # key-padding additive bias rows (tiny O(B*S), finite -1e9 -> no NaN rows)
    src_pad_bias = jnp.where(src_mask == 0, jnp.float32(_NEG),
                             jnp.float32(0.0)).reshape(B, 1, S_src)
    tgt_pad_bias = jnp.where(tgt_mask == 0, jnp.float32(_NEG),
                             jnp.float32(0.0)).reshape(B, 1, S_tgt)

    enc_h = encoder_hidden.astype(BF16)
    dec_h = decoder_hidden.astype(BF16)

    x = enc_h
    for lp in params["enc_layers"]:
        x = encoder_layer(x, src_pad_bias, lp, n_heads, layer_norm_eps)
    memory = x

    y = dec_h
    for lp in params["dec_layers"]:
        y = decoder_layer(y, memory, tgt_pad_bias, lp, n_heads, layer_norm_eps)

    # lmhead(output + causal_decoder_output): residual add fused into the matmul prologue.
    # TODO(synk): emit bf16 logits (out_dtype) if the downstream loss can take them (v5e).
    logits = fused_linear(y.reshape(-1, D), params["lmhead_w"], params["lmhead_b"],
                          x2=dec_h.reshape(-1, D), out_dtype=F32)
    vocab = params["lmhead_w"].shape[1]
    return logits.reshape(B, S_tgt, vocab)


# ------------------------------------------------------------------------ parameter init

def init_params(key, d_model, dff, n_enc, n_dec, vocab):
    keys = iter(jax.random.split(key, 512))

    def dense(shape, scale=0.05):
        return (jax.random.normal(next(keys), shape, F32) * scale).astype(BF16)

    def zeros(n):
        return jnp.zeros((n,), F32)

    def attn_p():  # separate Q/K/V/out projection weights
        return dict(wq=dense((d_model, d_model)), bq=zeros(d_model),
                    wk=dense((d_model, d_model)), bk=zeros(d_model),
                    wv=dense((d_model, d_model)), bv=zeros(d_model),
                    wo=dense((d_model, d_model)), bo=zeros(d_model))

    def ln_p():
        return dict(g=jnp.ones((d_model,), F32), b=jnp.zeros((d_model,), F32))

    def enc_layer_p():
        return dict(sa=attn_p(),
                    w1=dense((d_model, dff)), b1=zeros(dff),
                    w2=dense((dff, d_model)), b2=zeros(d_model),
                    ln1=ln_p(), ln2=ln_p())

    def dec_layer_p():
        return dict(sa=attn_p(), ca=attn_p(),
                    w1=dense((d_model, dff)), b1=zeros(dff),
                    w2=dense((dff, d_model)), b2=zeros(d_model),
                    ln1=ln_p(), ln2=ln_p(), ln3=ln_p())

    return dict(
        enc_layers=[enc_layer_p() for _ in range(n_enc)],
        dec_layers=[dec_layer_p() for _ in range(n_dec)],
        lmhead_w=dense((d_model, vocab)),
        lmhead_b=zeros(vocab),
    )


# --------------------------------------------------------------------------------- main

if __name__ == "__main__":
    # small shapes consistent with the module (scaled down from d_model=512 etc.)
    d_model, n_heads, dff = 32, 4, 64
    n_encoder_layers, n_decoder_layers = 2, 2
    layer_norm_eps = 1e-5
    B, S_src, S_tgt, vocab = 2, 8, 8, 128

    key = jax.random.PRNGKey(0)
    k_params, k_enc, k_dec = jax.random.split(key, 3)
    params = init_params(k_params, d_model, dff, n_encoder_layers, n_decoder_layers, vocab)

    # stand-ins for the pretrained LMs' last_hidden_state outputs
    encoder_hidden = jax.random.normal(k_enc, (B, S_src, d_model), F32)
    decoder_hidden = jax.random.normal(k_dec, (B, S_tgt, d_model), F32)
    # HF attention masks: 1 = valid, 0 = pad (padding at the end)
    src_mask = jnp.array([[1] * 8, [1] * 6 + [0] * 2], jnp.int32)
    tgt_mask = jnp.array([[1] * 7 + [0], [1] * 8], jnp.int32)

    fwd = jax.jit(functools.partial(graformer_forward, n_heads=n_heads,
                                    layer_norm_eps=layer_norm_eps))
    logits = fwd(encoder_hidden, decoder_hidden, src_mask, tgt_mask, params)
    jax.block_until_ready(logits)
    assert logits.shape == (B, S_tgt, vocab), logits.shape
    assert bool(jnp.all(jnp.isfinite(logits)))
    print("KERNEL_OK")
</pallas_src>

<mosaic_0001>
module attributes {stable_mosaic.version = 11 : i64} {
  func.func @_linear_kernel(%arg0: i32, %arg1: i32, %arg2: i32, %arg3: memref<16x32xbf16, #tpu.memory_space<vmem>>, %arg4: memref<32x32xbf16, #tpu.memory_space<vmem>>, %arg5: memref<1x32xf32, #tpu.memory_space<vmem>>, %arg6: memref<16x32xbf16, #tpu.memory_space<vmem>>, %arg7: memref<16x32xf32, #tpu.memory_space<vmem>>) attributes {dimension_semantics = [#tpu.dimension_semantics<parallel>, #tpu.dimension_semantics<parallel>, #tpu.dimension_semantics<arbitrary>], iteration_bounds = array<i64: 1, 1, 1>, scalar_prefetch = 0 : i64, scratch_operands = 1 : i64, tpu.core_type = #tpu.core_type<tc>, window_params = [{transform_indices = @transform_0, window_bounds = array<i64: 16, 32>}, {transform_indices = @transform_1, window_bounds = array<i64: 32, 32>}, {transform_indices = @transform_2, window_bounds = array<i64: 1, 32>}, {transform_indices = @transform_3, window_bounds = array<i64: 16, 32>}]} {
    %c0_i32 = arith.constant 0 : i32
    %0 = arith.cmpi eq, %arg2, %c0_i32 : i32
    %1 = arith.extui %0 : i1 to i32
    %c0_i32_0 = arith.constant 0 : i32
    %2 = arith.cmpi ne, %1, %c0_i32_0 : i32
    scf.if %2 {
      %cst_10 = arith.constant 0.000000e+00 : f32
      %12 = vector.broadcast %cst_10 : f32 to vector<16x32xf32>
      %c0_11 = arith.constant 0 : index
      %c0_12 = arith.constant 0 : index
      %13 = vector.load %arg7[%c0_11, %c0_12] : memref<16x32xf32, #tpu.memory_space<vmem>>, vector<16x32xf32>
      tpu.vector_store %arg7[%c0_11, %c0_12], %12 {strides = array<i32>} : memref<16x32xf32, #tpu.memory_space<vmem>>, vector<16x32xf32>,
    } else {
    }
    %c0 = arith.constant 0 : index
    %c0_1 = arith.constant 0 : index
    %3 = vector.load %arg3[%c0, %c0_1] : memref<16x32xbf16, #tpu.memory_space<vmem>>, vector<16x32xbf16>
    %c0_2 = arith.constant 0 : index
    %c0_3 = arith.constant 0 : index
    %4 = vector.load %arg7[%c0_2, %c0_3] : memref<16x32xf32, #tpu.memory_space<vmem>>, vector<16x32xf32>
    %c0_4 = arith.constant 0 : index
    %c0_5 = arith.constant 0 : index
    %5 = vector.load %arg4[%c0_4, %c0_5] : memref<32x32xbf16, #tpu.memory_space<vmem>>, vector<32x32xbf16>
    %cst = arith.constant dense<0.000000e+00> : vector<16x32xf32>
    %6 = tpu.matmul %3, %5, %cst {dimension_numbers = #tpu.dot_dimension_numbers<[1], [0], [0], [1], [0, 0, 1, 1], [], []>} : vector<16x32xbf16>, vector<32x32xbf16>, vector<16x32xf32> -> vector<16x32xf32>
    %7 = arith.addf %4, %6 : vector<16x32xf32>
    %c0_6 = arith.constant 0 : index
    %c0_7 = arith.constant 0 : index
    %8 = vector.load %arg7[%c0_6, %c0_7] : memref<16x32xf32, #tpu.memory_space<vmem>>, vector<16x32xf32>
    tpu.vector_store %arg7[%c0_6, %c0_7], %7 {strides = array<i32>} : memref<16x32xf32, #tpu.memory_space<vmem>>, vector<16x32xf32>,
    %c0_i32_8 = arith.constant 0 : i32
    %9 = arith.cmpi eq, %arg2, %c0_i32_8 : i32
    %10 = arith.extui %9 : i1 to i32
    %c0_i32_9 = arith.constant 0 : i32
    %11 = arith.cmpi ne, %10, %c0_i32_9 : i32
    scf.if %11 {
      %c0_10 = arith.constant 0 : index
      %c0_11 = arith.constant 0 : index
      %12 = vector.load %arg7[%c0_10, %c0_11] : memref<16x32xf32, #tpu.memory_space<vmem>>, vector<16x32xf32>
      %c0_12 = arith.constant 0 : index
      %c0_13 = arith.constant 0 : index
      %13 = vector.load %arg5[%c0_12, %c0_13] : memref<1x32xf32, #tpu.memory_space<vmem>>, vector<1x32xf32>
      %14 = vector.broadcast %13 : vector<1x32xf32> to vector<16x32xf32>
      %15 = arith.addf %12, %14 : vector<16x32xf32>
      %16 = arith.truncf %15 : vector<16x32xf32> to vector<16x32xbf16>
      %c0_14 = arith.constant 0 : index
      %c0_15 = arith.constant 0 : index
      %17 = vector.load %arg6[%c0_14, %c0_15] : memref<16x32xbf16, #tpu.memory_space<vmem>>, vector<16x32xbf16>
      tpu.vector_store %arg6[%c0_14, %c0_15], %16 {strides = array<i32>} : memref<16x32xbf16, #tpu.memory_space<vmem>>, vector<16x32xbf16>,
    } else {
    }
    return
  }
  func.func @transform_0(%arg0: i32, %arg1: i32, %arg2: i32) -> (i32, i32) {
    %c0_i32 = arith.constant 0 : i32
    return %arg1, %arg2 : i32, i32
  }
  func.func @transform_1(%arg0: i32, %arg1: i32, %arg2: i32) -> (i32, i32) {
    %c0_i32 = arith.constant 0 : i32
    return %arg2, %arg0 : i32, i32
  }
  func.func @transform_2(%arg0: i32, %arg1: i32, %arg2: i32) -> (i32, i32) {
    %c0_i32 = arith.constant 0 : i32
    %c0_i32_0 = arith.constant 0 : i32
    return %c0_i32, %arg0 : i32, i32
  }
  func.func @transform_3(%arg0: i32, %arg1: i32, %arg2: i32) -> (i32, i32) {
    %c0_i32 = arith.constant 0 : i32
    return %arg1, %arg0 : i32, i32
  }
}

module attributes {stable_mosaic.version = 11 : i64} {
  func.func @_linear_kernel(%arg0: i32, %arg1: i32, %arg2: i32, %arg3: memref<16x32xbf16, #tpu.memory_space<vmem>>, %arg4: memref<32x32xbf16, #tpu.memory_space<vmem>>, %arg5: memref<1x32xf32, #tpu.memory_space<vmem>>, %arg6: memref<16x32xbf16, #tpu.memory_space<vmem>>, %arg7: memref<1x32xf32, #tpu.memory_space<vmem>>, %arg8: memref<1x32xf32, #tpu.memory_space<vmem>>, %arg9: memref<16x32xbf16, #tpu.memory_space<vmem>>, %arg10: memref<16x32xf32, #tpu.memory_space<vmem>>) attributes {dimension_semantics = [#tpu.dimension_semantics<parallel>, #tpu.dimension_semantics<parallel>, #tpu.dimension_semantics<arbitrary>], iteration_bounds = array<i64: 1, 1, 1>, scalar_prefetch = 0 : i64, scratch_operands = 1 : i64, tpu.core_type = #tpu.core_type<tc>, window_params = [{transform_indices = @transform_0, window_bounds = array<i64: 16, 32>}, {transform_indices = @transform_1, window_bounds = array<i64: 32, 32>}, {transform_indices = @transform_2, window_bounds = array<i64: 1, 32>}, {transform_indices = @transform_3, window_bounds = array<i64: 16, 32>}, {transform_indices = @transform_4, window_bounds = array<i64: 1, 32>}, {transform_indices = @transform_5, window_bounds = array<i64: 1, 32>}, {transform_indices = @transform_6, window_bounds = array<i64: 16, 32>}]} {
    %c0_i32 = arith.constant 0 : i32
    %0 = arith.cmpi eq, %arg2, %c0_i32 : i32
    %1 = arith.extui %0 : i1 to i32
    %c0_i32_0 = arith.constant 0 : i32
    %2 = arith.cmpi ne, %1, %c0_i32_0 : i32
    scf.if %2 {
      %cst_10 = arith.constant 0.000000e+00 : f32
      %12 = vector.broadcast %cst_10 : f32 to vector<16x32xf32>
      %c0_11 = arith.constant 0 : index
      %c0_12 = arith.constant 0 : index
      %13 = vector.load %arg10[%c0_11, %c0_12] : memref<16x32xf32, #tpu.memory_space<vmem>>, vector<16x32xf32>
      tpu.vector_store %arg10[%c0_11, %c0_12], %12 {strides = array<i32>} : memref<16x32xf32, #tpu.memory_space<vmem>>, vector<16x32xf32>,
    } else {
    }
    %c0 = arith.constant 0 : index
    %c0_1 = arith.constant 0 : index
    %3 = vector.load %arg3[%c0, %c0_1] : memref<16x32xbf16, #tpu.memory_space<vmem>>, vector<16x32xbf16>
    %c0_2 = arith.constant 0 : index
    %c0_3 = arith.constant 0 : index
    %4 = vector.load %arg10[%c0_2, %c0_3] : memref<16x32xf32, #tpu.memory_space<vmem>>, vector<16x32xf32>
    %c0_4 = arith.constant 0 : index
    %c0_5 = arith.constant 0 : index
    %5 = vector.load %arg4[%c0_4, %c0_5] : memref<32x32xbf16, #tpu.memory_space<vmem>>, vector<32x32xbf16>
    %cst = arith.constant dense<0.000000e+00> : vector<16x32xf32>
    %6 = tpu.matmul %3, %5, %cst {dimension_numbers = #tpu.dot_dimension_numbers<[1], [0], [0], [1], [0, 0, 1, 1], [], []>} : vector<16x32xbf16>, vector<32x32xbf16>, vector<16x32xf32> -> vector<16x32xf32>
    %7 = arith.addf %4, %6 : vector<16x32xf32>
    %c0_6 = arith.constant 0 : index
    %c0_7 = arith.constant 0 : index
    %8 = vector.load %arg10[%c0_6, %c0_7] : memref<16x32xf32, #tpu.memory_space<vmem>>, vector<16x32xf32>
    tpu.vector_store %arg10[%c0_6, %c0_7], %7 {strides = array<i32>} : memref<16x32xf32, #tpu.memory_space<vmem>>, vector<16x32xf32>,
    %c0_i32_8 = arith.constant 0 : i32
    %9 = arith.cmpi eq, %arg2, %c0_i32_8 : i32
    %10 = arith.extui %9 : i1 to i32
    %c0_i32_9 = arith.constant 0 : i32
    %11 = arith.cmpi ne, %10, %c0_i32_9 : i32
    scf.if %11 {
      %c0_10 = arith.constant 0 : index
      %c0_11 = arith.constant 0 : index
      %12 = vector.load %arg10[%c0_10, %c0_11] : memref<16x32xf32, #tpu.memory_space<vmem>>, vector<16x32xf32>
      %c0_12 = arith.constant 0 : index
      %c0_13 = arith.constant 0 : index
      %13 = vector.load %arg5[%c0_12, %c0_13] : memref<1x32xf32, #tpu.memory_space<vmem>>, vector<1x32xf32>
      %14 = vector.broadcast %13 : vector<1x32xf32> to vector<16x32xf32>
      %15 = arith.addf %12, %14 : vector<16x32xf32>
      %c0_14 = arith.constant 0 : index
      %c0_15 = arith.constant 0 : index
      %16 = vector.load %arg6[%c0_14, %c0_15] : memref<16x32xbf16, #tpu.memory_space<vmem>>, vector<16x32xbf16>
      %17 = arith.extf %16 : vector<16x32xbf16> to vector<16x32xf32>
      %18 = arith.addf %15, %17 : vector<16x32xf32>
      %cst_16 = arith.constant dense<0.000000e+00> : vector<16xf32>
      %19 = vector.multi_reduction <add>, %18, %cst_16 [1] : vector<16x32xf32> to vector<16xf32>
      %20 = vector.shape_cast %19 : vector<16xf32> to vector<16x1xf32>
      %cst_17 = arith.constant 3.200000e+01 : f32
      %21 = vector.broadcast %cst_17 : f32 to vector<16x1xf32>
      %22 = arith.divf %20, %21 : vector<16x1xf32>
      %23 = vector.broadcast %22 : vector<16x1xf32> to vector<16x32xf32>
      %24 = arith.subf %18, %23 : vector<16x32xf32>
      %25 = arith.mulf %24, %24 : vector<16x32xf32>
      %cst_18 = arith.constant dense<0.000000e+00> : vector<16xf32>
      %26 = vector.multi_reduction <add>, %25, %cst_18 [1] : vector<16x32xf32> to vector<16xf32>
      %27 = vector.shape_cast %26 : vector<16xf32> to vector<16x1xf32>
      %cst_19 = arith.constant 3.200000e+01 : f32
      %28 = vector.broadcast %cst_19 : f32 to vector<16x1xf32>
      %29 = arith.divf %27, %28 : vector<16x1xf32>
      %30 = vector.broadcast %22 : vector<16x1xf32> to vector<16x32xf32>
      %31 = arith.subf %18, %30 : vector<16x32xf32>
      %cst_20 = arith.constant 9.99999974E-6 : f32
      %32 = vector.broadcast %cst_20 : f32 to vector<16x1xf32>
      %33 = arith.addf %29, %32 : vector<16x1xf32>
      %34 = math.rsqrt %33 : vector<16x1xf32>
      %35 = vector.broadcast %34 : vector<16x1xf32> to vector<16x32xf32>
      %36 = arith.mulf %31, %35 : vector<16x32xf32>
      %c0_21 = arith.constant 0 : index
      %c0_22 = arith.constant 0 : index
      %37 = vector.load %arg7[%c0_21, %c0_22] : memref<1x32xf32, #tpu.memory_space<vmem>>, vector<1x32xf32>
      %38 = vector.broadcast %37 : vector<1x32xf32> to vector<16x32xf32>
      %39 = arith.mulf %36, %38 : vector<16x32xf32>
      %c0_23 = arith.constant 0 : index
      %c0_24 = arith.constant 0 : index
      %40 = vector.load %arg8[%c0_23, %c0_24] : memref<1x32xf32, #tpu.memory_space<vmem>>, vector<1x32xf32>
      %41 = vector.broadcast %40 : vector<1x32xf32> to vector<16x32xf32>
      %42 = arith.addf %39, %41 : vector<16x32xf32>
      %43 = arith.truncf %42 : vector<16x32xf32> to vector<16x32xbf16>
      %c0_25 = arith.constant 0 : index
      %c0_26 = arith.constant 0 : index
      %44 = vector.load %arg9[%c0_25, %c0_26] : memref<16x32xbf16, #tpu.memory_space<vmem>>, vector<16x32xbf16>
      tpu.vector_store %arg9[%c0_25, %c0_26], %43 {strides = array<i32>} : memref<16x32xbf16, #tpu.memory_space<vmem>>, vector<16x32xbf16>,
    } else {
    }
    return
  }
  func.func @transform_0(%arg0: i32, %arg1: i32, %arg2: i32) -> (i32, i32) {
    %c0_i32 = arith.constant 0 : i32
    return %arg1, %arg2 : i32, i32
  }
  func.func @transform_1(%arg0: i32, %arg1: i32, %arg2: i32) -> (i32, i32) {
    %c0_i32 = arith.constant 0 : i32
    return %arg2, %arg0 : i32, i32
  }
  func.func @transform_2(%arg0: i32, %arg1: i32, %arg2: i32) -> (i32, i32) {
    %c0_i32 = arith.constant 0 : i32
    %c0_i32_0 = arith.constant 0 : i32
    return %c0_i32, %arg0 : i32, i32
  }
  func.func @transform_3(%arg0: i32, %arg1: i32, %arg2: i32) -> (i32, i32) {
    %c0_i32 = arith.constant 0 : i32
    return %arg1, %arg0 : i32, i32
  }
  func.func @transform_4(%arg0: i32, %arg1: i32, %arg2: i32) -> (i32, i32) {
    %c0_i32 = arith.constant 0 : i32
    %c0_i32_0 = arith.constant 0 : i32
    return %c0_i32, %arg0 : i32, i32
  }
  func.func @transform_5(%arg0: i32, %arg1: i32, %arg2: i32) -> (i32, i32) {
    %c0_i32 = arith.constant 0 : i32
    %c0_i32_0 = arith.constant 0 : i32
    return %c0_i32, %arg0 : i32, i32
  }
  func.func @transform_6(%arg0: i32, %arg1: i32, %arg2: i32) -> (i32, i32) {
    %c0_i32 = arith.constant 0 : i32
    return %arg1, %arg0 : i32, i32
  }
}

module attributes {stable_mosaic.version = 11 : i64} {
  func.func @_attn_kernel(%arg0: i32, %arg1: i32, %arg2: i32, %arg3: memref<1x1x8xf32, #tpu.memory_space<vmem>>, %arg4: memref<1x8x32xbf16, #tpu.memory_space<vmem>>, %arg5: memref<1x8x32xbf16, #tpu.memory_space<vmem>>, %arg6: memref<1x8x32xbf16, #tpu.memory_space<vmem>>, %arg7: memref<1x8x32xbf16, #tpu.memory_space<vmem>>, %arg8: memref<4x8x1xf32, #tpu.memory_space<vmem>>, %arg9: memref<4x8x1xf32, #tpu.memory_space<vmem>>, %arg10: memref<8x32xf32, #tpu.memory_space<vmem>>) attributes {dimension_semantics = [#tpu.dimension_semantics<parallel>, #tpu.dimension_semantics<parallel>, #tpu.dimension_semantics<arbitrary>], iteration_bounds = array<i64: 2, 1, 1>, scalar_prefetch = 0 : i64, scratch_operands = 3 : i64, tpu.core_type = #tpu.core_type<tc>, window_params = [{transform_indices = @transform_0, window_bounds = array<i64: 1, 1, 8>}, {transform_indices = @transform_1, window_bounds = array<i64: 1, 8, 32>}, {transform_indices = @transform_2, window_bounds = array<i64: 1, 8, 32>}, {transform_indices = @transform_3, window_bounds = array<i64: 1, 8, 32>}, {transform_indices = @transform_4, window_bounds = array<i64: 1, 8, 32>}]} {
    %c0_i32 = arith.constant 0 : i32
    %0 = arith.cmpi eq, %arg2, %c0_i32 : i32
    %1 = arith.extui %0 : i1 to i32
    %c0_i32_0 = arith.constant 0 : i32
    %2 = arith.cmpi ne, %1, %c0_i32_0 : i32
    scf.if %2 {
      %cst_88 = arith.constant -1.000000e+30 : f32
      %156 = vector.broadcast %cst_88 : f32 to vector<4x8x1xf32>
      %c0_89 = arith.constant 0 : index
      %c0_90 = arith.constant 0 : index
      %c0_91 = arith.constant 0 : index
      %157 = vector.load %arg8[%c0_89, %c0_90, %c0_91] : memref<4x8x1xf32, #tpu.memory_space<vmem>>, vector<4x8x1xf32>
      tpu.vector_store %arg8[%c0_89, %c0_90, %c0_91], %156 {strides = array<i32>} : memref<4x8x1xf32, #tpu.memory_space<vmem>>, vector<4x8x1xf32>,
      %cst_92 = arith.constant 0.000000e+00 : f32
      %158 = vector.broadcast %cst_92 : f32 to vector<4x8x1xf32>
      %c0_93 = arith.constant 0 : index
      %c0_94 = arith.constant 0 : index
      %c0_95 = arith.constant 0 : index
      %159 = vector.load %arg9[%c0_93, %c0_94, %c0_95] : memref<4x8x1xf32, #tpu.memory_space<vmem>>, vector<4x8x1xf32>
      tpu.vector_store %arg9[%c0_93, %c0_94, %c0_95], %158 {strides = array<i32>} : memref<4x8x1xf32, #tpu.memory_space<vmem>>, vector<4x8x1xf32>,
      %cst_96 = arith.constant 0.000000e+00 : f32
      %160 = vector.broadcast %cst_96 : f32 to vector<8x32xf32>
      %c0_97 = arith.constant 0 : index
      %c0_98 = arith.constant 0 : index
      %161 = vector.load %arg10[%c0_97, %c0_98] : memref<8x32xf32, #tpu.memory_space<vmem>>, vector<8x32xf32>
      tpu.vector_store %arg10[%c0_97, %c0_98], %160 {strides = array<i32>} : memref<8x32xf32, #tpu.memory_space<vmem>>, vector<8x32xf32>,
    } else {
    }
    %c0 = arith.constant 0 : index
    %c0_1 = arith.constant 0 : index
    %c0_2 = arith.constant 0 : index
    %3 = vector.load %arg4[%c0, %c0_1, %c0_2] : memref<1x8x32xbf16, #tpu.memory_space<vmem>>, vector<1x8x32xbf16>
    %4 = vector.shape_cast %3 : vector<1x8x32xbf16> to vector<8x32xbf16>
    %cst = arith.constant 3.535160e-01 : bf16
    %5 = vector.broadcast %cst : bf16 to vector<8x32xbf16>
    %6 = arith.mulf %4, %5 : vector<8x32xbf16>
    %c0_3 = arith.constant 0 : index
    %c0_4 = arith.constant 0 : index
    %c0_5 = arith.constant 0 : index
    %7 = vector.load %arg5[%c0_3, %c0_4, %c0_5] : memref<1x8x32xbf16, #tpu.memory_space<vmem>>, vector<1x8x32xbf16>
    %8 = vector.shape_cast %7 : vector<1x8x32xbf16> to vector<8x32xbf16>
    %c0_6 = arith.constant 0 : index
    %c0_7 = arith.constant 0 : index
    %c0_8 = arith.constant 0 : index
    %9 = vector.load %arg6[%c0_6, %c0_7, %c0_8] : memref<1x8x32xbf16, #tpu.memory_space<vmem>>, vector<1x8x32xbf16>
    %10 = vector.shape_cast %9 : vector<1x8x32xbf16> to vector<8x32xbf16>
    %c0_9 = arith.constant 0 : index
    %c0_10 = arith.constant 0 : index
    %c0_11 = arith.constant 0 : index
    %11 = vector.load %arg3[%c0_9, %c0_10, %c0_11] : memref<1x1x8xf32, #tpu.memory_space<vmem>>, vector<1x1x8xf32>
    %12 = vector.shape_cast %11 : vector<1x1x8xf32> to vector<1x8xf32>
    %13 = vector.extract_strided_slice %6 {offsets = [0, 0], sizes = [8, 8], strides = [1, 1]} : vector<8x32xbf16> to vector<8x8xbf16>
    %14 = vector.extract_strided_slice %8 {offsets = [0, 0], sizes = [8, 8], strides = [1, 1]} : vector<8x32xbf16> to vector<8x8xbf16>
    %cst_12 = arith.constant dense<0.000000e+00> : vector<8x8xf32>
    %15 = tpu.matmul %13, %14, %cst_12 {dimension_numbers = #tpu.dot_dimension_numbers<[1], [1], [0], [0], [0, 0, 1, 0], [], []>} : vector<8x8xbf16>, vector<8x8xbf16>, vector<8x8xf32> -> vector<8x8xf32>
    %16 = vector.broadcast %12 : vector<1x8xf32> to vector<8x8xf32>
    %17 = arith.addf %15, %16 : vector<8x8xf32>
    %c0_13 = arith.constant 0 : index
    %c0_14 = arith.constant 0 : index
    %c0_15 = arith.constant 0 : index
    %18 = vector.load %arg8[%c0_13, %c0_14, %c0_15] : memref<4x8x1xf32, #tpu.memory_space<vmem>>, vector<1x8x1xf32>
    %19 = vector.shape_cast %18 : vector<1x8x1xf32> to vector<8x1xf32>
    %cst_16 = arith.constant dense<0xFF800000> : vector<8xf32>
    %20 = vector.multi_reduction <maximumf>, %17, %cst_16 [1] : vector<8x8xf32> to vector<8xf32>
    %21 = vector.shape_cast %20 : vector<8xf32> to vector<8x1xf32>
    %22 = arith.maximumf %19, %21 : vector<8x1xf32>
    %23 = arith.subf %19, %22 : vector<8x1xf32>
    %24 = math.exp %23 : vector<8x1xf32>
    %25 = vector.broadcast %22 : vector<8x1xf32> to vector<8x8xf32>
    %26 = arith.subf %17, %25 : vector<8x8xf32>
    %27 = math.exp %26 : vector<8x8xf32>
    %c0_17 = arith.constant 0 : index
    %c0_18 = arith.constant 0 : index
    %c0_19 = arith.constant 0 : index
    %28 = vector.load %arg9[%c0_17, %c0_18, %c0_19] : memref<4x8x1xf32, #tpu.memory_space<vmem>>, vector<1x8x1xf32>
    %29 = vector.shape_cast %28 : vector<1x8x1xf32> to vector<8x1xf32>
    %30 = arith.mulf %24, %29 : vector<8x1xf32>
    %cst_20 = arith.constant dense<0.000000e+00> : vector<8xf32>
    %31 = vector.multi_reduction <add>, %27, %cst_20 [1] : vector<8x8xf32> to vector<8xf32>
    %32 = vector.shape_cast %31 : vector<8xf32> to vector<8x1xf32>
    %33 = arith.addf %30, %32 : vector<8x1xf32>
    %c0_21 = arith.constant 0 : index
    %c0_22 = arith.constant 0 : index
    %c0_23 = arith.constant 0 : index
    %34 = vector.load %arg9[%c0_21, %c0_22, %c0_23] : memref<4x8x1xf32, #tpu.memory_space<vmem>>, vector<1x8x1xf32>
    %35 = vector.shape_cast %34 : vector<1x8x1xf32> to vector<8x1xf32>
    %36 = vector.shape_cast %33 : vector<8x1xf32> to vector<1x8x1xf32>
    tpu.vector_store %arg9[%c0_21, %c0_22, %c0_23], %36 {strides = array<i32>} : memref<4x8x1xf32, #tpu.memory_space<vmem>>, vector<1x8x1xf32>,
    %c0_24 = arith.constant 0 : index
    %c0_25 = arith.constant 0 : index
    %c0_26 = arith.constant 0 : index
    %37 = vector.load %arg8[%c0_24, %c0_25, %c0_26] : memref<4x8x1xf32, #tpu.memory_space<vmem>>, vector<1x8x1xf32>
    %38 = vector.shape_cast %37 : vector<1x8x1xf32> to vector<8x1xf32>
    %39 = vector.shape_cast %22 : vector<8x1xf32> to vector<1x8x1xf32>
    tpu.vector_store %arg8[%c0_24, %c0_25, %c0_26], %39 {strides = array<i32>} : memref<4x8x1xf32, #tpu.memory_space<vmem>>, vector<1x8x1xf32>,
    %40 = arith.truncf %27 : vector<8x8xf32> to vector<8x8xbf16>
    %41 = vector.extract_strided_slice %10 {offsets = [0, 0], sizes = [8, 8], strides = [1, 1]} : vector<8x32xbf16> to vector<8x8xbf16>
    %cst_27 = arith.constant dense<0.000000e+00> : vector<8x8xf32>
    %42 = tpu.matmul %40, %41, %cst_27 {dimension_numbers = #tpu.dot_dimension_numbers<[1], [0], [0], [1], [0, 0, 1, 1], [], []>} : vector<8x8xbf16>, vector<8x8xbf16>, vector<8x8xf32> -> vector<8x8xf32>
    %c0_28 = arith.constant 0 : index
    %c0_29 = arith.constant 0 : index
    %43 = vector.load %arg10[%c0_28, %c0_29] : memref<8x32xf32, #tpu.memory_space<vmem>>, vector<8x8xf32>
    %44 = vector.broadcast %24 : vector<8x1xf32> to vector<8x8xf32>
    %45 = arith.mulf %44, %43 : vector<8x8xf32>
    %46 = arith.addf %45, %42 : vector<8x8xf32>
    %c0_30 = arith.constant 0 : index
    %c0_31 = arith.constant 0 : index
    %47 = vector.load %arg10[%c0_30, %c0_31] : memref<8x32xf32, #tpu.memory_space<vmem>>, vector<8x8xf32>
    tpu.vector_store %arg10[%c0_30, %c0_31], %46 {strides = array<i32>} : memref<8x32xf32, #tpu.memory_space<vmem>>, vector<8x8xf32>,
    %48 = vector.extract_strided_slice %6 {offsets = [0, 8], sizes = [8, 8], strides = [1, 1]} : vector<8x32xbf16> to vector<8x8xbf16>
    %49 = vector.extract_strided_slice %8 {offsets = [0, 8], sizes = [8, 8], strides = [1, 1]} : vector<8x32xbf16> to vector<8x8xbf16>
    %cst_32 = arith.constant dense<0.000000e+00> : vector<8x8xf32>
    %50 = tpu.matmul %48, %49, %cst_32 {dimension_numbers = #tpu.dot_dimension_numbers<[1], [1], [0], [0], [0, 0, 1, 0], [], []>} : vector<8x8xbf16>, vector<8x8xbf16>, vector<8x8xf32> -> vector<8x8xf32>
    %51 = vector.broadcast %12 : vector<1x8xf32> to vector<8x8xf32>
    %52 = arith.addf %50, %51 : vector<8x8xf32>
    %c1 = arith.constant 1 : index
    %c0_33 = arith.constant 0 : index
    %c0_34 = arith.constant 0 : index
    %53 = vector.load %arg8[%c1, %c0_33, %c0_34] : memref<4x8x1xf32, #tpu.memory_space<vmem>>, vector<1x8x1xf32>
    %54 = vector.shape_cast %53 : vector<1x8x1xf32> to vector<8x1xf32>
    %cst_35 = arith.constant dense<0xFF800000> : vector<8xf32>
    %55 = vector.multi_reduction <maximumf>, %52, %cst_35 [1] : vector<8x8xf32> to vector<8xf32>
    %56 = vector.shape_cast %55 : vector<8xf32> to vector<8x1xf32>
    %57 = arith.maximumf %54, %56 : vector<8x1xf32>
    %58 = arith.subf %54, %57 : vector<8x1xf32>
    %59 = math.exp %58 : vector<8x1xf32>
    %60 = vector.broadcast %57 : vector<8x1xf32> to vector<8x8xf32>
    %61 = arith.subf %52, %60 : vector<8x8xf32>
    %62 = math.exp %61 : vector<8x8xf32>
    %c1_36 = arith.constant 1 : index
    %c0_37 = arith.constant 0 : index
    %c0_38 = arith.constant 0 : index
    %63 = vector.load %arg9[%c1_36, %c0_37, %c0_38] : memref<4x8x1xf32, #tpu.memory_space<vmem>>, vector<1x8x1xf32>
    %64 = vector.shape_cast %63 : vector<1x8x1xf32> to vector<8x1xf32>
    %65 = arith.mulf %59, %64 : vector<8x1xf32>
    %cst_39 = arith.constant dense<0.000000e+00> : vector<8xf32>
    %66 = vector.multi_reduction <add>, %62, %cst_39 [1] : vector<8x8xf32> to vector<8xf32>
    %67 = vector.shape_cast %66 : vector<8xf32> to vector<8x1xf32>
    %68 = arith.addf %65, %67 : vector<8x1xf32>
    %c1_40 = arith.constant 1 : index
    %c0_41 = arith.constant 0 : index
    %c0_42 = arith.constant 0 : index
    %69 = vector.load %arg9[%c1_40, %c0_41, %c0_42] : memref<4x8x1xf32, #tpu.memory_space<vmem>>, vector<1x8x1xf32>
    %70 = vector.shape_cast %69 : vector<1x8x1xf32> to vector<8x1xf32>
    %71 = vector.shape_cast %68 : vector<8x1xf32> to vector<1x8x1xf32>
    tpu.vector_store %arg9[%c1_40, %c0_41, %c0_42], %71 {strides = array<i32>} : memref<4x8x1xf32, #tpu.memory_space<vmem>>, vector<1x8x1xf32>,
    %c1_43 = arith.constant 1 : index
    %c0_44 = arith.constant 0 : index
    %c0_45 = arith.constant 0 : index
    %72 = vector.load %arg8[%c1_43, %c0_44, %c0_45] : memref<4x8x1xf32, #tpu.memory_space<vmem>>, vector<1x8x1xf32>
    %73 = vector.shape_cast %72 : vector<1x8x1xf32> to vector<8x1xf32>
    %74 = vector.shape_cast %57 : vector<8x1xf32> to vector<1x8x1xf32>
    tpu.vector_store %arg8[%c1_43, %c0_44, %c0_45], %74 {strides = array<i32>} : memref<4x8x1xf32, #tpu.memory_space<vmem>>, vector<1x8x1xf32>,
    %75 = arith.truncf %62 : vector<8x8xf32> to vector<8x8xbf16>
    %76 = vector.extract_strided_slice %10 {offsets = [0, 8], sizes = [8, 8], strides = [1, 1]} : vector<8x32xbf16> to vector<8x8xbf16>
    %cst_46 = arith.constant dense<0.000000e+00> : vector<8x8xf32>
    %77 = tpu.matmul %75, %76, %cst_46 {dimension_numbers = #tpu.dot_dimension_numbers<[1], [0], [0], [1], [0, 0, 1, 1], [], []>} : vector<8x8xbf16>, vector<8x8xbf16>, vector<8x8xf32> -> vector<8x8xf32>
    %c0_47 = arith.constant 0 : index
    %c8 = arith.constant 8 : index
    %78 = vector.load %arg10[%c0_47, %c8] : memref<8x32xf32, #tpu.memory_space<vmem>>, vector<8x8xf32>
    %79 = vector.broadcast %59 : vector<8x1xf32> to vector<8x8xf32>
    %80 = arith.mulf %79, %78 : vector<8x8xf32>
    %81 = arith.addf %80, %77 : vector<8x8xf32>
    %c0_48 = arith.constant 0 : index
    %c8_49 = arith.constant 8 : index
    %82 = vector.load %arg10[%c0_48, %c8_49] : memref<8x32xf32, #tpu.memory_space<vmem>>, vector<8x8xf32>
    tpu.vector_store %arg10[%c0_48, %c8_49], %81 {strides = array<i32>} : memref<8x32xf32, #tpu.memory_space<vmem>>, vector<8x8xf32>,
    %83 = vector.extract_strided_slice %6 {offsets = [0, 16], sizes = [8, 8], strides = [1, 1]} : vector<8x32xbf16> to vector<8x8xbf16>
    %84 = vector.extract_strided_slice %8 {offsets = [0, 16], sizes = [8, 8], strides = [1, 1]} : vector<8x32xbf16> to vector<8x8xbf16>
    %cst_50 = arith.constant dense<0.000000e+00> : vector<8x8xf32>
    %85 = tpu.matmul %83, %84, %cst_50 {dimension_numbers = #tpu.dot_dimension_numbers<[1], [1], [0], [0], [0, 0, 1, 0], [], []>} : vector<8x8xbf16>, vector<8x8xbf16>, vector<8x8xf32> -> vector<8x8xf32>
    %86 = vector.broadcast %12 : vector<1x8xf32> to vector<8x8xf32>
    %87 = arith.addf %85, %86 : vector<8x8xf32>
    %c2 = arith.constant 2 : index
    %c0_51 = arith.constant 0 : index
    %c0_52 = arith.constant 0 : index
    %88 = vector.load %arg8[%c2, %c0_51, %c0_52] : memref<4x8x1xf32, #tpu.memory_space<vmem>>, vector<1x8x1xf32>
    %89 = vector.shape_cast %88 : vector<1x8x1xf32> to vector<8x1xf32>
    %cst_53 = arith.constant dense<0xFF800000> : vector<8xf32>
    %90 = vector.multi_reduction <maximumf>, %87, %cst_53 [1] : vector<8x8xf32> to vector<8xf32>
    %91 = vector.shape_cast %90 : vector<8xf32> to vector<8x1xf32>
    %92 = arith.maximumf %89, %91 : vector<8x1xf32>
    %93 = arith.subf %89, %92 : vector<8x1xf32>
    %94 = math.exp %93 : vector<8x1xf32>
    %95 = vector.broadcast %92 : vector<8x1xf32> to vector<8x8xf32>
    %96 = arith.subf %87, %95 : vector<8x8xf32>
    %97 = math.exp %96 : vector<8x8xf32>
    %c2_54 = arith.constant 2 : index
    %c0_55 = arith.constant 0 : index
    %c0_56 = arith.constant 0 : index
    %98 = vector.load %arg9[%c2_54, %c0_55, %c0_56] : memref<4x8x1xf32, #tpu.memory_space<vmem>>, vector<1x8x1xf32>
    %99 = vector.shape_cast %98 : vector<1x8x1xf32> to vector<8x1xf32>
    %100 = arith.mulf %94, %99 : vector<8x1xf32>
    %cst_57 = arith.constant dense<0.000000e+00> : vector<8xf32>
    %101 = vector.multi_reduction <add>, %97, %cst_57 [1] : vector<8x8xf32> to vector<8xf32>
    %102 = vector.shape_cast %101 : vector<8xf32> to vector<8x1xf32>
    %103 = arith.addf %100, %102 : vector<8x1xf32>
    %c2_58 = arith.constant 2 : index
    %c0_59 = arith.constant 0 : index
    %c0_60 = arith.constant 0 : index
    %104 = vector.load %arg9[%c2_58, %c0_59, %c0_60] : memref<4x8x1xf32, #tpu.memory_space<vmem>>, vector<1x8x1xf32>
    %105 = vector.shape_cast %104 : vector<1x8x1xf32> to vector<8x1xf32>
    %106 = vector.shape_cast %103 : vector<8x1xf32> to vector<1x8x1xf32>
    tpu.vector_store %arg9[%c2_58, %c0_59, %c0_60], %106 {strides = array<i32>} : memref<4x8x1xf32, #tpu.memory_space<vmem>>, vector<1x8x1xf32>,
    %c2_61 = arith.constant 2 : index
    %c0_62 = arith.constant 0 : index
    %c0_63 = arith.constant 0 : index
    %107 = vector.load %arg8[%c2_61, %c0_62, %c0_63] : memref<4x8x1xf32, #tpu.memory_space<vmem>>, vector<1x8x1xf32>
    %108 = vector.shape_cast %107 : vector<1x8x1xf32> to vector<8x1xf32>
    %109 = vector.shape_cast %92 : vector<8x1xf32> to vector<1x8x1xf32>
    tpu.vector_store %arg8[%c2_61, %c0_62, %c0_63], %109 {strides = array<i32>} : memref<4x8x1xf32, #tpu.memory_space<vmem>>, vector<1x8x1xf32>,
    %110 = arith.truncf %97 : vector<8x8xf32> to vector<8x8xbf16>
    %111 = vector.extract_strided_slice %10 {offsets = [0, 16], sizes = [8, 8], strides = [1, 1]} : vector<8x32xbf16> to vector<8x8xbf16>
    %cst_64 = arith.constant dense<0.000000e+00> : vector<8x8xf32>
    %112 = tpu.matmul %110, %111, %cst_64 {dimension_numbers = #tpu.dot_dimension_numbers<[1], [0], [0], [1], [0, 0, 1, 1], [], []>} : vector<8x8xbf16>, vector<8x8xbf16>, vector<8x8xf32> -> vector<8x8xf32>
    %c0_65 = arith.constant 0 : index
    %c16 = arith.constant 16 : index
    %113 = vector.load %arg10[%c0_65, %c16] : memref<8x32xf32, #tpu.memory_space<vmem>>, vector<8x8xf32>
    %114 = vector.broadcast %94 : vector<8x1xf32> to vector<8x8xf32>
    %115 = arith.mulf %114, %113 : vector<8x8xf32>
    %116 = arith.addf %115, %112 : vector<8x8xf32>
    %c0_66 = arith.constant 0 : index
    %c16_67 = arith.constant 16 : index
    %117 = vector.load %arg10[%c0_66, %c16_67] : memref<8x32xf32, #tpu.memory_space<vmem>>, vector<8x8xf32>
    tpu.vector_store %arg10[%c0_66, %c16_67], %116 {strides = array<i32>} : memref<8x32xf32, #tpu.memory_space<vmem>>, vector<8x8xf32>,
    %118 = vector.extract_strided_slice %6 {offsets = [0, 24], sizes = [8, 8], strides = [1, 1]} : vector<8x32xbf16> to vector<8x8xbf16>
    %119 = vector.extract_strided_slice %8 {offsets = [0, 24], sizes = [8, 8], strides = [1, 1]} : vector<8x32xbf16> to vector<8x8xbf16>
    %cst_68 = arith.constant dense<0.000000e+00> : vector<8x8xf32>
    %120 = tpu.matmul %118, %119, %cst_68 {dimension_numbers = #tpu.dot_dimension_numbers<[1], [1], [0], [0], [0, 0, 1, 0], [], []>} : vector<8x8xbf16>, vector<8x8xbf16>, vector<8x8xf32> -> vector<8x8xf32>
    %121 = vector.broadcast %12 : vector<1x8xf32> to vector<8x8xf32>
    %122 = arith.addf %120, %121 : vector<8x8xf32>
    %c3 = arith.constant 3 : index
    %c0_69 = arith.constant 0 : index
    %c0_70 = arith.constant 0 : index
    %123 = vector.load %arg8[%c3, %c0_69, %c0_70] : memref<4x8x1xf32, #tpu.memory_space<vmem>>, vector<1x8x1xf32>
    %124 = vector.shape_cast %123 : vector<1x8x1xf32> to vector<8x1xf32>
    %cst_71 = arith.constant dense<0xFF800000> : vector<8xf32>
    %125 = vector.multi_reduction <maximumf>, %122, %cst_71 [1] : vector<8x8xf32> to vector<8xf32>
    %126 = vector.shape_cast %125 : vector<8xf32> to vector<8x1xf32>
    %127 = arith.maximumf %124, %126 : vector<8x1xf32>
    %128 = arith.subf %124, %127 : vector<8x1xf32>
    %129 = math.exp %128 : vector<8x1xf32>
    %130 = vector.broadcast %127 : vector<8x1xf32> to vector<8x8xf32>
    %131 = arith.subf %122, %130 : vector<8x8xf32>
    %132 = math.exp %131 : vector<8x8xf32>
    %c3_72 = arith.constant 3 : index
    %c0_73 = arith.constant 0 : index
    %c0_74 = arith.constant 0 : index
    %133 = vector.load %arg9[%c3_72, %c0_73, %c0_74] : memref<4x8x1xf32, #tpu.memory_space<vmem>>, vector<1x8x1xf32>
    %134 = vector.shape_cast %133 : vector<1x8x1xf32> to vector<8x1xf32>
    %135 = arith.mulf %129, %134 : vector<8x1xf32>
    %cst_75 = arith.constant dense<0.000000e+00> : vector<8xf32>
    %136 = vector.multi_reduction <add>, %132, %cst_75 [1] : vector<8x8xf32> to vector<8xf32>
    %137 = vector.shape_cast %136 : vector<8xf32> to vector<8x1xf32>
    %138 = arith.addf %135, %137 : vector<8x1xf32>
    %c3_76 = arith.constant 3 : index
    %c0_77 = arith.constant 0 : index
    %c0_78 = arith.constant 0 : index
    %139 = vector.load %arg9[%c3_76, %c0_77, %c0_78] : memref<4x8x1xf32, #tpu.memory_space<vmem>>, vector<1x8x1xf32>
    %140 = vector.shape_cast %139 : vector<1x8x1xf32> to vector<8x1xf32>
    %141 = vector.shape_cast %138 : vector<8x1xf32> to vector<1x8x1xf32>
    tpu.vector_store %arg9[%c3_76, %c0_77, %c0_78], %141 {strides = array<i32>} : memref<4x8x1xf32, #tpu.memory_space<vmem>>, vector<1x8x1xf32>,
    %c3_79 = arith.constant 3 : index
    %c0_80 = arith.constant 0 : index
    %c0_81 = arith.constant 0 : index
    %142 = vector.load %arg8[%c3_79, %c0_80, %c0_81] : memref<4x8x1xf32, #tpu.memory_space<vmem>>, vector<1x8x1xf32>
    %143 = vector.shape_cast %142 : vector<1x8x1xf32> to vector<8x1xf32>
    %144 = vector.shape_cast %127 : vector<8x1xf32> to vector<1x8x1xf32>
    tpu.vector_store %arg8[%c3_79, %c0_80, %c0_81], %144 {strides = array<i32>} : memref<4x8x1xf32, #tpu.memory_space<vmem>>, vector<1x8x1xf32>,
    %145 = arith.truncf %132 : vector<8x8xf32> to vector<8x8xbf16>
    %146 = vector.extract_strided_slice %10 {offsets = [0, 24], sizes = [8, 8], strides = [1, 1]} : vector<8x32xbf16> to vector<8x8xbf16>
    %cst_82 = arith.constant dense<0.000000e+00> : vector<8x8xf32>
    %147 = tpu.matmul %145, %146, %cst_82 {dimension_numbers = #tpu.dot_dimension_numbers<[1], [0], [0], [1], [0, 0, 1, 1], [], []>} : vector<8x8xbf16>, vector<8x8xbf16>, vector<8x8xf32> -> vector<8x8xf32>
    %c0_83 = arith.constant 0 : index
    %c24 = arith.constant 24 : index
    %148 = vector.load %arg10[%c0_83, %c24] : memref<8x32xf32, #tpu.memory_space<vmem>>, vector<8x8xf32>
    %149 = vector.broadcast %129 : vector<8x1xf32> to vector<8x8xf32>
    %150 = arith.mulf %149, %148 : vector<8x8xf32>
    %151 = arith.addf %150, %147 : vector<8x8xf32>
    %c0_84 = arith.constant 0 : index
    %c24_85 = arith.constant 24 : index
    %152 = vector.load %arg10[%c0_84, %c24_85] : memref<8x32xf32, #tpu.memory_space<vmem>>, vector<8x8xf32>
    tpu.vector_store %arg10[%c0_84, %c24_85], %151 {strides = array<i32>} : memref<8x32xf32, #tpu.memory_space<vmem>>, vector<8x8xf32>,
    %c0_i32_86 = arith.constant 0 : i32
    %153 = arith.cmpi eq, %arg2, %c0_i32_86 : i32
    %154 = arith.extui %153 : i1 to i32
    %c0_i32_87 = arith.constant 0 : i32
    %155 = arith.cmpi ne, %154, %c0_i32_87 : i32
    scf.if %155 {
      %c0_88 = arith.constant 0 : index
      %c0_89 = arith.constant 0 : index
      %156 = vector.load %arg10[%c0_88, %c0_89] : memref<8x32xf32, #tpu.memory_space<vmem>>, vector<8x8xf32>
      %c0_90 = arith.constant 0 : index
      %c0_91 = arith.constant 0 : index
      %c0_92 = arith.constant 0 : index
      %157 = vector.load %arg9[%c0_90, %c0_91, %c0_92] : memref<4x8x1xf32, #tpu.memory_space<vmem>>, vector<1x8x1xf32>
      %158 = vector.shape_cast %157 : vector<1x8x1xf32> to vector<8x1xf32>
      %159 = vector.broadcast %158 : vector<8x1xf32> to vector<8x8xf32>
      %160 = arith.divf %156, %159 : vector<8x8xf32>
      %c0_93 = arith.constant 0 : index
      %c0_94 = arith.constant 0 : index
      %161 = vector.load %arg10[%c0_93, %c0_94] : memref<8x32xf32, #tpu.memory_space<vmem>>, vector<8x8xf32>
      tpu.vector_store %arg10[%c0_93, %c0_94], %160 {strides = array<i32>} : memref<8x32xf32, #tpu.memory_space<vmem>>, vector<8x8xf32>,
      %c0_95 = arith.constant 0 : index
      %c8_96 = arith.constant 8 : index
      %162 = vector.load %arg10[%c0_95, %c8_96] : memref<8x32xf32, #tpu.memory_space<vmem>>, vector<8x8xf32>
      %c1_97 = arith.constant 1 : index
      %c0_98 = arith.constant 0 : index
      %c0_99 = arith.constant 0 : index
      %163 = vector.load %arg9[%c1_97, %c0_98, %c0_99] : memref<4x8x1xf32, #tpu.memory_space<vmem>>, vector<1x8x1xf32>
      %164 = vector.shape_cast %163 : vector<1x8x1xf32> to vector<8x1xf32>
      %165 = vector.broadcast %164 : vector<8x1xf32> to vector<8x8xf32>
      %166 = arith.divf %162, %165 : vector<8x8xf32>
      %c0_100 = arith.constant 0 : index
      %c8_101 = arith.constant 8 : index
      %167 = vector.load %arg10[%c0_100, %c8_101] : memref<8x32xf32, #tpu.memory_space<vmem>>, vector<8x8xf32>
      tpu.vector_store %arg10[%c0_100, %c8_101], %166 {strides = array<i32>} : memref<8x32xf32, #tpu.memory_space<vmem>>, vector<8x8xf32>,
      %c0_102 = arith.constant 0 : index
      %c16_103 = arith.constant 16 : index
      %168 = vector.load %arg10[%c0_102, %c16_103] : memref<8x32xf32, #tpu.memory_space<vmem>>, vector<8x8xf32>
      %c2_104 = arith.constant 2 : index
      %c0_105 = arith.constant 0 : index
      %c0_106 = arith.constant 0 : index
      %169 = vector.load %arg9[%c2_104, %c0_105, %c0_106] : memref<4x8x1xf32, #tpu.memory_space<vmem>>, vector<1x8x1xf32>
      %170 = vector.shape_cast %169 : vector<1x8x1xf32> to vector<8x1xf32>
      %171 = vector.broadcast %170 : vector<8x1xf32> to vector<8x8xf32>
      %172 = arith.divf %168, %171 : vector<8x8xf32>
      %c0_107 = arith.constant 0 : index
      %c16_108 = arith.constant 16 : index
      %173 = vector.load %arg10[%c0_107, %c16_108] : memref<8x32xf32, #tpu.memory_space<vmem>>, vector<8x8xf32>
      tpu.vector_store %arg10[%c0_107, %c16_108], %172 {strides = array<i32>} : memref<8x32xf32, #tpu.memory_space<vmem>>, vector<8x8xf32>,
      %c0_109 = arith.constant 0 : index
      %c24_110 = arith.constant 24 : index
      %174 = vector.load %arg10[%c0_109, %c24_110] : memref<8x32xf32, #tpu.memory_space<vmem>>, vector<8x8xf32>
      %c3_111 = arith.constant 3 : index
      %c0_112 = arith.constant 0 : index
      %c0_113 = arith.constant 0 : index
      %175 = vector.load %arg9[%c3_111, %c0_112, %c0_113] : memref<4x8x1xf32, #tpu.memory_space<vmem>>, vector<1x8x1xf32>
      %176 = vector.shape_cast %175 : vector<1x8x1xf32> to vector<8x1xf32>
      %177 = vector.broadcast %176 : vector<8x1xf32> to vector<8x8xf32>
      %178 = arith.divf %174, %177 : vector<8x8xf32>
      %c0_114 = arith.constant 0 : index
      %c24_115 = arith.constant 24 : index
      %179 = vector.load %arg10[%c0_114, %c24_115] : memref<8x32xf32, #tpu.memory_space<vmem>>, vector<8x8xf32>
      tpu.vector_store %arg10[%c0_114, %c24_115], %178 {strides = array<i32>} : memref<8x32xf32, #tpu.memory_space<vmem>>, vector<8x8xf32>,
      %c0_116 = arith.constant 0 : index
      %c0_117 = arith.constant 0 : index
      %180 = vector.load %arg10[%c0_116, %c0_117] : memref<8x32xf32, #tpu.memory_space<vmem>>, vector<8x32xf32>
      %181 = arith.truncf %180 : vector<8x32xf32> to vector<8x32xbf16>
      %c0_118 = arith.constant 0 : index
      %c0_119 = arith.constant 0 : index
      %c0_120 = arith.constant 0 : index
      %182 = vector.load %arg7[%c0_118, %c0_119, %c0_120] : memref<1x8x32xbf16, #tpu.memory_space<vmem>>, vector<1x8x32xbf16>
      %183 = vector.shape_cast %182 : vector<1x8x32xbf16> to vector<8x32xbf16>
      %184 = vector.shape_cast %181 : vector<8x32xbf16> to vector<1x8x32xbf16>
      tpu.vector_store %arg7[%c0_118, %c0_119, %c0_120], %184 {strides = array<i32>} : memref<1x8x32xbf16, #tpu.memory_space<vmem>>, vector<1x8x32xbf16>,
    } else {
    }
    return
  }
  func.func @transform_0(%arg0: i32, %arg1: i32, %arg2: i32) -> (i32, i32, i32) {
    %c0_i32 = arith.constant 0 : i32
    %c0_i32_0 = arith.constant 0 : i32
    return %arg0, %c0_i32, %arg2 : i32, i32, i32
  }
  func.func @transform_1(%arg0: i32, %arg1: i32, %arg2: i32) -> (i32, i32, i32) {
    %c0_i32 = arith.constant 0 : i32
    %c0_i32_0 = arith.constant 0 : i32
    return %arg0, %arg1, %c0_i32 : i32, i32, i32
  }
  func.func @transform_2(%arg0: i32, %arg1: i32, %arg2: i32) -> (i32, i32, i32) {
    %c0_i32 = arith.constant 0 : i32
    %c0_i32_0 = arith.constant 0 : i32
    return %arg0, %arg2, %c0_i32 : i32, i32, i32
  }
  func.func @transform_3(%arg0: i32, %arg1: i32, %arg2: i32) -> (i32, i32, i32) {
    %c0_i32 = arith.constant 0 : i32
    %c0_i32_0 = arith.constant 0 : i32
    return %arg0, %arg2, %c0_i32 : i32, i32, i32
  }
  func.func @transform_4(%arg0: i32, %arg1: i32, %arg2: i32) -> (i32, i32, i32) {
    %c0_i32 = arith.constant 0 : i32
    %c0_i32_0 = arith.constant 0 : i32
    return %arg0, %arg1, %c0_i32 : i32, i32, i32
  }
}

module attributes {stable_mosaic.version = 11 : i64} {
  func.func @_ffn_kernel(%arg0: i32, %arg1: i32, %arg2: memref<16x32xbf16, #tpu.memory_space<vmem>>, %arg3: memref<32x64xbf16, #tpu.memory_space<vmem>>, %arg4: memref<1x64xf32, #tpu.memory_space<vmem>>, %arg5: memref<64x32xbf16, #tpu.memory_space<vmem>>, %arg6: memref<1x32xf32, #tpu.memory_space<vmem>>, %arg7: memref<1x32xf32, #tpu.memory_space<vmem>>, %arg8: memref<1x32xf32, #tpu.memory_space<vmem>>, %arg9: memref<16x32xbf16, #tpu.memory_space<vmem>>, %arg10: memref<16x32xf32, #tpu.memory_space<vmem>>) attributes {dimension_semantics = [#tpu.dimension_semantics<parallel>, #tpu.dimension_semantics<arbitrary>], iteration_bounds = array<i64: 1, 1>, scalar_prefetch = 0 : i64, scratch_operands = 1 : i64, tpu.core_type = #tpu.core_type<tc>, window_params = [{transform_indices = @transform_0, window_bounds = array<i64: 16, 32>}, {transform_indices = @transform_1, window_bounds = array<i64: 32, 64>}, {transform_indices = @transform_2, window_bounds = array<i64: 1, 64>}, {transform_indices = @transform_3, window_bounds = array<i64: 64, 32>}, {pipeline_mode = #tpu.pipeline_mode<synchronous>, transform_indices = @transform_4, window_bounds = array<i64: 1, 32>}, {pipeline_mode = #tpu.pipeline_mode<synchronous>, transform_indices = @transform_5, window_bounds = array<i64: 1, 32>}, {pipeline_mode = #tpu.pipeline_mode<synchronous>, transform_indices = @transform_6, window_bounds = array<i64: 1, 32>}, {transform_indices = @transform_7, window_bounds = array<i64: 16, 32>}]} {
    %c0_i32 = arith.constant 0 : i32
    %0 = arith.cmpi eq, %arg1, %c0_i32 : i32
    %1 = arith.extui %0 : i1 to i32
    %c0_i32_0 = arith.constant 0 : i32
    %2 = arith.cmpi ne, %1, %c0_i32_0 : i32
    scf.if %2 {
      %cst_18 = arith.constant 0.000000e+00 : f32
      %26 = vector.broadcast %cst_18 : f32 to vector<16x32xf32>
      %c0_19 = arith.constant 0 : index
      %c0_20 = arith.constant 0 : index
      %27 = vector.load %arg10[%c0_19, %c0_20] : memref<16x32xf32, #tpu.memory_space<vmem>>, vector<16x32xf32>
      tpu.vector_store %arg10[%c0_19, %c0_20], %26 {strides = array<i32>} : memref<16x32xf32, #tpu.memory_space<vmem>>, vector<16x32xf32>,
    } else {
    }
    %c0 = arith.constant 0 : index
    %c0_1 = arith.constant 0 : index
    %3 = vector.load %arg2[%c0, %c0_1] : memref<16x32xbf16, #tpu.memory_space<vmem>>, vector<16x32xbf16>
    %c0_2 = arith.constant 0 : index
    %c0_3 = arith.constant 0 : index
    %4 = vector.load %arg3[%c0_2, %c0_3] : memref<32x64xbf16, #tpu.memory_space<vmem>>, vector<32x64xbf16>
    %cst = arith.constant dense<0.000000e+00> : vector<16x64xf32>
    %5 = tpu.matmul %3, %4, %cst {dimension_numbers = #tpu.dot_dimension_numbers<[1], [0], [0], [1], [0, 0, 1, 1], [], []>} : vector<16x32xbf16>, vector<32x64xbf16>, vector<16x64xf32> -> vector<16x64xf32>
    %c0_4 = arith.constant 0 : index
    %c0_5 = arith.constant 0 : index
    %6 = vector.load %arg4[%c0_4, %c0_5] : memref<1x64xf32, #tpu.memory_space<vmem>>, vector<1x64xf32>
    %7 = vector.broadcast %6 : vector<1x64xf32> to vector<16x64xf32>
    %8 = arith.addf %5, %7 : vector<16x64xf32>
    %cst_6 = arith.constant 5.000000e-01 : f32
    %9 = vector.broadcast %cst_6 : f32 to vector<16x64xf32>
    %10 = arith.mulf %9, %8 : vector<16x64xf32>
    %cst_7 = arith.constant 0.707106769 : f32
    %11 = vector.broadcast %cst_7 : f32 to vector<16x64xf32>
    %12 = arith.mulf %8, %11 : vector<16x64xf32>
    %13 = math.erf %12 : vector<16x64xf32>
    %cst_8 = arith.constant 1.000000e+00 : f32
    %14 = vector.broadcast %cst_8 : f32 to vector<16x64xf32>
    %15 = arith.addf %14, %13 : vector<16x64xf32>
    %16 = arith.mulf %10, %15 : vector<16x64xf32>
    %c0_9 = arith.constant 0 : index
    %c0_10 = arith.constant 0 : index
    %17 = vector.load %arg10[%c0_9, %c0_10] : memref<16x32xf32, #tpu.memory_space<vmem>>, vector<16x32xf32>
    %18 = arith.truncf %16 : vector<16x64xf32> to vector<16x64xbf16>
    %c0_11 = arith.constant 0 : index
    %c0_12 = arith.constant 0 : index
    %19 = vector.load %arg5[%c0_11, %c0_12] : memref<64x32xbf16, #tpu.memory_space<vmem>>, vector<64x32xbf16>
    %cst_13 = arith.constant dense<0.000000e+00> : vector<16x32xf32>
    %20 = tpu.matmul %18, %19, %cst_13 {dimension_numbers = #tpu.dot_dimension_numbers<[1], [0], [0], [1], [0, 0, 1, 1], [], []>} : vector<16x64xbf16>, vector<64x32xbf16>, vector<16x32xf32> -> vector<16x32xf32>
    %21 = arith.addf %17, %20 : vector<16x32xf32>
    %c0_14 = arith.constant 0 : index
    %c0_15 = arith.constant 0 : index
    %22 = vector.load %arg10[%c0_14, %c0_15] : memref<16x32xf32, #tpu.memory_space<vmem>>, vector<16x32xf32>
    tpu.vector_store %arg10[%c0_14, %c0_15], %21 {strides = array<i32>} : memref<16x32xf32, #tpu.memory_space<vmem>>, vector<16x32xf32>,
    %c0_i32_16 = arith.constant 0 : i32
    %23 = arith.cmpi eq, %arg1, %c0_i32_16 : i32
    %24 = arith.extui %23 : i1 to i32
    %c0_i32_17 = arith.constant 0 : i32
    %25 = arith.cmpi ne, %24, %c0_i32_17 : i32
    scf.if %25 {
      %c0_18 = arith.constant 0 : index
      %c0_19 = arith.constant 0 : index
      %26 = vector.load %arg10[%c0_18, %c0_19] : memref<16x32xf32, #tpu.memory_space<vmem>>, vector<16x32xf32>
      %c0_20 = arith.constant 0 : index
      %c0_21 = arith.constant 0 : index
      %27 = vector.load %arg6[%c0_20, %c0_21] : memref<1x32xf32, #tpu.memory_space<vmem>>, vector<1x32xf32>
      %28 = vector.broadcast %27 : vector<1x32xf32> to vector<16x32xf32>
      %29 = arith.addf %26, %28 : vector<16x32xf32>
      %30 = arith.extf %3 : vector<16x32xbf16> to vector<16x32xf32>
      %31 = arith.addf %29, %30 : vector<16x32xf32>
      %cst_22 = arith.constant dense<0.000000e+00> : vector<16xf32>
      %32 = vector.multi_reduction <add>, %31, %cst_22 [1] : vector<16x32xf32> to vector<16xf32>
      %33 = vector.shape_cast %32 : vector<16xf32> to vector<16x1xf32>
      %cst_23 = arith.constant 3.200000e+01 : f32
      %34 = vector.broadcast %cst_23 : f32 to vector<16x1xf32>
      %35 = arith.divf %33, %34 : vector<16x1xf32>
      %36 = vector.broadcast %35 : vector<16x1xf32> to vector<16x32xf32>
      %37 = arith.subf %31, %36 : vector<16x32xf32>
      %38 = arith.mulf %37, %37 : vector<16x32xf32>
      %cst_24 = arith.constant dense<0.000000e+00> : vector<16xf32>
      %39 = vector.multi_reduction <add>, %38, %cst_24 [1] : vector<16x32xf32> to vector<16xf32>
      %40 = vector.shape_cast %39 : vector<16xf32> to vector<16x1xf32>
      %cst_25 = arith.constant 3.200000e+01 : f32
      %41 = vector.broadcast %cst_25 : f32 to vector<16x1xf32>
      %42 = arith.divf %40, %41 : vector<16x1xf32>
      %43 = vector.broadcast %35 : vector<16x1xf32> to vector<16x32xf32>
      %44 = arith.subf %31, %43 : vector<16x32xf32>
      %cst_26 = arith.constant 9.99999974E-6 : f32
      %45 = vector.broadcast %cst_26 : f32 to vector<16x1xf32>
      %46 = arith.addf %42, %45 : vector<16x1xf32>
      %47 = math.rsqrt %46 : vector<16x1xf32>
      %48 = vector.broadcast %47 : vector<16x1xf32> to vector<16x32xf32>
      %49 = arith.mulf %44, %48 : vector<16x32xf32>
      %c0_27 = arith.constant 0 : index
      %c0_28 = arith.constant 0 : index
      %50 = vector.load %arg7[%c0_27, %c0_28] : memref<1x32xf32, #tpu.memory_space<vmem>>, vector<1x32xf32>
      %51 = vector.broadcast %50 : vector<1x32xf32> to vector<16x32xf32>
      %52 = arith.mulf %49, %51 : vector<16x32xf32>
      %c0_29 = arith.constant 0 : index
      %c0_30 = arith.constant 0 : index
      %53 = vector.load %arg8[%c0_29, %c0_30] : memref<1x32xf32, #tpu.memory_space<vmem>>, vector<1x32xf32>
      %54 = vector.broadcast %53 : vector<1x32xf32> to vector<16x32xf32>
      %55 = arith.addf %52, %54 : vector<16x32xf32>
      %56 = arith.truncf %55 : vector<16x32xf32> to vector<16x32xbf16>
      %c0_31 = arith.constant 0 : index
      %c0_32 = arith.constant 0 : index
      %57 = vector.load %arg9[%c0_31, %c0_32] : memref<16x32xbf16, #tpu.memory_space<vmem>>, vector<16x32xbf16>
      tpu.vector_store %arg9[%c0_31, %c0_32], %56 {strides = array<i32>} : memref<16x32xbf16, #tpu.memory_space<vmem>>, vector<16x32xbf16>,
    } else {
    }
    return
  }
  func.func @transform_0(%arg0: i32, %arg1: i32) -> (i32, i32) {
    %c0_i32 = arith.constant 0 : i32
    %c0_i32_0 = arith.constant 0 : i32
    return %arg0, %c0_i32 : i32, i32
  }
  func.func @transform_1(%arg0: i32, %arg1: i32) -> (i32, i32) {
    %c0_i32 = arith.constant 0 : i32
    %c0_i32_0 = arith.constant 0 : i32
    return %c0_i32, %arg1 : i32, i32
  }
  func.func @transform_2(%arg0: i32, %arg1: i32) -> (i32, i32) {
    %c0_i32 = arith.constant 0 : i32
    %c0_i32_0 = arith.constant 0 : i32
    return %c0_i32, %arg1 : i32, i32
  }
  func.func @transform_3(%arg0: i32, %arg1: i32) -> (i32, i32) {
    %c0_i32 = arith.constant 0 : i32
    %c0_i32_0 = arith.constant 0 : i32
    return %arg1, %c0_i32 : i32, i32
  }
  func.func @transform_4(%arg0: i32, %arg1: i32) -> (i32, i32) {
    %c0_i32 = arith.constant 0 : i32
    %c0_i32_0 = arith.constant 0 : i32
    %c0_i32_1 = arith.constant 0 : i32
    return %c0_i32, %c0_i32_0 : i32, i32
  }
  func.func @transform_5(%arg0: i32, %arg1: i32) -> (i32, i32) {
    %c0_i32 = arith.constant 0 : i32
    %c0_i32_0 = arith.constant 0 : i32
    %c0_i32_1 = arith.constant 0 : i32
    return %c0_i32, %c0_i32_0 : i32, i32
  }
  func.func @transform_6(%arg0: i32, %arg1: i32) -> (i32, i32) {
    %c0_i32 = arith.constant 0 : i32
    %c0_i32_0 = arith.constant 0 : i32
    %c0_i32_1 = arith.constant 0 : i32
    return %c0_i32, %c0_i32_0 : i32, i32
  }
  func.func @transform_7(%arg0: i32, %arg1: i32) -> (i32, i32) {
    %c0_i32 = arith.constant 0 : i32
    %c0_i32_0 = arith.constant 0 : i32
    return %arg0, %c0_i32 : i32, i32
  }
}

module attributes {stable_mosaic.version = 11 : i64} {
  func.func @_attn_kernel(%arg0: i32, %arg1: i32, %arg2: i32, %arg3: memref<1x1x8xf32, #tpu.memory_space<vmem>>, %arg4: memref<1x8x32xbf16, #tpu.memory_space<vmem>>, %arg5: memref<1x8x32xbf16, #tpu.memory_space<vmem>>, %arg6: memref<1x8x32xbf16, #tpu.memory_space<vmem>>, %arg7: memref<1x8x32xbf16, #tpu.memory_space<vmem>>, %arg8: memref<4x8x1xf32, #tpu.memory_space<vmem>>, %arg9: memref<4x8x1xf32, #tpu.memory_space<vmem>>, %arg10: memref<8x32xf32, #tpu.memory_space<vmem>>) attributes {dimension_semantics = [#tpu.dimension_semantics<parallel>, #tpu.dimension_semantics<parallel>, #tpu.dimension_semantics<arbitrary>], iteration_bounds = array<i64: 2, 1, 1>, scalar_prefetch = 0 : i64, scratch_operands = 3 : i64, tpu.core_type = #tpu.core_type<tc>, window_params = [{transform_indices = @transform_0, window_bounds = array<i64: 1, 1, 8>}, {transform_indices = @transform_1, window_bounds = array<i64: 1, 8, 32>}, {transform_indices = @transform_2, window_bounds = array<i64: 1, 8, 32>}, {transform_indices = @transform_3, window_bounds = array<i64: 1, 8, 32>}, {transform_indices = @transform_4, window_bounds = array<i64: 1, 8, 32>}]} {
    %c0_i32 = arith.constant 0 : i32
    %0 = arith.cmpi eq, %arg2, %c0_i32 : i32
    %1 = arith.extui %0 : i1 to i32
    %c0_i32_0 = arith.constant 0 : i32
    %2 = arith.cmpi ne, %1, %c0_i32_0 : i32
    scf.if %2 {
      %cst_91 = arith.constant -1.000000e+30 : f32
      %166 = vector.broadcast %cst_91 : f32 to vector<4x8x1xf32>
      %c0_92 = arith.constant 0 : index
      %c0_93 = arith.constant 0 : index
      %c0_94 = arith.constant 0 : index
      %167 = vector.load %arg8[%c0_92, %c0_93, %c0_94] : memref<4x8x1xf32, #tpu.memory_space<vmem>>, vector<4x8x1xf32>
      tpu.vector_store %arg8[%c0_92, %c0_93, %c0_94], %166 {strides = array<i32>} : memref<4x8x1xf32, #tpu.memory_space<vmem>>, vector<4x8x1xf32>,
      %cst_95 = arith.constant 0.000000e+00 : f32
      %168 = vector.broadcast %cst_95 : f32 to vector<4x8x1xf32>
      %c0_96 = arith.constant 0 : index
      %c0_97 = arith.constant 0 : index
      %c0_98 = arith.constant 0 : index
      %169 = vector.load %arg9[%c0_96, %c0_97, %c0_98] : memref<4x8x1xf32, #tpu.memory_space<vmem>>, vector<4x8x1xf32>
      tpu.vector_store %arg9[%c0_96, %c0_97, %c0_98], %168 {strides = array<i32>} : memref<4x8x1xf32, #tpu.memory_space<vmem>>, vector<4x8x1xf32>,
      %cst_99 = arith.constant 0.000000e+00 : f32
      %170 = vector.broadcast %cst_99 : f32 to vector<8x32xf32>
      %c0_100 = arith.constant 0 : index
      %c0_101 = arith.constant 0 : index
      %171 = vector.load %arg10[%c0_100, %c0_101] : memref<8x32xf32, #tpu.memory_space<vmem>>, vector<8x32xf32>
      tpu.vector_store %arg10[%c0_100, %c0_101], %170 {strides = array<i32>} : memref<8x32xf32, #tpu.memory_space<vmem>>, vector<8x32xf32>,
    } else {
    }
    %c0 = arith.constant 0 : index
    %c0_1 = arith.constant 0 : index
    %c0_2 = arith.constant 0 : index
    %3 = vector.load %arg4[%c0, %c0_1, %c0_2] : memref<1x8x32xbf16, #tpu.memory_space<vmem>>, vector<1x8x32xbf16>
    %4 = vector.shape_cast %3 : vector<1x8x32xbf16> to vector<8x32xbf16>
    %cst = arith.constant 3.535160e-01 : bf16
    %5 = vector.broadcast %cst : bf16 to vector<8x32xbf16>
    %6 = arith.mulf %4, %5 : vector<8x32xbf16>
    %c0_3 = arith.constant 0 : index
    %c0_4 = arith.constant 0 : index
    %c0_5 = arith.constant 0 : index
    %7 = vector.load %arg5[%c0_3, %c0_4, %c0_5] : memref<1x8x32xbf16, #tpu.memory_space<vmem>>, vector<1x8x32xbf16>
    %8 = vector.shape_cast %7 : vector<1x8x32xbf16> to vector<8x32xbf16>
    %c0_6 = arith.constant 0 : index
    %c0_7 = arith.constant 0 : index
    %c0_8 = arith.constant 0 : index
    %9 = vector.load %arg6[%c0_6, %c0_7, %c0_8] : memref<1x8x32xbf16, #tpu.memory_space<vmem>>, vector<1x8x32xbf16>
    %10 = vector.shape_cast %9 : vector<1x8x32xbf16> to vector<8x32xbf16>
    %c0_9 = arith.constant 0 : index
    %c0_10 = arith.constant 0 : index
    %c0_11 = arith.constant 0 : index
    %11 = vector.load %arg3[%c0_9, %c0_10, %c0_11] : memref<1x1x8xf32, #tpu.memory_space<vmem>>, vector<1x1x8xf32>
    %12 = vector.shape_cast %11 : vector<1x1x8xf32> to vector<1x8xf32>
    %c8_i32 = arith.constant 8 : i32
    %13 = arith.muli %arg1, %c8_i32 : i32
    %c8_i32_12 = arith.constant 8 : i32
    %14 = arith.muli %arg2, %c8_i32_12 : i32
    %15 = tpu.iota {dimensions = array<i32: 0>} : vector<8x8xi32>
    %16 = vector.broadcast %13 : i32 to vector<8x8xi32>
    %17 = arith.addi %16, %15 : vector<8x8xi32>
    %18 = tpu.iota {dimensions = array<i32: 1>} : vector<8x8xi32>
    %19 = vector.broadcast %14 : i32 to vector<8x8xi32>
    %20 = arith.addi %19, %18 : vector<8x8xi32>
    %21 = arith.cmpi sge, %17, %20 : vector<8x8xi32>
    %cst_13 = arith.constant 0.000000e+00 : f32
    %cst_14 = arith.constant -1.000000e+09 : f32
    %22 = vector.broadcast %cst_13 : f32 to vector<8x8xf32>
    %23 = vector.broadcast %cst_14 : f32 to vector<8x8xf32>
    %24 = arith.select %21, %22, %23 : vector<8x8xi1>, vector<8x8xf32>
    %25 = vector.broadcast %12 : vector<1x8xf32> to vector<8x8xf32>
    %26 = arith.addf %25, %24 : vector<8x8xf32>
    %27 = vector.extract_strided_slice %6 {offsets = [0, 0], sizes = [8, 8], strides = [1, 1]} : vector<8x32xbf16> to vector<8x8xbf16>
    %28 = vector.extract_strided_slice %8 {offsets = [0, 0], sizes = [8, 8], strides = [1, 1]} : vector<8x32xbf16> to vector<8x8xbf16>
    %cst_15 = arith.constant dense<0.000000e+00> : vector<8x8xf32>
    %29 = tpu.matmul %27, %28, %cst_15 {dimension_numbers = #tpu.dot_dimension_numbers<[1], [1], [0], [0], [0, 0, 1, 0], [], []>} : vector<8x8xbf16>, vector<8x8xbf16>, vector<8x8xf32> -> vector<8x8xf32>
    %30 = arith.addf %29, %26 : vector<8x8xf32>
    %c0_16 = arith.constant 0 : index
    %c0_17 = arith.constant 0 : index
    %c0_18 = arith.constant 0 : index
    %31 = vector.load %arg8[%c0_16, %c0_17, %c0_18] : memref<4x8x1xf32, #tpu.memory_space<vmem>>, vector<1x8x1xf32>
    %32 = vector.shape_cast %31 : vector<1x8x1xf32> to vector<8x1xf32>
    %cst_19 = arith.constant dense<0xFF800000> : vector<8xf32>
    %33 = vector.multi_reduction <maximumf>, %30, %cst_19 [1] : vector<8x8xf32> to vector<8xf32>
    %34 = vector.shape_cast %33 : vector<8xf32> to vector<8x1xf32>
    %35 = arith.maximumf %32, %34 : vector<8x1xf32>
    %36 = arith.subf %32, %35 : vector<8x1xf32>
    %37 = math.exp %36 : vector<8x1xf32>
    %38 = vector.broadcast %35 : vector<8x1xf32> to vector<8x8xf32>
    %39 = arith.subf %30, %38 : vector<8x8xf32>
    %40 = math.exp %39 : vector<8x8xf32>
    %c0_20 = arith.constant 0 : index
    %c0_21 = arith.constant 0 : index
    %c0_22 = arith.constant 0 : index
    %41 = vector.load %arg9[%c0_20, %c0_21, %c0_22] : memref<4x8x1xf32, #tpu.memory_space<vmem>>, vector<1x8x1xf32>
    %42 = vector.shape_cast %41 : vector<1x8x1xf32> to vector<8x1xf32>
    %43 = arith.mulf %37, %42 : vector<8x1xf32>
    %cst_23 = arith.constant dense<0.000000e+00> : vector<8xf32>
    %44 = vector.multi_reduction <add>, %40, %cst_23 [1] : vector<8x8xf32> to vector<8xf32>
    %45 = vector.shape_cast %44 : vector<8xf32> to vector<8x1xf32>
    %46 = arith.addf %43, %45 : vector<8x1xf32>
    %c0_24 = arith.constant 0 : index
    %c0_25 = arith.constant 0 : index
    %c0_26 = arith.constant 0 : index
    %47 = vector.load %arg9[%c0_24, %c0_25, %c0_26] : memref<4x8x1xf32, #tpu.memory_space<vmem>>, vector<1x8x1xf32>
    %48 = vector.shape_cast %47 : vector<1x8x1xf32> to vector<8x1xf32>
    %49 = vector.shape_cast %46 : vector<8x1xf32> to vector<1x8x1xf32>
    tpu.vector_store %arg9[%c0_24, %c0_25, %c0_26], %49 {strides = array<i32>} : memref<4x8x1xf32, #tpu.memory_space<vmem>>, vector<1x8x1xf32>,
    %c0_27 = arith.constant 0 : index
    %c0_28 = arith.constant 0 : index
    %c0_29 = arith.constant 0 : index
    %50 = vector.load %arg8[%c0_27, %c0_28, %c0_29] : memref<4x8x1xf32, #tpu.memory_space<vmem>>, vector<1x8x1xf32>
    %51 = vector.shape_cast %50 : vector<1x8x1xf32> to vector<8x1xf32>
    %52 = vector.shape_cast %35 : vector<8x1xf32> to vector<1x8x1xf32>
    tpu.vector_store %arg8[%c0_27, %c0_28, %c0_29], %52 {strides = array<i32>} : memref<4x8x1xf32, #tpu.memory_space<vmem>>, vector<1x8x1xf32>,
    %53 = arith.truncf %40 : vector<8x8xf32> to vector<8x8xbf16>
    %54 = vector.extract_strided_slice %10 {offsets = [0, 0], sizes = [8, 8], strides = [1, 1]} : vector<8x32xbf16> to vector<8x8xbf16>
    %cst_30 = arith.constant dense<0.000000e+00> : vector<8x8xf32>
    %55 = tpu.matmul %53, %54, %cst_30 {dimension_numbers = #tpu.dot_dimension_numbers<[1], [0], [0], [1], [0, 0, 1, 1], [], []>} : vector<8x8xbf16>, vector<8x8xbf16>, vector<8x8xf32> -> vector<8x8xf32>
    %c0_31 = arith.constant 0 : index
    %c0_32 = arith.constant 0 : index
    %56 = vector.load %arg10[%c0_31, %c0_32] : memref<8x32xf32, #tpu.memory_space<vmem>>, vector<8x8xf32>
    %57 = vector.broadcast %37 : vector<8x1xf32> to vector<8x8xf32>
    %58 = arith.mulf %57, %56 : vector<8x8xf32>
    %59 = arith.addf %58, %55 : vector<8x8xf32>
    %c0_33 = arith.constant 0 : index
    %c0_34 = arith.constant 0 : index
    %60 = vector.load %arg10[%c0_33, %c0_34] : memref<8x32xf32, #tpu.memory_space<vmem>>, vector<8x8xf32>
    tpu.vector_store %arg10[%c0_33, %c0_34], %59 {strides = array<i32>} : memref<8x32xf32, #tpu.memory_space<vmem>>, vector<8x8xf32>,
    %61 = vector.extract_strided_slice %6 {offsets = [0, 8], sizes = [8, 8], strides = [1, 1]} : vector<8x32xbf16> to vector<8x8xbf16>
    %62 = vector.extract_strided_slice %8 {offsets = [0, 8], sizes = [8, 8], strides = [1, 1]} : vector<8x32xbf16> to vector<8x8xbf16>
    %cst_35 = arith.constant dense<0.000000e+00> : vector<8x8xf32>
    %63 = tpu.matmul %61, %62, %cst_35 {dimension_numbers = #tpu.dot_dimension_numbers<[1], [1], [0], [0], [0, 0, 1, 0], [], []>} : vector<8x8xbf16>, vector<8x8xbf16>, vector<8x8xf32> -> vector<8x8xf32>
    %64 = arith.addf %63, %26 : vector<8x8xf32>
    %c1 = arith.constant 1 : index
    %c0_36 = arith.constant 0 : index
    %c0_37 = arith.constant 0 : index
    %65 = vector.load %arg8[%c1, %c0_36, %c0_37] : memref<4x8x1xf32, #tpu.memory_space<vmem>>, vector<1x8x1xf32>
    %66 = vector.shape_cast %65 : vector<1x8x1xf32> to vector<8x1xf32>
    %cst_38 = arith.constant dense<0xFF800000> : vector<8xf32>
    %67 = vector.multi_reduction <maximumf>, %64, %cst_38 [1] : vector<8x8xf32> to vector<8xf32>
    %68 = vector.shape_cast %67 : vector<8xf32> to vector<8x1xf32>
    %69 = arith.maximumf %66, %68 : vector<8x1xf32>
    %70 = arith.subf %66, %69 : vector<8x1xf32>
    %71 = math.exp %70 : vector<8x1xf32>
    %72 = vector.broadcast %69 : vector<8x1xf32> to vector<8x8xf32>
    %73 = arith.subf %64, %72 : vector<8x8xf32>
    %74 = math.exp %73 : vector<8x8xf32>
    %c1_39 = arith.constant 1 : index
    %c0_40 = arith.constant 0 : index
    %c0_41 = arith.constant 0 : index
    %75 = vector.load %arg9[%c1_39, %c0_40, %c0_41] : memref<4x8x1xf32, #tpu.memory_space<vmem>>, vector<1x8x1xf32>
    %76 = vector.shape_cast %75 : vector<1x8x1xf32> to vector<8x1xf32>
    %77 = arith.mulf %71, %76 : vector<8x1xf32>
    %cst_42 = arith.constant dense<0.000000e+00> : vector<8xf32>
    %78 = vector.multi_reduction <add>, %74, %cst_42 [1] : vector<8x8xf32> to vector<8xf32>
    %79 = vector.shape_cast %78 : vector<8xf32> to vector<8x1xf32>
    %80 = arith.addf %77, %79 : vector<8x1xf32>
    %c1_43 = arith.constant 1 : index
    %c0_44 = arith.constant 0 : index
    %c0_45 = arith.constant 0 : index
    %81 = vector.load %arg9[%c1_43, %c0_44, %c0_45] : memref<4x8x1xf32, #tpu.memory_space<vmem>>, vector<1x8x1xf32>
    %82 = vector.shape_cast %81 : vector<1x8x1xf32> to vector<8x1xf32>
    %83 = vector.shape_cast %80 : vector<8x1xf32> to vector<1x8x1xf32>
    tpu.vector_store %arg9[%c1_43, %c0_44, %c0_45], %83 {strides = array<i32>} : memref<4x8x1xf32, #tpu.memory_space<vmem>>, vector<1x8x1xf32>,
    %c1_46 = arith.constant 1 : index
    %c0_47 = arith.constant 0 : index
    %c0_48 = arith.constant 0 : index
    %84 = vector.load %arg8[%c1_46, %c0_47, %c0_48] : memref<4x8x1xf32, #tpu.memory_space<vmem>>, vector<1x8x1xf32>
    %85 = vector.shape_cast %84 : vector<1x8x1xf32> to vector<8x1xf32>
    %86 = vector.shape_cast %69 : vector<8x1xf32> to vector<1x8x1xf32>
    tpu.vector_store %arg8[%c1_46, %c0_47, %c0_48], %86 {strides = array<i32>} : memref<4x8x1xf32, #tpu.memory_space<vmem>>, vector<1x8x1xf32>,
    %87 = arith.truncf %74 : vector<8x8xf32> to vector<8x8xbf16>
    %88 = vector.extract_strided_slice %10 {offsets = [0, 8], sizes = [8, 8], strides = [1, 1]} : vector<8x32xbf16> to vector<8x8xbf16>
    %cst_49 = arith.constant dense<0.000000e+00> : vector<8x8xf32>
    %89 = tpu.matmul %87, %88, %cst_49 {dimension_numbers = #tpu.dot_dimension_numbers<[1], [0], [0], [1], [0, 0, 1, 1], [], []>} : vector<8x8xbf16>, vector<8x8xbf16>, vector<8x8xf32> -> vector<8x8xf32>
    %c0_50 = arith.constant 0 : index
    %c8 = arith.constant 8 : index
    %90 = vector.load %arg10[%c0_50, %c8] : memref<8x32xf32, #tpu.memory_space<vmem>>, vector<8x8xf32>
    %91 = vector.broadcast %71 : vector<8x1xf32> to vector<8x8xf32>
    %92 = arith.mulf %91, %90 : vector<8x8xf32>
    %93 = arith.addf %92, %89 : vector<8x8xf32>
    %c0_51 = arith.constant 0 : index
    %c8_52 = arith.constant 8 : index
    %94 = vector.load %arg10[%c0_51, %c8_52] : memref<8x32xf32, #tpu.memory_space<vmem>>, vector<8x8xf32>
    tpu.vector_store %arg10[%c0_51, %c8_52], %93 {strides = array<i32>} : memref<8x32xf32, #tpu.memory_space<vmem>>, vector<8x8xf32>,
    %95 = vector.extract_strided_slice %6 {offsets = [0, 16], sizes = [8, 8], strides = [1, 1]} : vector<8x32xbf16> to vector<8x8xbf16>
    %96 = vector.extract_strided_slice %8 {offsets = [0, 16], sizes = [8, 8], strides = [1, 1]} : vector<8x32xbf16> to vector<8x8xbf16>
    %cst_53 = arith.constant dense<0.000000e+00> : vector<8x8xf32>
    %97 = tpu.matmul %95, %96, %cst_53 {dimension_numbers = #tpu.dot_dimension_numbers<[1], [1], [0], [0], [0, 0, 1, 0], [], []>} : vector<8x8xbf16>, vector<8x8xbf16>, vector<8x8xf32> -> vector<8x8xf32>
    %98 = arith.addf %97, %26 : vector<8x8xf32>
    %c2 = arith.constant 2 : index
    %c0_54 = arith.constant 0 : index
    %c0_55 = arith.constant 0 : index
    %99 = vector.load %arg8[%c2, %c0_54, %c0_55] : memref<4x8x1xf32, #tpu.memory_space<vmem>>, vector<1x8x1xf32>
    %100 = vector.shape_cast %99 : vector<1x8x1xf32> to vector<8x1xf32>
    %cst_56 = arith.constant dense<0xFF800000> : vector<8xf32>
    %101 = vector.multi_reduction <maximumf>, %98, %cst_56 [1] : vector<8x8xf32> to vector<8xf32>
    %102 = vector.shape_cast %101 : vector<8xf32> to vector<8x1xf32>
    %103 = arith.maximumf %100, %102 : vector<8x1xf32>
    %104 = arith.subf %100, %103 : vector<8x1xf32>
    %105 = math.exp %104 : vector<8x1xf32>
    %106 = vector.broadcast %103 : vector<8x1xf32> to vector<8x8xf32>
    %107 = arith.subf %98, %106 : vector<8x8xf32>
    %108 = math.exp %107 : vector<8x8xf32>
    %c2_57 = arith.constant 2 : index
    %c0_58 = arith.constant 0 : index
    %c0_59 = arith.constant 0 : index
    %109 = vector.load %arg9[%c2_57, %c0_58, %c0_59] : memref<4x8x1xf32, #tpu.memory_space<vmem>>, vector<1x8x1xf32>
    %110 = vector.shape_cast %109 : vector<1x8x1xf32> to vector<8x1xf32>
    %111 = arith.mulf %105, %110 : vector<8x1xf32>
    %cst_60 = arith.constant dense<0.000000e+00> : vector<8xf32>
    %112 = vector.multi_reduction <add>, %108, %cst_60 [1] : vector<8x8xf32> to vector<8xf32>
    %113 = vector.shape_cast %112 : vector<8xf32> to vector<8x1xf32>
    %114 = arith.addf %111, %113 : vector<8x1xf32>
    %c2_61 = arith.constant 2 : index
    %c0_62 = arith.constant 0 : index
    %c0_63 = arith.constant 0 : index
    %115 = vector.load %arg9[%c2_61, %c0_62, %c0_63] : memref<4x8x1xf32, #tpu.memory_space<vmem>>, vector<1x8x1xf32>
    %116 = vector.shape_cast %115 : vector<1x8x1xf32> to vector<8x1xf32>
    %117 = vector.shape_cast %114 : vector<8x1xf32> to vector<1x8x1xf32>
    tpu.vector_store %arg9[%c2_61, %c0_62, %c0_63], %117 {strides = array<i32>} : memref<4x8x1xf32, #tpu.memory_space<vmem>>, vector<1x8x1xf32>,
    %c2_64 = arith.constant 2 : index
    %c0_65 = arith.constant 0 : index
    %c0_66 = arith.constant 0 : index
    %118 = vector.load %arg8[%c2_64, %c0_65, %c0_66] : memref<4x8x1xf32, #tpu.memory_space<vmem>>, vector<1x8x1xf32>
    %119 = vector.shape_cast %118 : vector<1x8x1xf32> to vector<8x1xf32>
    %120 = vector.shape_cast %103 : vector<8x1xf32> to vector<1x8x1xf32>
    tpu.vector_store %arg8[%c2_64, %c0_65, %c0_66], %120 {strides = array<i32>} : memref<4x8x1xf32, #tpu.memory_space<vmem>>, vector<1x8x1xf32>,
    %121 = arith.truncf %108 : vector<8x8xf32> to vector<8x8xbf16>
    %122 = vector.extract_strided_slice %10 {offsets = [0, 16], sizes = [8, 8], strides = [1, 1]} : vector<8x32xbf16> to vector<8x8xbf16>
    %cst_67 = arith.constant dense<0.000000e+00> : vector<8x8xf32>
    %123 = tpu.matmul %121, %122, %cst_67 {dimension_numbers = #tpu.dot_dimension_numbers<[1], [0], [0], [1], [0, 0, 1, 1], [], []>} : vector<8x8xbf16>, vector<8x8xbf16>, vector<8x8xf32> -> vector<8x8xf32>
    %c0_68 = arith.constant 0 : index
    %c16 = arith.constant 16 : index
    %124 = vector.load %arg10[%c0_68, %c16] : memref<8x32xf32, #tpu.memory_space<vmem>>, vector<8x8xf32>
    %125 = vector.broadcast %105 : vector<8x1xf32> to vector<8x8xf32>
    %126 = arith.mulf %125, %124 : vector<8x8xf32>
    %127 = arith.addf %126, %123 : vector<8x8xf32>
    %c0_69 = arith.constant 0 : index
    %c16_70 = arith.constant 16 : index
    %128 = vector.load %arg10[%c0_69, %c16_70] : memref<8x32xf32, #tpu.memory_space<vmem>>, vector<8x8xf32>
    tpu.vector_store %arg10[%c0_69, %c16_70], %127 {strides = array<i32>} : memref<8x32xf32, #tpu.memory_space<vmem>>, vector<8x8xf32>,
    %129 = vector.extract_strided_slice %6 {offsets = [0, 24], sizes = [8, 8], strides = [1, 1]} : vector<8x32xbf16> to vector<8x8xbf16>
    %130 = vector.extract_strided_slice %8 {offsets = [0, 24], sizes = [8, 8], strides = [1, 1]} : vector<8x32xbf16> to vector<8x8xbf16>
    %cst_71 = arith.constant dense<0.000000e+00> : vector<8x8xf32>
    %131 = tpu.matmul %129, %130, %cst_71 {dimension_numbers = #tpu.dot_dimension_numbers<[1], [1], [0], [0], [0, 0, 1, 0], [], []>} : vector<8x8xbf16>, vector<8x8xbf16>, vector<8x8xf32> -> vector<8x8xf32>
    %132 = arith.addf %131, %26 : vector<8x8xf32>
    %c3 = arith.constant 3 : index
    %c0_72 = arith.constant 0 : index
    %c0_73 = arith.constant 0 : index
    %133 = vector.load %arg8[%c3, %c0_72, %c0_73] : memref<4x8x1xf32, #tpu.memory_space<vmem>>, vector<1x8x1xf32>
    %134 = vector.shape_cast %133 : vector<1x8x1xf32> to vector<8x1xf32>
    %cst_74 = arith.constant dense<0xFF800000> : vector<8xf32>
    %135 = vector.multi_reduction <maximumf>, %132, %cst_74 [1] : vector<8x8xf32> to vector<8xf32>
    %136 = vector.shape_cast %135 : vector<8xf32> to vector<8x1xf32>
    %137 = arith.maximumf %134, %136 : vector<8x1xf32>
    %138 = arith.subf %134, %137 : vector<8x1xf32>
    %139 = math.exp %138 : vector<8x1xf32>
    %140 = vector.broadcast %137 : vector<8x1xf32> to vector<8x8xf32>
    %141 = arith.subf %132, %140 : vector<8x8xf32>
    %142 = math.exp %141 : vector<8x8xf32>
    %c3_75 = arith.constant 3 : index
    %c0_76 = arith.constant 0 : index
    %c0_77 = arith.constant 0 : index
    %143 = vector.load %arg9[%c3_75, %c0_76, %c0_77] : memref<4x8x1xf32, #tpu.memory_space<vmem>>, vector<1x8x1xf32>
    %144 = vector.shape_cast %143 : vector<1x8x1xf32> to vector<8x1xf32>
    %145 = arith.mulf %139, %144 : vector<8x1xf32>
    %cst_78 = arith.constant dense<0.000000e+00> : vector<8xf32>
    %146 = vector.multi_reduction <add>, %142, %cst_78 [1] : vector<8x8xf32> to vector<8xf32>
    %147 = vector.shape_cast %146 : vector<8xf32> to vector<8x1xf32>
    %148 = arith.addf %145, %147 : vector<8x1xf32>
    %c3_79 = arith.constant 3 : index
    %c0_80 = arith.constant 0 : index
    %c0_81 = arith.constant 0 : index
    %149 = vector.load %arg9[%c3_79, %c0_80, %c0_81] : memref<4x8x1xf32, #tpu.memory_space<vmem>>, vector<1x8x1xf32>
    %150 = vector.shape_cast %149 : vector<1x8x1xf32> to vector<8x1xf32>
    %151 = vector.shape_cast %148 : vector<8x1xf32> to vector<1x8x1xf32>
    tpu.vector_store %arg9[%c3_79, %c0_80, %c0_81], %151 {strides = array<i32>} : memref<4x8x1xf32, #tpu.memory_space<vmem>>, vector<1x8x1xf32>,
    %c3_82 = arith.constant 3 : index
    %c0_83 = arith.constant 0 : index
    %c0_84 = arith.constant 0 : index
    %152 = vector.load %arg8[%c3_82, %c0_83, %c0_84] : memref<4x8x1xf32, #tpu.memory_space<vmem>>, vector<1x8x1xf32>
    %153 = vector.shape_cast %152 : vector<1x8x1xf32> to vector<8x1xf32>
    %154 = vector.shape_cast %137 : vector<8x1xf32> to vector<1x8x1xf32>
    tpu.vector_store %arg8[%c3_82, %c0_83, %c0_84], %154 {strides = array<i32>} : memref<4x8x1xf32, #tpu.memory_space<vmem>>, vector<1x8x1xf32>,
    %155 = arith.truncf %142 : vector<8x8xf32> to vector<8x8xbf16>
    %156 = vector.extract_strided_slice %10 {offsets = [0, 24], sizes = [8, 8], strides = [1, 1]} : vector<8x32xbf16> to vector<8x8xbf16>
    %cst_85 = arith.constant dense<0.000000e+00> : vector<8x8xf32>
    %157 = tpu.matmul %155, %156, %cst_85 {dimension_numbers = #tpu.dot_dimension_numbers<[1], [0], [0], [1], [0, 0, 1, 1], [], []>} : vector<8x8xbf16>, vector<8x8xbf16>, vector<8x8xf32> -> vector<8x8xf32>
    %c0_86 = arith.constant 0 : index
    %c24 = arith.constant 24 : index
    %158 = vector.load %arg10[%c0_86, %c24] : memref<8x32xf32, #tpu.memory_space<vmem>>, vector<8x8xf32>
    %159 = vector.broadcast %139 : vector<8x1xf32> to vector<8x8xf32>
    %160 = arith.mulf %159, %158 : vector<8x8xf32>
    %161 = arith.addf %160, %157 : vector<8x8xf32>
    %c0_87 = arith.constant 0 : index
    %c24_88 = arith.constant 24 : index
    %162 = vector.load %arg10[%c0_87, %c24_88] : memref<8x32xf32, #tpu.memory_space<vmem>>, vector<8x8xf32>
    tpu.vector_store %arg10[%c0_87, %c24_88], %161 {strides = array<i32>} : memref<8x32xf32, #tpu.memory_space<vmem>>, vector<8x8xf32>,
    %c0_i32_89 = arith.constant 0 : i32
    %163 = arith.cmpi eq, %arg2, %c0_i32_89 : i32
    %164 = arith.extui %163 : i1 to i32
    %c0_i32_90 = arith.constant 0 : i32
    %165 = arith.cmpi ne, %164, %c0_i32_90 : i32
    scf.if %165 {
      %c0_91 = arith.constant 0 : index
      %c0_92 = arith.constant 0 : index
      %166 = vector.load %arg10[%c0_91, %c0_92] : memref<8x32xf32, #tpu.memory_space<vmem>>, vector<8x8xf32>
      %c0_93 = arith.constant 0 : index
      %c0_94 = arith.constant 0 : index
      %c0_95 = arith.constant 0 : index
      %167 = vector.load %arg9[%c0_93, %c0_94, %c0_95] : memref<4x8x1xf32, #tpu.memory_space<vmem>>, vector<1x8x1xf32>
      %168 = vector.shape_cast %167 : vector<1x8x1xf32> to vector<8x1xf32>
      %169 = vector.broadcast %168 : vector<8x1xf32> to vector<8x8xf32>
      %170 = arith.divf %166, %169 : vector<8x8xf32>
      %c0_96 = arith.constant 0 : index
      %c0_97 = arith.constant 0 : index
      %171 = vector.load %arg10[%c0_96, %c0_97] : memref<8x32xf32, #tpu.memory_space<vmem>>, vector<8x8xf32>
      tpu.vector_store %arg10[%c0_96, %c0_97], %170 {strides = array<i32>} : memref<8x32xf32, #tpu.memory_space<vmem>>, vector<8x8xf32>,
      %c0_98 = arith.constant 0 : index
      %c8_99 = arith.constant 8 : index
      %172 = vector.load %arg10[%c0_98, %c8_99] : memref<8x32xf32, #tpu.memory_space<vmem>>, vector<8x8xf32>
      %c1_100 = arith.constant 1 : index
      %c0_101 = arith.constant 0 : index
      %c0_102 = arith.constant 0 : index
      %173 = vector.load %arg9[%c1_100, %c0_101, %c0_102] : memref<4x8x1xf32, #tpu.memory_space<vmem>>, vector<1x8x1xf32>
      %174 = vector.shape_cast %173 : vector<1x8x1xf32> to vector<8x1xf32>
      %175 = vector.broadcast %174 : vector<8x1xf32> to vector<8x8xf32>
      %176 = arith.divf %172, %175 : vector<8x8xf32>
      %c0_103 = arith.constant 0 : index
      %c8_104 = arith.constant 8 : index
      %177 = vector.load %arg10[%c0_103, %c8_104] : memref<8x32xf32, #tpu.memory_space<vmem>>, vector<8x8xf32>
      tpu.vector_store %arg10[%c0_103, %c8_104], %176 {strides = array<i32>} : memref<8x32xf32, #tpu.memory_space<vmem>>, vector<8x8xf32>,
      %c0_105 = arith.constant 0 : index
      %c16_106 = arith.constant 16 : index
      %178 = vector.load %arg10[%c0_105, %c16_106] : memref<8x32xf32, #tpu.memory_space<vmem>>, vector<8x8xf32>
      %c2_107 = arith.constant 2 : index
      %c0_108 = arith.constant 0 : index
      %c0_109 = arith.constant 0 : index
      %179 = vector.load %arg9[%c2_107, %c0_108, %c0_109] : memref<4x8x1xf32, #tpu.memory_space<vmem>>, vector<1x8x1xf32>
      %180 = vector.shape_cast %179 : vector<1x8x1xf32> to vector<8x1xf32>
      %181 = vector.broadcast %180 : vector<8x1xf32> to vector<8x8xf32>
      %182 = arith.divf %178, %181 : vector<8x8xf32>
      %c0_110 = arith.constant 0 : index
      %c16_111 = arith.constant 16 : index
      %183 = vector.load %arg10[%c0_110, %c16_111] : memref<8x32xf32, #tpu.memory_space<vmem>>, vector<8x8xf32>
      tpu.vector_store %arg10[%c0_110, %c16_111], %182 {strides = array<i32>} : memref<8x32xf32, #tpu.memory_space<vmem>>, vector<8x8xf32>,
      %c0_112 = arith.constant 0 : index
      %c24_113 = arith.constant 24 : index
      %184 = vector.load %arg10[%c0_112, %c24_113] : memref<8x32xf32, #tpu.memory_space<vmem>>, vector<8x8xf32>
      %c3_114 = arith.constant 3 : index
      %c0_115 = arith.constant 0 : index
      %c0_116 = arith.constant 0 : index
      %185 = vector.load %arg9[%c3_114, %c0_115, %c0_116] : memref<4x8x1xf32, #tpu.memory_space<vmem>>, vector<1x8x1xf32>
      %186 = vector.shape_cast %185 : vector<1x8x1xf32> to vector<8x1xf32>
      %187 = vector.broadcast %186 : vector<8x1xf32> to vector<8x8xf32>
      %188 = arith.divf %184, %187 : vector<8x8xf32>
      %c0_117 = arith.constant 0 : index
      %c24_118 = arith.constant 24 : index
      %189 = vector.load %arg10[%c0_117, %c24_118] : memref<8x32xf32, #tpu.memory_space<vmem>>, vector<8x8xf32>
      tpu.vector_store %arg10[%c0_117, %c24_118], %188 {strides = array<i32>} : memref<8x32xf32, #tpu.memory_space<vmem>>, vector<8x8xf32>,
      %c0_119 = arith.constant 0 : index
      %c0_120 = arith.constant 0 : index
      %190 = vector.load %arg10[%c0_119, %c0_120] : memref<8x32xf32, #tpu.memory_space<vmem>>, vector<8x32xf32>
      %191 = arith.truncf %190 : vector<8x32xf32> to vector<8x32xbf16>
      %c0_121 = arith.constant 0 : index
      %c0_122 = arith.constant 0 : index
      %c0_123 = arith.constant 0 : index
      %192 = vector.load %arg7[%c0_121, %c0_122, %c0_123] : memref<1x8x32xbf16, #tpu.memory_space<vmem>>, vector<1x8x32xbf16>
      %193 = vector.shape_cast %192 : vector<1x8x32xbf16> to vector<8x32xbf16>
      %194 = vector.shape_cast %191 : vector<8x32xbf16> to vector<1x8x32xbf16>
      tpu.vector_store %arg7[%c0_121, %c0_122, %c0_123], %194 {strides = array<i32>} : memref<1x8x32xbf16, #tpu.memory_space<vmem>>, vector<1x8x32xbf16>,
    } else {
    }
    return
  }
  func.func @transform_0(%arg0: i32, %arg1: i32, %arg2: i32) -> (i32, i32, i32) {
    %c0_i32 = arith.constant 0 : i32
    %c0_i32_0 = arith.constant 0 : i32
    return %arg0, %c0_i32, %arg2 : i32, i32, i32
  }
  func.func @transform_1(%arg0: i32, %arg1: i32, %arg2: i32) -> (i32, i32, i32) {
    %c0_i32 = arith.constant 0 : i32
    %c0_i32_0 = arith.constant 0 : i32
    return %arg0, %arg1, %c0_i32 : i32, i32, i32
  }
  func.func @transform_2(%arg0: i32, %arg1: i32, %arg2: i32) -> (i32, i32, i32) {
    %c0_i32 = arith.constant 0 : i32
    %c0_i32_0 = arith.constant 0 : i32
    return %arg0, %arg2, %c0_i32 : i32, i32, i32
  }
  func.func @transform_3(%arg0: i32, %arg1: i32, %arg2: i32) -> (i32, i32, i32) {
    %c0_i32 = arith.constant 0 : i32
    %c0_i32_0 = arith.constant 0 : i32
    return %arg0, %arg2, %c0_i32 : i32, i32, i32
  }
  func.func @transform_4(%arg0: i32, %arg1: i32, %arg2: i32) -> (i32, i32, i32) {
    %c0_i32 = arith.constant 0 : i32
    %c0_i32_0 = arith.constant 0 : i32
    return %arg0, %arg1, %c0_i32 : i32, i32, i32
  }
}

module attributes {stable_mosaic.version = 11 : i64} {
  func.func @_attn_kernel(%arg0: i32, %arg1: i32, %arg2: i32, %arg3: memref<1x8x32xbf16, #tpu.memory_space<vmem>>, %arg4: memref<1x8x32xbf16, #tpu.memory_space<vmem>>, %arg5: memref<1x8x32xbf16, #tpu.memory_space<vmem>>, %arg6: memref<1x8x32xbf16, #tpu.memory_space<vmem>>, %arg7: memref<4x8x1xf32, #tpu.memory_space<vmem>>, %arg8: memref<4x8x1xf32, #tpu.memory_space<vmem>>, %arg9: memref<8x32xf32, #tpu.memory_space<vmem>>) attributes {dimension_semantics = [#tpu.dimension_semantics<parallel>, #tpu.dimension_semantics<parallel>, #tpu.dimension_semantics<arbitrary>], iteration_bounds = array<i64: 2, 1, 1>, scalar_prefetch = 0 : i64, scratch_operands = 3 : i64, tpu.core_type = #tpu.core_type<tc>, window_params = [{transform_indices = @transform_0, window_bounds = array<i64: 1, 8, 32>}, {transform_indices = @transform_1, window_bounds = array<i64: 1, 8, 32>}, {transform_indices = @transform_2, window_bounds = array<i64: 1, 8, 32>}, {transform_indices = @transform_3, window_bounds = array<i64: 1, 8, 32>}]} {
    %c0_i32 = arith.constant 0 : i32
    %0 = arith.cmpi eq, %arg2, %c0_i32 : i32
    %1 = arith.extui %0 : i1 to i32
    %c0_i32_0 = arith.constant 0 : i32
    %2 = arith.cmpi ne, %1, %c0_i32_0 : i32
    scf.if %2 {
      %cst_85 = arith.constant -1.000000e+30 : f32
      %146 = vector.broadcast %cst_85 : f32 to vector<4x8x1xf32>
      %c0_86 = arith.constant 0 : index
      %c0_87 = arith.constant 0 : index
      %c0_88 = arith.constant 0 : index
      %147 = vector.load %arg7[%c0_86, %c0_87, %c0_88] : memref<4x8x1xf32, #tpu.memory_space<vmem>>, vector<4x8x1xf32>
      tpu.vector_store %arg7[%c0_86, %c0_87, %c0_88], %146 {strides = array<i32>} : memref<4x8x1xf32, #tpu.memory_space<vmem>>, vector<4x8x1xf32>,
      %cst_89 = arith.constant 0.000000e+00 : f32
      %148 = vector.broadcast %cst_89 : f32 to vector<4x8x1xf32>
      %c0_90 = arith.constant 0 : index
      %c0_91 = arith.constant 0 : index
      %c0_92 = arith.constant 0 : index
      %149 = vector.load %arg8[%c0_90, %c0_91, %c0_92] : memref<4x8x1xf32, #tpu.memory_space<vmem>>, vector<4x8x1xf32>
      tpu.vector_store %arg8[%c0_90, %c0_91, %c0_92], %148 {strides = array<i32>} : memref<4x8x1xf32, #tpu.memory_space<vmem>>, vector<4x8x1xf32>,
      %cst_93 = arith.constant 0.000000e+00 : f32
      %150 = vector.broadcast %cst_93 : f32 to vector<8x32xf32>
      %c0_94 = arith.constant 0 : index
      %c0_95 = arith.constant 0 : index
      %151 = vector.load %arg9[%c0_94, %c0_95] : memref<8x32xf32, #tpu.memory_space<vmem>>, vector<8x32xf32>
      tpu.vector_store %arg9[%c0_94, %c0_95], %150 {strides = array<i32>} : memref<8x32xf32, #tpu.memory_space<vmem>>, vector<8x32xf32>,
    } else {
    }
    %c0 = arith.constant 0 : index
    %c0_1 = arith.constant 0 : index
    %c0_2 = arith.constant 0 : index
    %3 = vector.load %arg3[%c0, %c0_1, %c0_2] : memref<1x8x32xbf16, #tpu.memory_space<vmem>>, vector<1x8x32xbf16>
    %4 = vector.shape_cast %3 : vector<1x8x32xbf16> to vector<8x32xbf16>
    %cst = arith.constant 3.535160e-01 : bf16
    %5 = vector.broadcast %cst : bf16 to vector<8x32xbf16>
    %6 = arith.mulf %4, %5 : vector<8x32xbf16>
    %c0_3 = arith.constant 0 : index
    %c0_4 = arith.constant 0 : index
    %c0_5 = arith.constant 0 : index
    %7 = vector.load %arg4[%c0_3, %c0_4, %c0_5] : memref<1x8x32xbf16, #tpu.memory_space<vmem>>, vector<1x8x32xbf16>
    %8 = vector.shape_cast %7 : vector<1x8x32xbf16> to vector<8x32xbf16>
    %c0_6 = arith.constant 0 : index
    %c0_7 = arith.constant 0 : index
    %c0_8 = arith.constant 0 : index
    %9 = vector.load %arg5[%c0_6, %c0_7, %c0_8] : memref<1x8x32xbf16, #tpu.memory_space<vmem>>, vector<1x8x32xbf16>
    %10 = vector.shape_cast %9 : vector<1x8x32xbf16> to vector<8x32xbf16>
    %11 = vector.extract_strided_slice %6 {offsets = [0, 0], sizes = [8, 8], strides = [1, 1]} : vector<8x32xbf16> to vector<8x8xbf16>
    %12 = vector.extract_strided_slice %8 {offsets = [0, 0], sizes = [8, 8], strides = [1, 1]} : vector<8x32xbf16> to vector<8x8xbf16>
    %cst_9 = arith.constant dense<0.000000e+00> : vector<8x8xf32>
    %13 = tpu.matmul %11, %12, %cst_9 {dimension_numbers = #tpu.dot_dimension_numbers<[1], [1], [0], [0], [0, 0, 1, 0], [], []>} : vector<8x8xbf16>, vector<8x8xbf16>, vector<8x8xf32> -> vector<8x8xf32>
    %c0_10 = arith.constant 0 : index
    %c0_11 = arith.constant 0 : index
    %c0_12 = arith.constant 0 : index
    %14 = vector.load %arg7[%c0_10, %c0_11, %c0_12] : memref<4x8x1xf32, #tpu.memory_space<vmem>>, vector<1x8x1xf32>
    %15 = vector.shape_cast %14 : vector<1x8x1xf32> to vector<8x1xf32>
    %cst_13 = arith.constant dense<0xFF800000> : vector<8xf32>
    %16 = vector.multi_reduction <maximumf>, %13, %cst_13 [1] : vector<8x8xf32> to vector<8xf32>
    %17 = vector.shape_cast %16 : vector<8xf32> to vector<8x1xf32>
    %18 = arith.maximumf %15, %17 : vector<8x1xf32>
    %19 = arith.subf %15, %18 : vector<8x1xf32>
    %20 = math.exp %19 : vector<8x1xf32>
    %21 = vector.broadcast %18 : vector<8x1xf32> to vector<8x8xf32>
    %22 = arith.subf %13, %21 : vector<8x8xf32>
    %23 = math.exp %22 : vector<8x8xf32>
    %c0_14 = arith.constant 0 : index
    %c0_15 = arith.constant 0 : index
    %c0_16 = arith.constant 0 : index
    %24 = vector.load %arg8[%c0_14, %c0_15, %c0_16] : memref<4x8x1xf32, #tpu.memory_space<vmem>>, vector<1x8x1xf32>
    %25 = vector.shape_cast %24 : vector<1x8x1xf32> to vector<8x1xf32>
    %26 = arith.mulf %20, %25 : vector<8x1xf32>
    %cst_17 = arith.constant dense<0.000000e+00> : vector<8xf32>
    %27 = vector.multi_reduction <add>, %23, %cst_17 [1] : vector<8x8xf32> to vector<8xf32>
    %28 = vector.shape_cast %27 : vector<8xf32> to vector<8x1xf32>
    %29 = arith.addf %26, %28 : vector<8x1xf32>
    %c0_18 = arith.constant 0 : index
    %c0_19 = arith.constant 0 : index
    %c0_20 = arith.constant 0 : index
    %30 = vector.load %arg8[%c0_18, %c0_19, %c0_20] : memref<4x8x1xf32, #tpu.memory_space<vmem>>, vector<1x8x1xf32>
    %31 = vector.shape_cast %30 : vector<1x8x1xf32> to vector<8x1xf32>
    %32 = vector.shape_cast %29 : vector<8x1xf32> to vector<1x8x1xf32>
    tpu.vector_store %arg8[%c0_18, %c0_19, %c0_20], %32 {strides = array<i32>} : memref<4x8x1xf32, #tpu.memory_space<vmem>>, vector<1x8x1xf32>,
    %c0_21 = arith.constant 0 : index
    %c0_22 = arith.constant 0 : index
    %c0_23 = arith.constant 0 : index
    %33 = vector.load %arg7[%c0_21, %c0_22, %c0_23] : memref<4x8x1xf32, #tpu.memory_space<vmem>>, vector<1x8x1xf32>
    %34 = vector.shape_cast %33 : vector<1x8x1xf32> to vector<8x1xf32>
    %35 = vector.shape_cast %18 : vector<8x1xf32> to vector<1x8x1xf32>
    tpu.vector_store %arg7[%c0_21, %c0_22, %c0_23], %35 {strides = array<i32>} : memref<4x8x1xf32, #tpu.memory_space<vmem>>, vector<1x8x1xf32>,
    %36 = arith.truncf %23 : vector<8x8xf32> to vector<8x8xbf16>
    %37 = vector.extract_strided_slice %10 {offsets = [0, 0], sizes = [8, 8], strides = [1, 1]} : vector<8x32xbf16> to vector<8x8xbf16>
    %cst_24 = arith.constant dense<0.000000e+00> : vector<8x8xf32>
    %38 = tpu.matmul %36, %37, %cst_24 {dimension_numbers = #tpu.dot_dimension_numbers<[1], [0], [0], [1], [0, 0, 1, 1], [], []>} : vector<8x8xbf16>, vector<8x8xbf16>, vector<8x8xf32> -> vector<8x8xf32>
    %c0_25 = arith.constant 0 : index
    %c0_26 = arith.constant 0 : index
    %39 = vector.load %arg9[%c0_25, %c0_26] : memref<8x32xf32, #tpu.memory_space<vmem>>, vector<8x8xf32>
    %40 = vector.broadcast %20 : vector<8x1xf32> to vector<8x8xf32>
    %41 = arith.mulf %40, %39 : vector<8x8xf32>
    %42 = arith.addf %41, %38 : vector<8x8xf32>
    %c0_27 = arith.constant 0 : index
    %c0_28 = arith.constant 0 : index
    %43 = vector.load %arg9[%c0_27, %c0_28] : memref<8x32xf32, #tpu.memory_space<vmem>>, vector<8x8xf32>
    tpu.vector_store %arg9[%c0_27, %c0_28], %42 {strides = array<i32>} : memref<8x32xf32, #tpu.memory_space<vmem>>, vector<8x8xf32>,
    %44 = vector.extract_strided_slice %6 {offsets = [0, 8], sizes = [8, 8], strides = [1, 1]} : vector<8x32xbf16> to vector<8x8xbf16>
    %45 = vector.extract_strided_slice %8 {offsets = [0, 8], sizes = [8, 8], strides = [1, 1]} : vector<8x32xbf16> to vector<8x8xbf16>
    %cst_29 = arith.constant dense<0.000000e+00> : vector<8x8xf32>
    %46 = tpu.matmul %44, %45, %cst_29 {dimension_numbers = #tpu.dot_dimension_numbers<[1], [1], [0], [0], [0, 0, 1, 0], [], []>} : vector<8x8xbf16>, vector<8x8xbf16>, vector<8x8xf32> -> vector<8x8xf32>
    %c1 = arith.constant 1 : index
    %c0_30 = arith.constant 0 : index
    %c0_31 = arith.constant 0 : index
    %47 = vector.load %arg7[%c1, %c0_30, %c0_31] : memref<4x8x1xf32, #tpu.memory_space<vmem>>, vector<1x8x1xf32>
    %48 = vector.shape_cast %47 : vector<1x8x1xf32> to vector<8x1xf32>
    %cst_32 = arith.constant dense<0xFF800000> : vector<8xf32>
    %49 = vector.multi_reduction <maximumf>, %46, %cst_32 [1] : vector<8x8xf32> to vector<8xf32>
    %50 = vector.shape_cast %49 : vector<8xf32> to vector<8x1xf32>
    %51 = arith.maximumf %48, %50 : vector<8x1xf32>
    %52 = arith.subf %48, %51 : vector<8x1xf32>
    %53 = math.exp %52 : vector<8x1xf32>
    %54 = vector.broadcast %51 : vector<8x1xf32> to vector<8x8xf32>
    %55 = arith.subf %46, %54 : vector<8x8xf32>
    %56 = math.exp %55 : vector<8x8xf32>
    %c1_33 = arith.constant 1 : index
    %c0_34 = arith.constant 0 : index
    %c0_35 = arith.constant 0 : index
    %57 = vector.load %arg8[%c1_33, %c0_34, %c0_35] : memref<4x8x1xf32, #tpu.memory_space<vmem>>, vector<1x8x1xf32>
    %58 = vector.shape_cast %57 : vector<1x8x1xf32> to vector<8x1xf32>
    %59 = arith.mulf %53, %58 : vector<8x1xf32>
    %cst_36 = arith.constant dense<0.000000e+00> : vector<8xf32>
    %60 = vector.multi_reduction <add>, %56, %cst_36 [1] : vector<8x8xf32> to vector<8xf32>
    %61 = vector.shape_cast %60 : vector<8xf32> to vector<8x1xf32>
    %62 = arith.addf %59, %61 : vector<8x1xf32>
    %c1_37 = arith.constant 1 : index
    %c0_38 = arith.constant 0 : index
    %c0_39 = arith.constant 0 : index
    %63 = vector.load %arg8[%c1_37, %c0_38, %c0_39] : memref<4x8x1xf32, #tpu.memory_space<vmem>>, vector<1x8x1xf32>
    %64 = vector.shape_cast %63 : vector<1x8x1xf32> to vector<8x1xf32>
    %65 = vector.shape_cast %62 : vector<8x1xf32> to vector<1x8x1xf32>
    tpu.vector_store %arg8[%c1_37, %c0_38, %c0_39], %65 {strides = array<i32>} : memref<4x8x1xf32, #tpu.memory_space<vmem>>, vector<1x8x1xf32>,
    %c1_40 = arith.constant 1 : index
    %c0_41 = arith.constant 0 : index
    %c0_42 = arith.constant 0 : index
    %66 = vector.load %arg7[%c1_40, %c0_41, %c0_42] : memref<4x8x1xf32, #tpu.memory_space<vmem>>, vector<1x8x1xf32>
    %67 = vector.shape_cast %66 : vector<1x8x1xf32> to vector<8x1xf32>
    %68 = vector.shape_cast %51 : vector<8x1xf32> to vector<1x8x1xf32>
    tpu.vector_store %arg7[%c1_40, %c0_41, %c0_42], %68 {strides = array<i32>} : memref<4x8x1xf32, #tpu.memory_space<vmem>>, vector<1x8x1xf32>,
    %69 = arith.truncf %56 : vector<8x8xf32> to vector<8x8xbf16>
    %70 = vector.extract_strided_slice %10 {offsets = [0, 8], sizes = [8, 8], strides = [1, 1]} : vector<8x32xbf16> to vector<8x8xbf16>
    %cst_43 = arith.constant dense<0.000000e+00> : vector<8x8xf32>
    %71 = tpu.matmul %69, %70, %cst_43 {dimension_numbers = #tpu.dot_dimension_numbers<[1], [0], [0], [1], [0, 0, 1, 1], [], []>} : vector<8x8xbf16>, vector<8x8xbf16>, vector<8x8xf32> -> vector<8x8xf32>
    %c0_44 = arith.constant 0 : index
    %c8 = arith.constant 8 : index
    %72 = vector.load %arg9[%c0_44, %c8] : memref<8x32xf32, #tpu.memory_space<vmem>>, vector<8x8xf32>
    %73 = vector.broadcast %53 : vector<8x1xf32> to vector<8x8xf32>
    %74 = arith.mulf %73, %72 : vector<8x8xf32>
    %75 = arith.addf %74, %71 : vector<8x8xf32>
    %c0_45 = arith.constant 0 : index
    %c8_46 = arith.constant 8 : index
    %76 = vector.load %arg9[%c0_45, %c8_46] : memref<8x32xf32, #tpu.memory_space<vmem>>, vector<8x8xf32>
    tpu.vector_store %arg9[%c0_45, %c8_46], %75 {strides = array<i32>} : memref<8x32xf32, #tpu.memory_space<vmem>>, vector<8x8xf32>,
    %77 = vector.extract_strided_slice %6 {offsets = [0, 16], sizes = [8, 8], strides = [1, 1]} : vector<8x32xbf16> to vector<8x8xbf16>
    %78 = vector.extract_strided_slice %8 {offsets = [0, 16], sizes = [8, 8], strides = [1, 1]} : vector<8x32xbf16> to vector<8x8xbf16>
    %cst_47 = arith.constant dense<0.000000e+00> : vector<8x8xf32>
    %79 = tpu.matmul %77, %78, %cst_47 {dimension_numbers = #tpu.dot_dimension_numbers<[1], [1], [0], [0], [0, 0, 1, 0], [], []>} : vector<8x8xbf16>, vector<8x8xbf16>, vector<8x8xf32> -> vector<8x8xf32>
    %c2 = arith.constant 2 : index
    %c0_48 = arith.constant 0 : index
    %c0_49 = arith.constant 0 : index
    %80 = vector.load %arg7[%c2, %c0_48, %c0_49] : memref<4x8x1xf32, #tpu.memory_space<vmem>>, vector<1x8x1xf32>
    %81 = vector.shape_cast %80 : vector<1x8x1xf32> to vector<8x1xf32>
    %cst_50 = arith.constant dense<0xFF800000> : vector<8xf32>
    %82 = vector.multi_reduction <maximumf>, %79, %cst_50 [1] : vector<8x8xf32> to vector<8xf32>
    %83 = vector.shape_cast %82 : vector<8xf32> to vector<8x1xf32>
    %84 = arith.maximumf %81, %83 : vector<8x1xf32>
    %85 = arith.subf %81, %84 : vector<8x1xf32>
    %86 = math.exp %85 : vector<8x1xf32>
    %87 = vector.broadcast %84 : vector<8x1xf32> to vector<8x8xf32>
    %88 = arith.subf %79, %87 : vector<8x8xf32>
    %89 = math.exp %88 : vector<8x8xf32>
    %c2_51 = arith.constant 2 : index
    %c0_52 = arith.constant 0 : index
    %c0_53 = arith.constant 0 : index
    %90 = vector.load %arg8[%c2_51, %c0_52, %c0_53] : memref<4x8x1xf32, #tpu.memory_space<vmem>>, vector<1x8x1xf32>
    %91 = vector.shape_cast %90 : vector<1x8x1xf32> to vector<8x1xf32>
    %92 = arith.mulf %86, %91 : vector<8x1xf32>
    %cst_54 = arith.constant dense<0.000000e+00> : vector<8xf32>
    %93 = vector.multi_reduction <add>, %89, %cst_54 [1] : vector<8x8xf32> to vector<8xf32>
    %94 = vector.shape_cast %93 : vector<8xf32> to vector<8x1xf32>
    %95 = arith.addf %92, %94 : vector<8x1xf32>
    %c2_55 = arith.constant 2 : index
    %c0_56 = arith.constant 0 : index
    %c0_57 = arith.constant 0 : index
    %96 = vector.load %arg8[%c2_55, %c0_56, %c0_57] : memref<4x8x1xf32, #tpu.memory_space<vmem>>, vector<1x8x1xf32>
    %97 = vector.shape_cast %96 : vector<1x8x1xf32> to vector<8x1xf32>
    %98 = vector.shape_cast %95 : vector<8x1xf32> to vector<1x8x1xf32>
    tpu.vector_store %arg8[%c2_55, %c0_56, %c0_57], %98 {strides = array<i32>} : memref<4x8x1xf32, #tpu.memory_space<vmem>>, vector<1x8x1xf32>,
    %c2_58 = arith.constant 2 : index
    %c0_59 = arith.constant 0 : index
    %c0_60 = arith.constant 0 : index
    %99 = vector.load %arg7[%c2_58, %c0_59, %c0_60] : memref<4x8x1xf32, #tpu.memory_space<vmem>>, vector<1x8x1xf32>
    %100 = vector.shape_cast %99 : vector<1x8x1xf32> to vector<8x1xf32>
    %101 = vector.shape_cast %84 : vector<8x1xf32> to vector<1x8x1xf32>
    tpu.vector_store %arg7[%c2_58, %c0_59, %c0_60], %101 {strides = array<i32>} : memref<4x8x1xf32, #tpu.memory_space<vmem>>, vector<1x8x1xf32>,
    %102 = arith.truncf %89 : vector<8x8xf32> to vector<8x8xbf16>
    %103 = vector.extract_strided_slice %10 {offsets = [0, 16], sizes = [8, 8], strides = [1, 1]} : vector<8x32xbf16> to vector<8x8xbf16>
    %cst_61 = arith.constant dense<0.000000e+00> : vector<8x8xf32>
    %104 = tpu.matmul %102, %103, %cst_61 {dimension_numbers = #tpu.dot_dimension_numbers<[1], [0], [0], [1], [0, 0, 1, 1], [], []>} : vector<8x8xbf16>, vector<8x8xbf16>, vector<8x8xf32> -> vector<8x8xf32>
    %c0_62 = arith.constant 0 : index
    %c16 = arith.constant 16 : index
    %105 = vector.load %arg9[%c0_62, %c16] : memref<8x32xf32, #tpu.memory_space<vmem>>, vector<8x8xf32>
    %106 = vector.broadcast %86 : vector<8x1xf32> to vector<8x8xf32>
    %107 = arith.mulf %106, %105 : vector<8x8xf32>
    %108 = arith.addf %107, %104 : vector<8x8xf32>
    %c0_63 = arith.constant 0 : index
    %c16_64 = arith.constant 16 : index
    %109 = vector.load %arg9[%c0_63, %c16_64] : memref<8x32xf32, #tpu.memory_space<vmem>>, vector<8x8xf32>
    tpu.vector_store %arg9[%c0_63, %c16_64], %108 {strides = array<i32>} : memref<8x32xf32, #tpu.memory_space<vmem>>, vector<8x8xf32>,
    %110 = vector.extract_strided_slice %6 {offsets = [0, 24], sizes = [8, 8], strides = [1, 1]} : vector<8x32xbf16> to vector<8x8xbf16>
    %111 = vector.extract_strided_slice %8 {offsets = [0, 24], sizes = [8, 8], strides = [1, 1]} : vector<8x32xbf16> to vector<8x8xbf16>
    %cst_65 = arith.constant dense<0.000000e+00> : vector<8x8xf32>
    %112 = tpu.matmul %110, %111, %cst_65 {dimension_numbers = #tpu.dot_dimension_numbers<[1], [1], [0], [0], [0, 0, 1, 0], [], []>} : vector<8x8xbf16>, vector<8x8xbf16>, vector<8x8xf32> -> vector<8x8xf32>
    %c3 = arith.constant 3 : index
    %c0_66 = arith.constant 0 : index
    %c0_67 = arith.constant 0 : index
    %113 = vector.load %arg7[%c3, %c0_66, %c0_67] : memref<4x8x1xf32, #tpu.memory_space<vmem>>, vector<1x8x1xf32>
    %114 = vector.shape_cast %113 : vector<1x8x1xf32> to vector<8x1xf32>
    %cst_68 = arith.constant dense<0xFF800000> : vector<8xf32>
    %115 = vector.multi_reduction <maximumf>, %112, %cst_68 [1] : vector<8x8xf32> to vector<8xf32>
    %116 = vector.shape_cast %115 : vector<8xf32> to vector<8x1xf32>
    %117 = arith.maximumf %114, %116 : vector<8x1xf32>
    %118 = arith.subf %114, %117 : vector<8x1xf32>
    %119 = math.exp %118 : vector<8x1xf32>
    %120 = vector.broadcast %117 : vector<8x1xf32> to vector<8x8xf32>
    %121 = arith.subf %112, %120 : vector<8x8xf32>
    %122 = math.exp %121 : vector<8x8xf32>
    %c3_69 = arith.constant 3 : index
    %c0_70 = arith.constant 0 : index
    %c0_71 = arith.constant 0 : index
    %123 = vector.load %arg8[%c3_69, %c0_70, %c0_71] : memref<4x8x1xf32, #tpu.memory_space<vmem>>, vector<1x8x1xf32>
    %124 = vector.shape_cast %123 : vector<1x8x1xf32> to vector<8x1xf32>
    %125 = arith.mulf %119, %124 : vector<8x1xf32>
    %cst_72 = arith.constant dense<0.000000e+00> : vector<8xf32>
    %126 = vector.multi_reduction <add>, %122, %cst_72 [1] : vector<8x8xf32> to vector<8xf32>
    %127 = vector.shape_cast %126 : vector<8xf32> to vector<8x1xf32>
    %128 = arith.addf %125, %127 : vector<8x1xf32>
    %c3_73 = arith.constant 3 : index
    %c0_74 = arith.constant 0 : index
    %c0_75 = arith.constant 0 : index
    %129 = vector.load %arg8[%c3_73, %c0_74, %c0_75] : memref<4x8x1xf32, #tpu.memory_space<vmem>>, vector<1x8x1xf32>
    %130 = vector.shape_cast %129 : vector<1x8x1xf32> to vector<8x1xf32>
    %131 = vector.shape_cast %128 : vector<8x1xf32> to vector<1x8x1xf32>
    tpu.vector_store %arg8[%c3_73, %c0_74, %c0_75], %131 {strides = array<i32>} : memref<4x8x1xf32, #tpu.memory_space<vmem>>, vector<1x8x1xf32>,
    %c3_76 = arith.constant 3 : index
    %c0_77 = arith.constant 0 : index
    %c0_78 = arith.constant 0 : index
    %132 = vector.load %arg7[%c3_76, %c0_77, %c0_78] : memref<4x8x1xf32, #tpu.memory_space<vmem>>, vector<1x8x1xf32>
    %133 = vector.shape_cast %132 : vector<1x8x1xf32> to vector<8x1xf32>
    %134 = vector.shape_cast %117 : vector<8x1xf32> to vector<1x8x1xf32>
    tpu.vector_store %arg7[%c3_76, %c0_77, %c0_78], %134 {strides = array<i32>} : memref<4x8x1xf32, #tpu.memory_space<vmem>>, vector<1x8x1xf32>,
    %135 = arith.truncf %122 : vector<8x8xf32> to vector<8x8xbf16>
    %136 = vector.extract_strided_slice %10 {offsets = [0, 24], sizes = [8, 8], strides = [1, 1]} : vector<8x32xbf16> to vector<8x8xbf16>
    %cst_79 = arith.constant dense<0.000000e+00> : vector<8x8xf32>
    %137 = tpu.matmul %135, %136, %cst_79 {dimension_numbers = #tpu.dot_dimension_numbers<[1], [0], [0], [1], [0, 0, 1, 1], [], []>} : vector<8x8xbf16>, vector<8x8xbf16>, vector<8x8xf32> -> vector<8x8xf32>
    %c0_80 = arith.constant 0 : index
    %c24 = arith.constant 24 : index
    %138 = vector.load %arg9[%c0_80, %c24] : memref<8x32xf32, #tpu.memory_space<vmem>>, vector<8x8xf32>
    %139 = vector.broadcast %119 : vector<8x1xf32> to vector<8x8xf32>
    %140 = arith.mulf %139, %138 : vector<8x8xf32>
    %141 = arith.addf %140, %137 : vector<8x8xf32>
    %c0_81 = arith.constant 0 : index
    %c24_82 = arith.constant 24 : index
    %142 = vector.load %arg9[%c0_81, %c24_82] : memref<8x32xf32, #tpu.memory_space<vmem>>, vector<8x8xf32>
    tpu.vector_store %arg9[%c0_81, %c24_82], %141 {strides = array<i32>} : memref<8x32xf32, #tpu.memory_space<vmem>>, vector<8x8xf32>,
    %c0_i32_83 = arith.constant 0 : i32
    %143 = arith.cmpi eq, %arg2, %c0_i32_83 : i32
    %144 = arith.extui %143 : i1 to i32
    %c0_i32_84 = arith.constant 0 : i32
    %145 = arith.cmpi ne, %144, %c0_i32_84 : i32
    scf.if %145 {
      %c0_85 = arith.constant 0 : index
      %c0_86 = arith.constant 0 : index
      %146 = vector.load %arg9[%c0_85, %c0_86] : memref<8x32xf32, #tpu.memory_space<vmem>>, vector<8x8xf32>
      %c0_87 = arith.constant 0 : index
      %c0_88 = arith.constant 0 : index
      %c0_89 = arith.constant 0 : index
      %147 = vector.load %arg8[%c0_87, %c0_88, %c0_89] : memref<4x8x1xf32, #tpu.memory_space<vmem>>, vector<1x8x1xf32>
      %148 = vector.shape_cast %147 : vector<1x8x1xf32> to vector<8x1xf32>
      %149 = vector.broadcast %148 : vector<8x1xf32> to vector<8x8xf32>
      %150 = arith.divf %146, %149 : vector<8x8xf32>
      %c0_90 = arith.constant 0 : index
      %c0_91 = arith.constant 0 : index
      %151 = vector.load %arg9[%c0_90, %c0_91] : memref<8x32xf32, #tpu.memory_space<vmem>>, vector<8x8xf32>
      tpu.vector_store %arg9[%c0_90, %c0_91], %150 {strides = array<i32>} : memref<8x32xf32, #tpu.memory_space<vmem>>, vector<8x8xf32>,
      %c0_92 = arith.constant 0 : index
      %c8_93 = arith.constant 8 : index
      %152 = vector.load %arg9[%c0_92, %c8_93] : memref<8x32xf32, #tpu.memory_space<vmem>>, vector<8x8xf32>
      %c1_94 = arith.constant 1 : index
      %c0_95 = arith.constant 0 : index
      %c0_96 = arith.constant 0 : index
      %153 = vector.load %arg8[%c1_94, %c0_95, %c0_96] : memref<4x8x1xf32, #tpu.memory_space<vmem>>, vector<1x8x1xf32>
      %154 = vector.shape_cast %153 : vector<1x8x1xf32> to vector<8x1xf32>
      %155 = vector.broadcast %154 : vector<8x1xf32> to vector<8x8xf32>
      %156 = arith.divf %152, %155 : vector<8x8xf32>
      %c0_97 = arith.constant 0 : index
      %c8_98 = arith.constant 8 : index
      %157 = vector.load %arg9[%c0_97, %c8_98] : memref<8x32xf32, #tpu.memory_space<vmem>>, vector<8x8xf32>
      tpu.vector_store %arg9[%c0_97, %c8_98], %156 {strides = array<i32>} : memref<8x32xf32, #tpu.memory_space<vmem>>, vector<8x8xf32>,
      %c0_99 = arith.constant 0 : index
      %c16_100 = arith.constant 16 : index
      %158 = vector.load %arg9[%c0_99, %c16_100] : memref<8x32xf32, #tpu.memory_space<vmem>>, vector<8x8xf32>
      %c2_101 = arith.constant 2 : index
      %c0_102 = arith.constant 0 : index
      %c0_103 = arith.constant 0 : index
      %159 = vector.load %arg8[%c2_101, %c0_102, %c0_103] : memref<4x8x1xf32, #tpu.memory_space<vmem>>, vector<1x8x1xf32>
      %160 = vector.shape_cast %159 : vector<1x8x1xf32> to vector<8x1xf32>
      %161 = vector.broadcast %160 : vector<8x1xf32> to vector<8x8xf32>
      %162 = arith.divf %158, %161 : vector<8x8xf32>
      %c0_104 = arith.constant 0 : index
      %c16_105 = arith.constant 16 : index
      %163 = vector.load %arg9[%c0_104, %c16_105] : memref<8x32xf32, #tpu.memory_space<vmem>>, vector<8x8xf32>
      tpu.vector_store %arg9[%c0_104, %c16_105], %162 {strides = array<i32>} : memref<8x32xf32, #tpu.memory_space<vmem>>, vector<8x8xf32>,
      %c0_106 = arith.constant 0 : index
      %c24_107 = arith.constant 24 : index
      %164 = vector.load %arg9[%c0_106, %c24_107] : memref<8x32xf32, #tpu.memory_space<vmem>>, vector<8x8xf32>
      %c3_108 = arith.constant 3 : index
      %c0_109 = arith.constant 0 : index
      %c0_110 = arith.constant 0 : index
      %165 = vector.load %arg8[%c3_108, %c0_109, %c0_110] : memref<4x8x1xf32, #tpu.memory_space<vmem>>, vector<1x8x1xf32>
      %166 = vector.shape_cast %165 : vector<1x8x1xf32> to vector<8x1xf32>
      %167 = vector.broadcast %166 : vector<8x1xf32> to vector<8x8xf32>
      %168 = arith.divf %164, %167 : vector<8x8xf32>
      %c0_111 = arith.constant 0 : index
      %c24_112 = arith.constant 24 : index
      %169 = vector.load %arg9[%c0_111, %c24_112] : memref<8x32xf32, #tpu.memory_space<vmem>>, vector<8x8xf32>
      tpu.vector_store %arg9[%c0_111, %c24_112], %168 {strides = array<i32>} : memref<8x32xf32, #tpu.memory_space<vmem>>, vector<8x8xf32>,
      %c0_113 = arith.constant 0 : index
      %c0_114 = arith.constant 0 : index
      %170 = vector.load %arg9[%c0_113, %c0_114] : memref<8x32xf32, #tpu.memory_space<vmem>>, vector<8x32xf32>
      %171 = arith.truncf %170 : vector<8x32xf32> to vector<8x32xbf16>
      %c0_115 = arith.constant 0 : index
      %c0_116 = arith.constant 0 : index
      %c0_117 = arith.constant 0 : index
      %172 = vector.load %arg6[%c0_115, %c0_116, %c0_117] : memref<1x8x32xbf16, #tpu.memory_space<vmem>>, vector<1x8x32xbf16>
      %173 = vector.shape_cast %172 : vector<1x8x32xbf16> to vector<8x32xbf16>
      %174 = vector.shape_cast %171 : vector<8x32xbf16> to vector<1x8x32xbf16>
      tpu.vector_store %arg6[%c0_115, %c0_116, %c0_117], %174 {strides = array<i32>} : memref<1x8x32xbf16, #tpu.memory_space<vmem>>, vector<1x8x32xbf16>,
    } else {
    }
    return
  }
  func.func @transform_0(%arg0: i32, %arg1: i32, %arg2: i32) -> (i32, i32, i32) {
    %c0_i32 = arith.constant 0 : i32
    %c0_i32_0 = arith.constant 0 : i32
    return %arg0, %arg1, %c0_i32 : i32, i32, i32
  }
  func.func @transform_1(%arg0: i32, %arg1: i32, %arg2: i32) -> (i32, i32, i32) {
    %c0_i32 = arith.constant 0 : i32
    %c0_i32_0 = arith.constant 0 : i32
    return %arg0, %arg2, %c0_i32 : i32, i32, i32
  }
  func.func @transform_2(%arg0: i32, %arg1: i32, %arg2: i32) -> (i32, i32, i32) {
    %c0_i32 = arith.constant 0 : i32
    %c0_i32_0 = arith.constant 0 : i32
    return %arg0, %arg2, %c0_i32 : i32, i32, i32
  }
  func.func @transform_3(%arg0: i32, %arg1: i32, %arg2: i32) -> (i32, i32, i32) {
    %c0_i32 = arith.constant 0 : i32
    %c0_i32_0 = arith.constant 0 : i32
    return %arg0, %arg1, %c0_i32 : i32, i32, i32
  }
}

module attributes {stable_mosaic.version = 11 : i64} {
  func.func @_linear_kernel(%arg0: i32, %arg1: i32, %arg2: i32, %arg3: memref<16x32xbf16, #tpu.memory_space<vmem>>, %arg4: memref<16x32xbf16, #tpu.memory_space<vmem>>, %arg5: memref<32x128xbf16, #tpu.memory_space<vmem>>, %arg6: memref<1x128xf32, #tpu.memory_space<vmem>>, %arg7: memref<16x128xf32, #tpu.memory_space<vmem>>, %arg8: memref<16x128xf32, #tpu.memory_space<vmem>>) attributes {dimension_semantics = [#tpu.dimension_semantics<parallel>, #tpu.dimension_semantics<parallel>, #tpu.dimension_semantics<arbitrary>], iteration_bounds = array<i64: 1, 1, 1>, scalar_prefetch = 0 : i64, scratch_operands = 1 : i64, tpu.core_type = #tpu.core_type<tc>, window_params = [{transform_indices = @transform_0, window_bounds = array<i64: 16, 32>}, {transform_indices = @transform_1, window_bounds = array<i64: 16, 32>}, {transform_indices = @transform_2, window_bounds = array<i64: 32, 128>}, {transform_indices = @transform_3, window_bounds = array<i64: 1, 128>}, {transform_indices = @transform_4, window_bounds = array<i64: 16, 128>}]} {
    %c0_i32 = arith.constant 0 : i32
    %0 = arith.cmpi eq, %arg2, %c0_i32 : i32
    %1 = arith.extui %0 : i1 to i32
    %c0_i32_0 = arith.constant 0 : i32
    %2 = arith.cmpi ne, %1, %c0_i32_0 : i32
    scf.if %2 {
      %cst_12 = arith.constant 0.000000e+00 : f32
      %14 = vector.broadcast %cst_12 : f32 to vector<16x128xf32>
      %c0_13 = arith.constant 0 : index
      %c0_14 = arith.constant 0 : index
      %15 = vector.load %arg8[%c0_13, %c0_14] : memref<16x128xf32, #tpu.memory_space<vmem>>, vector<16x128xf32>
      tpu.vector_store %arg8[%c0_13, %c0_14], %14 {strides = array<i32>} : memref<16x128xf32, #tpu.memory_space<vmem>>, vector<16x128xf32>,
    } else {
    }
    %c0 = arith.constant 0 : index
    %c0_1 = arith.constant 0 : index
    %3 = vector.load %arg3[%c0, %c0_1] : memref<16x32xbf16, #tpu.memory_space<vmem>>, vector<16x32xbf16>
    %c0_2 = arith.constant 0 : index
    %c0_3 = arith.constant 0 : index
    %4 = vector.load %arg4[%c0_2, %c0_3] : memref<16x32xbf16, #tpu.memory_space<vmem>>, vector<16x32xbf16>
    %5 = arith.addf %3, %4 : vector<16x32xbf16>
    %c0_4 = arith.constant 0 : index
    %c0_5 = arith.constant 0 : index
    %6 = vector.load %arg8[%c0_4, %c0_5] : memref<16x128xf32, #tpu.memory_space<vmem>>, vector<16x128xf32>
    %c0_6 = arith.constant 0 : index
    %c0_7 = arith.constant 0 : index
    %7 = vector.load %arg5[%c0_6, %c0_7] : memref<32x128xbf16, #tpu.memory_space<vmem>>, vector<32x128xbf16>
    %cst = arith.constant dense<0.000000e+00> : vector<16x128xf32>
    %8 = tpu.matmul %5, %7, %cst {dimension_numbers = #tpu.dot_dimension_numbers<[1], [0], [0], [1], [0, 0, 1, 1], [], []>} : vector<16x32xbf16>, vector<32x128xbf16>, vector<16x128xf32> -> vector<16x128xf32>
    %9 = arith.addf %6, %8 : vector<16x128xf32>
    %c0_8 = arith.constant 0 : index
    %c0_9 = arith.constant 0 : index
    %10 = vector.load %arg8[%c0_8, %c0_9] : memref<16x128xf32, #tpu.memory_space<vmem>>, vector<16x128xf32>
    tpu.vector_store %arg8[%c0_8, %c0_9], %9 {strides = array<i32>} : memref<16x128xf32, #tpu.memory_space<vmem>>, vector<16x128xf32>,
    %c0_i32_10 = arith.constant 0 : i32
    %11 = arith.cmpi eq, %arg2, %c0_i32_10 : i32
    %12 = arith.extui %11 : i1 to i32
    %c0_i32_11 = arith.constant 0 : i32
    %13 = arith.cmpi ne, %12, %c0_i32_11 : i32
    scf.if %13 {
      %c0_12 = arith.constant 0 : index
      %c0_13 = arith.constant 0 : index
      %14 = vector.load %arg8[%c0_12, %c0_13] : memref<16x128xf32, #tpu.memory_space<vmem>>, vector<16x128xf32>
      %c0_14 = arith.constant 0 : index
      %c0_15 = arith.constant 0 : index
      %15 = vector.load %arg6[%c0_14, %c0_15] : memref<1x128xf32, #tpu.memory_space<vmem>>, vector<1x128xf32>
      %16 = vector.broadcast %15 : vector<1x128xf32> to vector<16x128xf32>
      %17 = arith.addf %14, %16 : vector<16x128xf32>
      %c0_16 = arith.constant 0 : index
      %c0_17 = arith.constant 0 : index
      %18 = vector.load %arg7[%c0_16, %c0_17] : memref<16x128xf32, #tpu.memory_space<vmem>>, vector<16x128xf32>
      tpu.vector_store %arg7[%c0_16, %c0_17], %17 {strides = array<i32>} : memref<16x128xf32, #tpu.memory_space<vmem>>, vector<16x128xf32>,
    } else {
    }
    return
  }
  func.func @transform_0(%arg0: i32, %arg1: i32, %arg2: i32) -> (i32, i32) {
    %c0_i32 = arith.constant 0 : i32
    return %arg1, %arg2 : i32, i32
  }
  func.func @transform_1(%arg0: i32, %arg1: i32, %arg2: i32) -> (i32, i32) {
    %c0_i32 = arith.constant 0 : i32
    return %arg1, %arg2 : i32, i32
  }
  func.func @transform_2(%arg0: i32, %arg1: i32, %arg2: i32) -> (i32, i32) {
    %c0_i32 = arith.constant 0 : i32
    return %arg2, %arg0 : i32, i32
  }
  func.func @transform_3(%arg0: i32, %arg1: i32, %arg2: i32) -> (i32, i32) {
    %c0_i32 = arith.constant 0 : i32
    %c0_i32_0 = arith.constant 0 : i32
    return %c0_i32, %arg0 : i32, i32
  }
  func.func @transform_4(%arg0: i32, %arg1: i32, %arg2: i32) -> (i32, i32) {
    %c0_i32 = arith.constant 0 : i32
    return %arg1, %arg0 : i32, i32
  }
}

</mosaic_0001>

<llo_original>
// kernel: graformer_forward.39
$region0: #{graformer_forward.39}
  #allocation0 [shape = 'u32[]', space=smem, size = 0x4, offset = 0x4, fixed_abs, tag = 'smem constant byte address 0x4 - core index']
  #allocation1 [shape = 'u32[144,128]{1,0:T(1,128)}', space=vmem, size = 0x12000, scoped, tag = 'internal scratch']
  #allocation2 [shape = 'f32[16,32]{1,0:T(8,128)}', space=vmem, size = 0x2000, scoped, tag = 'scratch operand']
  %s0 = inlined_call_operand.vmem [shape: bf16[16,32], index: 0, kind: input, shape index: {}]
  %s1 = inlined_call_operand.vmem [shape: bf16[32,32], index: 1, kind: input, shape index: {}]
  %s2 = inlined_call_operand.vmem [shape: f32[1,32], index: 2, kind: input, shape index: {}]
  %s3 = inlined_call_operand.vmem [shape: bf16[16,32], index: 3, kind: input, shape index: {}]
  %s4 = inlined_call_operand.vmem [shape: f32[1,32], index: 4, kind: input, shape index: {}]
  %s5 = inlined_call_operand.vmem [shape: f32[1,32], index: 5, kind: input, shape index: {}]
  %s6 = inlined_call_operand.vmem [shape: bf16[16,32], index: 6, kind: output, shape index: {}]
  %s7 = sld [smem:[#allocation0]]
  $region42: #{graformer_forward.39} parent=0
    _
  %s9 = ssub.s32 1, %s7
  %s10 = scalar_select 0, %s9, %s7
  // Predicated region
  $region2: #{graformer_forward.39} parent=0 // pred_check
    _
  $region3: #{graformer_forward.39} parent=0 // pred_check_branch
    %12 = sbr.rel (0) target = $region5
  $region4: #{graformer_forward.39} parent=0 // pred_region
    _
  $region5: #{graformer_forward.39} parent=0 // pred_fallthru
    _
  // Predicated region
  $region6: #{graformer_forward.39} parent=0 // pred_check
    _
  $region7: #{graformer_forward.39} parent=0 // pred_check_branch
    %14 = sbr.rel (0) target = $region9
  $region8: #{graformer_forward.39} parent=0 // pred_region
    _
  $region9: #{graformer_forward.39} parent=0 // pred_fallthru
    _
  // Predicated region
  $region10: #{graformer_forward.39} parent=0 // pred_check
    _
  $region11: #{graformer_forward.39} parent=0 // pred_check_branch
    %16 = sbr.rel (0) target = $region13
  $region12: #{graformer_forward.39} parent=0 // pred_region
    _
  $region13: #{graformer_forward.39} parent=0 // pred_fallthru
    _
  // Predicated region
  $region14: #{graformer_forward.39} parent=0 // pred_check
    _
  $region15: #{graformer_forward.39} parent=0 // pred_check_branch
    %18 = sbr.rel (0) target = $region17
  $region16: #{graformer_forward.39} parent=0 // pred_region
    _
  $region17: #{graformer_forward.39} parent=0 // pred_fallthru
    _
  // Predicated region
  $region18: #{graformer_forward.39} parent=0 // pred_check
    _
  $region19: #{graformer_forward.39} parent=0 // pred_check_branch
    %20 = sbr.rel (0) target = $region21
  $region20: #{graformer_forward.39} parent=0 // pred_region
    _
  $region21: #{graformer_forward.39} parent=0 // pred_fallthru
    _
  // Predicated region
  $region22: #{graformer_forward.39} parent=0 // pred_check
    _
  $region23: #{graformer_forward.39} parent=0 // pred_check_branch
    %22 = sbr.rel (0) target = $region25
  $region24: #{graformer_forward.39} parent=0 // pred_region
    _
  $region25: #{graformer_forward.39} parent=0 // pred_fallthru
    _
  %p24 = scmp.eq.s32.totalorder 0, 0
  // Predicated region
  $region26: #{graformer_forward.39} parent=0 // pred_check
    %p25 = pneg %p24
  $region27: #{graformer_forward.39} parent=0 // pred_check_branch
    %27 = sbr.rel (%p25) target = $region29
  $region28: #{graformer_forward.39} parent=0 // pred_region
    %vm28 = vcmask 261120
    %29 = vst.msk [vmem:[#allocation2] sm:$0xff] %vm28, 0.0
    %30 = vst.msk [vmem:[#allocation2 + $0x8] sm:$0xff] %vm28, 0.0
  $region29: #{graformer_forward.39} parent=0 // pred_fallthru
    _
  %v31 = vld [vmem:[%s0] sm:$0xf]
  %v32 = vld [vmem:[%s0 + $0x4] sm:$0xf]
  %v33 = vld [vmem:[#allocation2] sm:$0xff]
  %v34 = vld [vmem:[#allocation2 + $0x8] sm:$0xff]
  %v35 = vld [vmem:[%s1] sm:$0xf]
  %v36 = vld [vmem:[%s1 + $0x4] sm:$0xf]
  %v37 = vld [vmem:[%s1 + $0x8] sm:$0xf]
  %v38 = vld [vmem:[%s1 + $0xc] sm:$0xf]
  %v41 = vunpack.c.l.b16 %v31
  %v42 = vunpack.c.l.b16 %v32
  %v43 = vpack.c.b16 %v42, %v41
  %v48 = vunpack.c.l.b16 %v35
  %v49 = vunpack.c.l.b16 %v36
  %v50 = vunpack.c.l.b16 %v37
  %v51 = vunpack.c.l.b16 %v38
  %v52 = vpack.c.b16 %v49, %v48
  %v53 = vpack.c.b16 %v51, %v50
  %vm56 = vcmask 261120
  %v58 = vsel %vm56, %v43, 0
  %60 = vmatprep.subr.bf16.mxu0 0
  %61 = vmatpush1.bf16.msra.mxu0 0
  %62 = vmatprep.subr.bf16.mxu0 0
  %63 = vmatpush1.bf16.msra.mxu0 0
  %64 = vmatprep.subr.bf16.mxu0 0
  %65 = vmatpush1.bf16.msra.mxu0 0
  %66 = vmatprep.subr.bf16.mxu0 0
  %67 = vmatpush1.bf16.msra.mxu0 0
  %68 = vmatprep.subr.bf16.mxu0 0
  %69 = vmatpush1.bf16.msra.mxu0 0
  %70 = vmatprep.subr.bf16.mxu0 0
  %71 = vmatpush1.bf16.msra.mxu0 0
  %72 = vmatprep.subr.bf16.mxu0 0
  %73 = vmatpush1.bf16.msra.mxu0 %v53
  %74 = vmatprep.subr.bf16.mxu0 0
  %75 = vmatpush1.bf16.msra.mxu0 %v52
  %76 = vmatprep.subr.bf16.mxu0 0
  %77 = vmatpush2.bf16.msra.mxu0 0
  %78 = vmatprep.subr.bf16.mxu0 0
  %79 = vmatpush2.bf16.msra.mxu0 0
  %80 = vmatprep.subr.bf16.mxu0 0
  %81 = vmatpush2.bf16.msra.mxu0 0
  %82 = vmatprep.subr.bf16.mxu0 0
  %83 = vmatpush2.bf16.msra.mxu0 0
  %84 = vmatprep.subr.bf16.mxu0 0
  %85 = vmatpush2.bf16.msra.mxu0 0
  %86 = vmatprep.subr.bf16.mxu0 0
  %87 = vmatpush2.bf16.msra.mxu0 0
  %88 = vmatprep.subr.bf16.mxu0 0
  %89 = vmatpush2.bf16.msra.mxu0 0
  %90 = vmatprep.subr.bf16.mxu0 0
  %91 = vmatpush2.bf16.msra.mxu0 0
  %92 = vmatprep.mubr.bf16.mxu0 0
  %93 = vmatmul.mubr.bf16.gmra.mxu0 %v58
  %v94 = vpop.f32.mrf.mxu0
  %v95 = vadd.f32 0.0, %v94
  %v96 = vpop.f32.mrf.mxu0
  %v97 = vpop.f32.mrf.mxu0
  %v98 = vadd.f32 0.0, %v97
  %v99 = vpop.f32.mrf.mxu0
  %100 = vdwg.mxu0
  %v101 = vadd.f32 %v33, %v95
  %v102 = vadd.f32 %v34, %v98
  %103 = vst.msk [vmem:[#allocation2] sm:$0xff] %vm56, %v101
  %104 = vst.msk [vmem:[#allocation2 + $0x8] sm:$0xff] %vm56, %v102
  // Predicated region
  $region30: #{graformer_forward.39} parent=0 // pred_check
    %p105 = pneg %p24
  $region31: #{graformer_forward.39} parent=0 // pred_check_branch
    %107 = sbr.rel (%p105) target = $region33
  $region32: #{graformer_forward.39} parent=0 // pred_region
    %v108 = vld [vmem:[#allocation2] sm:$0xff]
    %v109 = vld [vmem:[#allocation2 + $0x8] sm:$0xff]
    %v110 = vld [vmem:[%s2] sm:$0x1]
    %v112 = vlaneseq
    %v113 = vshrl.u32 %v112, 7
    %v114 = vsub.s32 0, %v113
    %v115 = vrot.slane %v110, %v114
    %v117 = vadd.f32 %v108, %v115
    %v118 = vadd.f32 %v109, %v115
    %v119 = vld [vmem:[%s3] sm:$0xf]
    %v120 = vld [vmem:[%s3 + $0x4] sm:$0xf]
    %v121 = vunpack.c.l.bf16 %v119
    %v122 = vunpack.c.l.bf16 %v120
    %v123 = vadd.f32 %v117, %v121
    %v124 = vadd.f32 %v118, %v122
    %v125 = vsel %vm56, %v123, 0.0
    %126 = vadd.xlane.f32.xlu0 %v125
    %v127 = vpop.xlane.xlu0 %126
    %v128 = vsel %vm56, %v124, 0.0
    %129 = vadd.xlane.f32.xlu0 %v128
    %v130 = vpop.xlane.xlu0 %129
    %v131 = vrcp.pop 32.0
    %v132 = vmul.f32 %v127, %v131
    %v133 = vmul.f32 %v130, %v131
    %v134 = vsub.f32 %v123, %v132
    %v135 = vsub.f32 %v124, %v133
    %v136 = vmul.f32 %v134, %v134
    %v137 = vmul.f32 %v135, %v135
    %v138 = vsel %vm56, %v136, 0.0
    %139 = vadd.xlane.f32.xlu0 %v138
    %v140 = vpop.xlane.xlu0 %139
    %v141 = vsel %vm56, %v137, 0.0
    %142 = vadd.xlane.f32.xlu0 %v141
    %v143 = vpop.xlane.xlu0 %142
    %v144 = vmul.f32 %v140, %v131
    %v145 = vmul.f32 %v143, %v131
    %v146 = vadd.f32 %v144, 1e-05
    %v147 = vadd.f32 %v145, 1e-05
    %v148 = vrsqrt.pop %v146
    %v149 = vrsqrt.pop %v147
    %v150 = vmul.f32 %v134, %v148
    %v151 = vmul.f32 %v135, %v149
    %v152 = vld [vmem:[%s4] sm:$0x1]
    %v154 = vlaneseq
    %v155 = vshrl.u32 %v154, 7
    %v156 = vsub.s32 0, %v155
    %v157 = vrot.slane %v152, %v156
    %v159 = vmul.f32 %v150, %v157
    %v160 = vmul.f32 %v151, %v157
    %v161 = vld [vmem:[%s5] sm:$0x1]
    %v163 = vlaneseq
    %v164 = vshrl.u32 %v163, 7
    %v165 = vsub.s32 0, %v164
    %v166 = vrot.slane %v161, %v165
    %v168 = vadd.f32 %v159, %v166
    %v169 = vadd.f32 %v160, %v166
    %v170 = vpack.c.bf16 %v169, %v168
    %v172 = vunpack.c.l.b16 %v170
    %v173 = vunpack.c.h.b16 %v170
    %v174 = vpack.c.b16 %v172, %v172
    %v175 = vpack.c.b16 %v173, %v173
    %vm178 = vcmask 257024
    %179 = vst.msk [vmem:[%s6] sm:$0xf] %vm178, %v174
    %180 = vst.msk [vmem:[%s6 + $0x4] sm:$0xf] %vm178, %v175
  $region33: #{graformer_forward.39} parent=0 // pred_fallthru
    _
  // Predicated region
  $region34: #{graformer_forward.39} parent=0 // pred_check
    _
  $region35: #{graformer_forward.39} parent=0 // pred_check_branch
    %182 = sbr.rel (0) target = $region37
  $region36: #{graformer_forward.39} parent=0 // pred_region
    _
  $region37: #{graformer_forward.39} parent=0 // pred_fallthru
    _
  // Predicated region
  $region38: #{graformer_forward.39} parent=0 // pred_check
    _
  $region39: #{graformer_forward.39} parent=0 // pred_check_branch
    %184 = sbr.rel (0) target = $region41
  $region40: #{graformer_forward.39} parent=0 // pred_region
    _
  $region41: #{graformer_forward.39} parent=0 // pred_fallthru
    _

// kernel: graformer_forward.35
$region0: #{graformer_forward.35}
  #allocation0 [shape = 'u32[]', space=smem, size = 0x4, offset = 0x4, fixed_abs, tag = 'smem constant byte address 0x4 - core index']
  #allocation1 [shape = 'u32[144,128]{1,0:T(1,128)}', space=vmem, size = 0x12000, scoped, tag = 'internal scratch']
  #allocation2 [shape = 'f32[16,32]{1,0:T(8,128)}', space=vmem, size = 0x2000, scoped, tag = 'scratch operand']
  %s0 = inlined_call_operand.vmem [shape: bf16[16,32], index: 0, kind: input, shape index: {}]
  %s1 = inlined_call_operand.vmem [shape: bf16[32,32], index: 1, kind: input, shape index: {}]
  %s2 = inlined_call_operand.vmem [shape: f32[1,32], index: 2, kind: input, shape index: {}]
  %s3 = inlined_call_operand.vmem [shape: bf16[16,32], index: 3, kind: output, shape index: {}]
  %s4 = sld [smem:[#allocation0]]
  $region30: #{graformer_forward.35} parent=0
    _
  %s6 = ssub.s32 1, %s4
  %s7 = scalar_select 0, %s6, %s4
  // Predicated region
  $region2: #{graformer_forward.35} parent=0 // pred_check
    _
  $region3: #{graformer_forward.35} parent=0 // pred_check_branch
    %9 = sbr.rel (0) target = $region5
  $region4: #{graformer_forward.35} parent=0 // pred_region
    _
  $region5: #{graformer_forward.35} parent=0 // pred_fallthru
    _
  // Predicated region
  $region6: #{graformer_forward.35} parent=0 // pred_check
    _
  $region7: #{graformer_forward.35} parent=0 // pred_check_branch
    %11 = sbr.rel (0) target = $region9
  $region8: #{graformer_forward.35} parent=0 // pred_region
    _
  $region9: #{graformer_forward.35} parent=0 // pred_fallthru
    _
  // Predicated region
  $region10: #{graformer_forward.35} parent=0 // pred_check
    _
  $region11: #{graformer_forward.35} parent=0 // pred_check_branch
    %13 = sbr.rel (0) target = $region13
  $region12: #{graformer_forward.35} parent=0 // pred_region
    _
  $region13: #{graformer_forward.35} parent=0 // pred_fallthru
    _
  %p15 = scmp.eq.s32.totalorder 0, 0
  // Predicated region
  $region14: #{graformer_forward.35} parent=0 // pred_check
    %p16 = pneg %p15
  $region15: #{graformer_forward.35} parent=0 // pred_check_branch
    %18 = sbr.rel (%p16) target = $region17
  $region16: #{graformer_forward.35} parent=0 // pred_region
    %vm19 = vcmask 261120
    %20 = vst.msk [vmem:[#allocation2] sm:$0xff] %vm19, 0.0
    %21 = vst.msk [vmem:[#allocation2 + $0x8] sm:$0xff] %vm19, 0.0
  $region17: #{graformer_forward.35} parent=0 // pred_fallthru
    _
  %v22 = vld [vmem:[%s0] sm:$0xf]
  %v23 = vld [vmem:[%s0 + $0x4] sm:$0xf]
  %v24 = vld [vmem:[#allocation2] sm:$0xff]
  %v25 = vld [vmem:[#allocation2 + $0x8] sm:$0xff]
  %v26 = vld [vmem:[%s1] sm:$0xf]
  %v27 = vld [vmem:[%s1 + $0x4] sm:$0xf]
  %v28 = vld [vmem:[%s1 + $0x8] sm:$0xf]
  %v29 = vld [vmem:[%s1 + $0xc] sm:$0xf]
  %v32 = vunpack.c.l.b16 %v22
  %v33 = vunpack.c.l.b16 %v23
  %v34 = vpack.c.b16 %v33, %v32
  %v39 = vunpack.c.l.b16 %v26
  %v40 = vunpack.c.l.b16 %v27
  %v41 = vunpack.c.l.b16 %v28
  %v42 = vunpack.c.l.b16 %v29
  %v43 = vpack.c.b16 %v40, %v39
  %v44 = vpack.c.b16 %v42, %v41
  %vm47 = vcmask 261120
  %v49 = vsel %vm47, %v34, 0
  %51 = vmatprep.subr.bf16.mxu0 0
  %52 = vmatpush1.bf16.msra.mxu0 0
  %53 = vmatprep.subr.bf16.mxu0 0
  %54 = vmatpush1.bf16.msra.mxu0 0
  %55 = vmatprep.subr.bf16.mxu0 0
  %56 = vmatpush1.bf16.msra.mxu0 0
  %57 = vmatprep.subr.bf16.mxu0 0
  %58 = vmatpush1.bf16.msra.mxu0 0
  %59 = vmatprep.subr.bf16.mxu0 0
  %60 = vmatpush1.bf16.msra.mxu0 0
  %61 = vmatprep.subr.bf16.mxu0 0
  %62 = vmatpush1.bf16.msra.mxu0 0
  %63 = vmatprep.subr.bf16.mxu0 0
  %64 = vmatpush1.bf16.msra.mxu0 %v44
  %65 = vmatprep.subr.bf16.mxu0 0
  %66 = vmatpush1.bf16.msra.mxu0 %v43
  %67 = vmatprep.subr.bf16.mxu0 0
  %68 = vmatpush2.bf16.msra.mxu0 0
  %69 = vmatprep.subr.bf16.mxu0 0
  %70 = vmatpush2.bf16.msra.mxu0 0
  %71 = vmatprep.subr.bf16.mxu0 0
  %72 = vmatpush2.bf16.msra.mxu0 0
  %73 = vmatprep.subr.bf16.mxu0 0
  %74 = vmatpush2.bf16.msra.mxu0 0
  %75 = vmatprep.subr.bf16.mxu0 0
  %76 = vmatpush2.bf16.msra.mxu0 0
  %77 = vmatprep.subr.bf16.mxu0 0
  %78 = vmatpush2.bf16.msra.mxu0 0
  %79 = vmatprep.subr.bf16.mxu0 0
  %80 = vmatpush2.bf16.msra.mxu0 0
  %81 = vmatprep.subr.bf16.mxu0 0
  %82 = vmatpush2.bf16.msra.mxu0 0
  %83 = vmatprep.mubr.bf16.mxu0 0
  %84 = vmatmul.mubr.bf16.gmra.mxu0 %v49
  %v85 = vpop.f32.mrf.mxu0
  %v86 = vadd.f32 0.0, %v85
  %v87 = vpop.f32.mrf.mxu0
  %v88 = vpop.f32.mrf.mxu0
  %v89 = vadd.f32 0.0, %v88
  %v90 = vpop.f32.mrf.mxu0
  %91 = vdwg.mxu0
  %v92 = vadd.f32 %v24, %v86
  %v93 = vadd.f32 %v25, %v89
  %94 = vst.msk [vmem:[#allocation2] sm:$0xff] %vm47, %v92
  %95 = vst.msk [vmem:[#allocation2 + $0x8] sm:$0xff] %vm47, %v93
  // Predicated region
  $region18: #{graformer_forward.35} parent=0 // pred_check
    %p96 = pneg %p15
  $region19: #{graformer_forward.35} parent=0 // pred_check_branch
    %98 = sbr.rel (%p96) target = $region21
  $region20: #{graformer_forward.35} parent=0 // pred_region
    %v99 = vld [vmem:[#allocation2] sm:$0xff]
    %v100 = vld [vmem:[#allocation2 + $0x8] sm:$0xff]
    %v101 = vld [vmem:[%s2] sm:$0x1]
    %v103 = vlaneseq
    %v104 = vshrl.u32 %v103, 7
    %v105 = vsub.s32 0, %v104
    %v106 = vrot.slane %v101, %v105
    %v108 = vadd.f32 %v99, %v106
    %v109 = vadd.f32 %v100, %v106
    %v110 = vpack.c.bf16 %v109, %v108
    %v112 = vunpack.c.l.b16 %v110
    %v113 = vunpack.c.h.b16 %v110
    %v114 = vpack.c.b16 %v112, %v112
    %v115 = vpack.c.b16 %v113, %v113
    %vm118 = vcmask 257024
    %119 = vst.msk [vmem:[%s3] sm:$0xf] %vm118, %v114
    %120 = vst.msk [vmem:[%s3 + $0x4] sm:$0xf] %vm118, %v115
  $region21: #{graformer_forward.35} parent=0 // pred_fallthru
    _
  // Predicated region
  $region22: #{graformer_forward.35} parent=0 // pred_check
    _
  $region23: #{graformer_forward.35} parent=0 // pred_check_branch
    %122 = sbr.rel (0) target = $region25
  $region24: #{graformer_forward.35} parent=0 // pred_region
    _
  $region25: #{graformer_forward.35} parent=0 // pred_fallthru
    _
  // Predicated region
  $region26: #{graformer_forward.35} parent=0 // pred_check
    _
  $region27: #{graformer_forward.35} parent=0 // pred_check_branch
    %124 = sbr.rel (0) target = $region29
  $region28: #{graformer_forward.35} parent=0 // pred_region
    _
  $region29: #{graformer_forward.35} parent=0 // pred_fallthru
    _

// kernel: graformer_forward.38
$region0: #{graformer_forward.38}
  #allocation0 [shape = 'u32[]', space=smem, size = 0x4, offset = 0x4, fixed_abs, tag = 'smem constant byte address 0x4 - core index']
  #allocation1 [shape = 'u32[144,128]{1,0:T(1,128)}', space=vmem, size = 0x12000, scoped, tag = 'internal scratch']
  #allocation2 [shape = 'f32[4,8,1]{2,1,0:T(8,128)}', space=vmem, size = 0x4000, scoped, tag = 'scratch operand']
  #allocation3 [shape = 'f32[4,8,1]{2,1,0:T(8,128)}', space=vmem, size = 0x4000, scoped, tag = 'scratch operand']
  #allocation4 [shape = 'f32[8,32]{1,0:T(8,128)}', space=vmem, size = 0x1000, scoped, tag = 'scratch operand']
  %s0 = inlined_call_operand.vmem [shape: f32[2,1,8], index: 0, kind: input, shape index: {}]
  %s1 = inlined_call_operand.vmem [shape: bf16[2,8,32], index: 1, kind: input, shape index: {}]
  %s2 = inlined_call_operand.vmem [shape: bf16[2,8,32], index: 2, kind: input, shape index: {}]
  %s3 = inlined_call_operand.vmem [shape: bf16[2,8,32], index: 3, kind: input, shape index: {}]
  %s4 = inlined_call_operand.vmem [shape: bf16[2,8,32], index: 4, kind: output, shape index: {}]
  %s5 = sld [smem:[#allocation0]]
  $region57: #{graformer_forward.38} parent=0
    _
  %s7 = ssub.s32 1, %s5
  %s8 = scalar_select 0, %s7, %s5
  loop: start=0, step=1, limit=4
  $region2: #{graformer_forward.38} parent=0 // loop_pre_header
    _
  $region3: #{graformer_forward.38} parent=0 // loop_header
    %s10 = sphi 0, %s14
    %p11 = scmp.ge.s32.totalorder %s10, 4
    %s17 = sphi 0, %s36
    %s18 = sphi 0, %s32
    %s19 = sphi 0, %s28
    %s20 = sphi 0, %s17
    %s21 = sphi 0, %s18
    %s22 = sphi 0, %s19
    %s23 = sphi 0, %s20
    %s24 = sphi 0, %s21
    %s25 = sphi 0, %s22
    %s41 = sphi 0, %s43
    %s44 = sphi 0, %s41
    %s45 = sphi 0, %s44
    %s61 = sphi 0, %s45
    %s69 = sphi 0, %s71
    %s72 = sphi 0, %s69
    %s73 = sphi 0, %s72
    %s89 = sphi 0, %s73
    %s97 = sphi 0, %s99
    %s100 = sphi 0, %s97
    %s101 = sphi 0, %s100
    %s117 = sphi 0, %s101
    %s125 = sphi 0, %s127
    %s128 = sphi 0, %s125
    %s129 = sphi 0, %s128
    %s145 = sphi 0, %s129
    %s153 = sphi 0, %s155
    %s156 = sphi 0, %s153
    %s157 = sphi 0, %s156
    %s173 = sphi 0, %s157
  $region4: #{graformer_forward.38} parent=0 // loop_header_branch
    %13 = sbr.rel (%p11) target = $region8
  $region5: #{graformer_forward.38} parent=0 // loop_body
    %s15 = ssub.s32 %s10, 1
    %s16 = ssub.s32 %s10, 2
    %s26 = sadd.s32 1, %s19
    %p27 = scmp.ge.s32.totalorder %s26, 1
    %s28 = scalar_select %p27, 0, %s26
    %s29 = sadd.s32 1, %s18
    %s30 = scalar_select %p27, %s29, %s18
    %p31 = scmp.ge.s32.totalorder %s30, 1
    %s32 = scalar_select %p31, 0, %s30
    %s33 = sadd.s32 1, %s17
    %s34 = scalar_select %p31, %s33, %s17
    %p35 = scmp.ge.s32.totalorder %s34, 2
    %s36 = scalar_select %p35, 0, %s34
    %s37 = ssub.s32 %s17, %s36
    %s38 = ssub.s32 %s19, %s28
    %s39 = sor.u32 %s37, %s38
    %p40 = scmp.eq.s32.totalorder %s39, 0
    %s42 = sadd.s32 %s41, 1
    %s43 = scalar_select %p40, %s41, %s42
    %p46 = pneg %p40
    %p47 = scmp.eq.s32.totalorder %s10, 1
    %p48 = por %p46, %p47
    %p49 = scmp.ne.s32.totalorder %s41, %s44
    %p50 = scmp.eq.s32.totalorder %s10, 0
    %p51 = por %p49, %p50
    %p52 = scmp.ne.s32.totalorder %s41, %s44
    %p53 = scmp.eq.s32.totalorder %s15, 1
    %p54 = por %p52, %p53
    %p55 = scmp.ne.s32.totalorder %s44, %s45
    %p56 = scmp.eq.s32.totalorder %s15, 0
    %p57 = por %p55, %p56
    %p58 = scmp.ne.s32.totalorder %s44, %s45
    %p59 = scmp.eq.s32.totalorder %s16, 1
    %p60 = por %p58, %p59
    %p62 = scmp.ne.s32.totalorder %s45, %s61
    %p63 = scmp.eq.s32.totalorder %s16, 0
    %p64 = por %p62, %p63
    %s65 = ssub.s32 %s17, %s36
    %s66 = ssub.s32 %s18, %s32
    %s67 = sor.u32 %s65, %s66
    %p68 = scmp.eq.s32.totalorder %s67, 0
    %s70 = sadd.s32 %s69, 1
    %s71 = scalar_select %p68, %s69, %s70
    %p74 = pneg %p68
    %p75 = scmp.eq.s32.totalorder %s10, 1
    %p76 = por %p74, %p75
    %p77 = scmp.ne.s32.totalorder %s69, %s72
    %p78 = scmp.eq.s32.totalorder %s10, 0
    %p79 = por %p77, %p78
    %p80 = scmp.ne.s32.totalorder %s69, %s72
    %p81 = scmp.eq.s32.totalorder %s15, 1
    %p82 = por %p80, %p81
    %p83 = scmp.ne.s32.totalorder %s72, %s73
    %p84 = scmp.eq.s32.totalorder %s15, 0
    %p85 = por %p83, %p84
    %p86 = scmp.ne.s32.totalorder %s72, %s73
    %p87 = scmp.eq.s32.totalorder %s16, 1
    %p88 = por %p86, %p87
    %p90 = scmp.ne.s32.totalorder %s73, %s89
    %p91 = scmp.eq.s32.totalorder %s16, 0
    %p92 = por %p90, %p91
    %s93 = ssub.s32 %s17, %s36
    %s94 = ssub.s32 %s19, %s28
    %s95 = sor.u32 %s93, %s94
    %p96 = scmp.eq.s32.totalorder %s95, 0
    %s98 = sadd.s32 %s97, 1
    %s99 = scalar_select %p96, %s97, %s98
    %p102 = pneg %p96
    %p103 = scmp.eq.s32.totalorder %s10, 1
    %p104 = por %p102, %p103
    %p105 = scmp.ne.s32.totalorder %s97, %s100
    %p106 = scmp.eq.s32.totalorder %s10, 0
    %p107 = por %p105, %p106
    %p108 = scmp.ne.s32.totalorder %s97, %s100
    %p109 = scmp.eq.s32.totalorder %s15, 1
    %p110 = por %p108, %p109
    %p111 = scmp.ne.s32.totalorder %s100, %s101
    %p112 = scmp.eq.s32.totalorder %s15, 0
    %p113 = por %p111, %p112
    %p114 = scmp.ne.s32.totalorder %s100, %s101
    %p115 = scmp.eq.s32.totalorder %s16, 1
    %p116 = por %p114, %p115
    %p118 = scmp.ne.s32.totalorder %s101, %s117
    %p119 = scmp.eq.s32.totalorder %s16, 0
    %p120 = por %p118, %p119
    %s121 = ssub.s32 %s17, %s36
    %s122 = ssub.s32 %s19, %s28
    %s123 = sor.u32 %s121, %s122
    %p124 = scmp.eq.s32.totalorder %s123, 0
    %s126 = sadd.s32 %s125, 1
    %s127 = scalar_select %p124, %s125, %s126
    %p130 = pneg %p124
    %p131 = scmp.eq.s32.totalorder %s10, 1
    %p132 = por %p130, %p131
    %p133 = scmp.ne.s32.totalorder %s125, %s128
    %p134 = scmp.eq.s32.totalorder %s10, 0
    %p135 = por %p133, %p134
    %p136 = scmp.ne.s32.totalorder %s125, %s128
    %p137 = scmp.eq.s32.totalorder %s15, 1
    %p138 = por %p136, %p137
    %p139 = scmp.ne.s32.totalorder %s128, %s129
    %p140 = scmp.eq.s32.totalorder %s15, 0
    %p141 = por %p139, %p140
    %p142 = scmp.ne.s32.totalorder %s128, %s129
    %p143 = scmp.eq.s32.totalorder %s16, 1
    %p144 = por %p142, %p143
    %p146 = scmp.ne.s32.totalorder %s129, %s145
    %p147 = scmp.eq.s32.totalorder %s16, 0
    %p148 = por %p146, %p147
    %s149 = ssub.s32 %s17, %s36
    %s150 = ssub.s32 %s18, %s32
    %s151 = sor.u32 %s149, %s150
    %p152 = scmp.eq.s32.totalorder %s151, 0
    %s154 = sadd.s32 %s153, 1
    %s155 = scalar_select %p152, %s153, %s154
    %p158 = pneg %p152
    %p159 = scmp.eq.s32.totalorder %s10, 1
    %p160 = por %p158, %p159
    %p161 = scmp.ne.s32.totalorder %s153, %s156
    %p162 = scmp.eq.s32.totalorder %s10, 0
    %p163 = por %p161, %p162
    %p164 = scmp.ne.s32.totalorder %s153, %s156
    %p165 = scmp.eq.s32.totalorder %s15, 1
    %p166 = por %p164, %p165
    %p167 = scmp.ne.s32.totalorder %s156, %s157
    %p168 = scmp.eq.s32.totalorder %s15, 0
    %p169 = por %p167, %p168
    %p170 = scmp.ne.s32.totalorder %s156, %s157
    %p171 = scmp.eq.s32.totalorder %s16, 1
    %p172 = por %p170, %p171
    %p174 = scmp.ne.s32.totalorder %s157, %s173
    %p175 = scmp.eq.s32.totalorder %s16, 0
    %p176 = por %p174, %p175
    %p177 = scmp.le.s32.totalorder 1, %s10
    %p178 = scmp.lt.s32.totalorder %s10, 3
    %p179 = pnand %p177, %p178
    %p180 = pneg %p179
    // Predicated region
    $region9: #{graformer_forward.38} parent=5 // pred_check
      _
    $region10: #{graformer_forward.38} parent=5 // pred_check_branch
      %182 = sbr.rel (%p179) target = $region12
    $region11: #{graformer_forward.38} parent=5 // pred_region
      %s183 = ssub.s32 %s10, 1
    $region12: #{graformer_forward.38} parent=5 // pred_fallthru
      _
    %p184 = scmp.lt.s32.totalorder %s10, 2
    // Predicated region
    $region13: #{graformer_forward.38} parent=5 // pred_check
      %p185 = pneg %p184
    $region14: #{graformer_forward.38} parent=5 // pred_check_branch
      %187 = sbr.rel (%p185) target = $region16
    $region15: #{graformer_forward.38} parent=5 // pred_region
      // Predicated region
      $region17: #{graformer_forward.38} parent=15 // pred_check
        %p188 = pneg %p51
      $region18: #{graformer_forward.38} parent=15 // pred_check_branch
        %190 = sbr.rel (%p188) target = $region20
      $region19: #{graformer_forward.38} parent=15 // pred_region
        %p191 = scmp.lt.s32.totalorder %s17, 1
        %s192 = scalar_select %p191, %s17, 1
        %p193 = scmp.lt.s32.totalorder %s19, 0
        %s194 = scalar_select %p193, %s19, 0
        %s195 = sadd.s32 %s194, %s192
        %s196 = scalar_lea.vmem %s0, %s195
      $region20: #{graformer_forward.38} parent=15 // pred_fallthru
        _
      // Predicated region
      $region21: #{graformer_forward.38} parent=15 // pred_check
        %p197 = pneg %p79
      $region22: #{graformer_forward.38} parent=15 // pred_check_branch
        %199 = sbr.rel (%p197) target = $region24
      $region23: #{graformer_forward.38} parent=15 // pred_region
        %p200 = scmp.lt.s32.totalorder %s17, 1
        %s201 = scalar_select %p200, %s17, 1
        %p202 = scmp.lt.s32.totalorder %s18, 0
        %s203 = scalar_select %p202, %s18, 0
        %s204 = sadd.s32 %s203, %s201
        %s205 = smul.addr %s204, 4
        %s206 = scalar_lea.vmem %s1, %s205
      $region24: #{graformer_forward.38} parent=15 // pred_fallthru
        _
      // Predicated region
      $region25: #{graformer_forward.38} parent=15 // pred_check
        %p207 = pneg %p107
      $region26: #{graformer_forward.38} parent=15 // pred_check_branch
        %209 = sbr.rel (%p207) target = $region28
      $region27: #{graformer_forward.38} parent=15 // pred_region
        %p210 = scmp.lt.s32.totalorder %s17, 1
        %s211 = scalar_select %p210, %s17, 1
        %p212 = scmp.lt.s32.totalorder %s19, 0
        %s213 = scalar_select %p212, %s19, 0
        %s214 = sadd.s32 %s213, %s211
        %s215 = smul.addr %s214, 4
        %s216 = scalar_lea.vmem %s2, %s215
      $region28: #{graformer_forward.38} parent=15 // pred_fallthru
        _
      // Predicated region
      $region29: #{graformer_forward.38} parent=15 // pred_check
        %p217 = pneg %p135
      $region30: #{graformer_forward.38} parent=15 // pred_check_branch
        %219 = sbr.rel (%p217) target = $region32
      $region31: #{graformer_forward.38} parent=15 // pred_region
        %p220 = scmp.lt.s32.totalorder %s17, 1
        %s221 = scalar_select %p220, %s17, 1
        %p222 = scmp.lt.s32.totalorder %s19, 0
        %s223 = scalar_select %p222, %s19, 0
        %s224 = sadd.s32 %s223, %s221
        %s225 = smul.addr %s224, 4
        %s226 = scalar_lea.vmem %s3, %s225
      $region32: #{graformer_forward.38} parent=15 // pred_fallthru
        _
    $region16: #{graformer_forward.38} parent=5 // pred_fallthru
      _
    %p227 = scmp.le.s32.totalorder 1, %s10
    %p228 = scmp.lt.s32.totalorder %s10, 3
    %p229 = pnand %p227, %p228
    %p230 = pneg %p229
    // Predicated region
    $region33: #{graformer_forward.38} parent=5 // pred_check
      _
    $region34: #{graformer_forward.38} parent=5 // pred_check_branch
      %232 = sbr.rel (%p229) target = $region36
    $region35: #{graformer_forward.38} parent=5 // pred_region
      %s233 = ssub.s32 %s10, 1
      %p234 = scmp.lt.s32.totalorder %s20, 1
      %s235 = scalar_select %p234, %s20, 1
      %p236 = scmp.lt.s32.totalorder %s22, 0
      %s237 = scalar_select %p236, %s22, 0
      %s238 = sadd.s32 %s237, %s235
      %s239 = scalar_lea.vmem %s0, %s238
      %p240 = pneg %p57
      %p241 = pneg %p54
      %p242 = scmp.lt.s32.totalorder %s20, 1
      %s243 = scalar_select %p242, %s20, 1
      %p244 = scmp.lt.s32.totalorder %s21, 0
      %s245 = scalar_select %p244, %s21, 0
      %s246 = sadd.s32 %s245, %s243
      %s247 = smul.addr %s246, 4
      %s248 = scalar_lea.vmem %s1, %s247
      %p249 = pneg %p85
      %p250 = pneg %p82
      %p251 = scmp.lt.s32.totalorder %s20, 1
      %s252 = scalar_select %p251, %s20, 1
      %p253 = scmp.lt.s32.totalorder %s22, 0
      %s254 = scalar_select %p253, %s22, 0
      %s255 = sadd.s32 %s254, %s252
      %s256 = smul.addr %s255, 4
      %s257 = scalar_lea.vmem %s2, %s256
      %p258 = pneg %p113
      %p259 = pneg %p110
      %p260 = scmp.lt.s32.totalorder %s20, 1
      %s261 = scalar_select %p260, %s20, 1
      %p262 = scmp.lt.s32.totalorder %s22, 0
      %s263 = scalar_select %p262, %s22, 0
      %s264 = sadd.s32 %s263, %s261
      %s265 = smul.addr %s264, 4
      %s266 = scalar_lea.vmem %s3, %s265
      %p267 = pneg %p141
      %p268 = pneg %p138
      %p269 = pneg %p169
      %p270 = pneg %p166
      %p271 = scmp.lt.s32.totalorder %s20, 1
      %s272 = scalar_select %p271, %s20, 1
      %p273 = scmp.lt.s32.totalorder %s21, 0
      %s274 = scalar_select %p273, %s21, 0
      %s275 = sadd.s32 %s274, %s272
      %s276 = smul.addr %s275, 4
      %s277 = scalar_lea.vmem %s4, %s276
      %p278 = scmp.lt.s32.totalorder %s20, 1
      %s279 = scalar_select %p278, %s20, 1
      %p280 = scmp.lt.s32.totalorder %s22, 0
      %s281 = scalar_select %p280, %s22, 0
      %s282 = sadd.s32 %s281, %s279
      %s283 = scalar_lea.vmem %s0, %s282
      %p284 = scmp.lt.s32.totalorder %s20, 1
      %s285 = scalar_select %p284, %s20, 1
      %p286 = scmp.lt.s32.totalorder %s21, 0
      %s287 = scalar_select %p286, %s21, 0
      %s288 = sadd.s32 %s287, %s285
      %s289 = smul.addr %s288, 4
      %s290 = scalar_lea.vmem %s1, %s289
      %p291 = scmp.lt.s32.totalorder %s20, 1
      %s292 = scalar_select %p291, %s20, 1
      %p293 = scmp.lt.s32.totalorder %s22, 0
      %s294 = scalar_select %p293, %s22, 0
      %s295 = sadd.s32 %s294, %s292
      %s296 = smul.addr %s295, 4
      %s297 = scalar_lea.vmem %s2, %s296
      %p298 = scmp.lt.s32.totalorder %s20, 1
      %s299 = scalar_select %p298, %s20, 1
      %p300 = scmp.lt.s32.totalorder %s22, 0
      %s301 = scalar_select %p300, %s22, 0
      %s302 = sadd.s32 %s301, %s299
      %s303 = smul.addr %s302, 4
      %s304 = scalar_lea.vmem %s3, %s303
      %p305 = scmp.lt.s32.totalorder %s20, 1
      %s306 = scalar_select %p305, %s20, 1
      %p307 = scmp.lt.s32.totalorder %s21, 0
      %s308 = scalar_select %p307, %s21, 0
      %s309 = sadd.s32 %s308, %s306
      %s310 = smul.addr %s309, 4
      %s311 = scalar_lea.vmem %s4, %s310
      %p314 = scmp.eq.s32.totalorder %s22, 0
      // Predicated region
      $region37: #{graformer_forward.38} parent=35 // pred_check
        %p315 = pneg %p314
      $region38: #{graformer_forward.38} parent=35 // pred_check_branch
        %317 = sbr.rel (%p315) target = $region40
      $region39: #{graformer_forward.38} parent=35 // pred_region
        %vm318 = vcmask 7168
        %319 = vst.msk [vmem:[#allocation2] sm:$0xff] %vm318, -1e+30
        %320 = vst.msk [vmem:[#allocation2 + $0x8] sm:$0xff] %vm318, -1e+30
        %321 = vst.msk [vmem:[#allocation2 + $0x10] sm:$0xff] %vm318, -1e+30
        %322 = vst.msk [vmem:[#allocation2 + $0x18] sm:$0xff] %vm318, -1e+30
        %323 = vst.msk [vmem:[#allocation3] sm:$0xff] %vm318, 0.0
        %324 = vst.msk [vmem:[#allocation3 + $0x8] sm:$0xff] %vm318, 0.0
        %325 = vst.msk [vmem:[#allocation3 + $0x10] sm:$0xff] %vm318, 0.0
        %326 = vst.msk [vmem:[#allocation3 + $0x18] sm:$0xff] %vm318, 0.0
        %vm327 = vcmask 261120
        %328 = vst.msk [vmem:[#allocation4] sm:$0xff] %vm327, 0.0
      $region40: #{graformer_forward.38} parent=35 // pred_fallthru
        _
      %v329 = vld [vmem:[%s290] sm:$0xf]
      %v330 = vmul.bf16 %v329, 1052065461
      %v331 = vld [vmem:[%s297] sm:$0xf]
      %v332 = vld [vmem:[%s304] sm:$0xf]
      %v333 = vld [vmem:[%s283] sm:$0x1]
      %v335 = vlaneseq
      %v336 = vshrl.u32 %v335, 7
      %v337 = vsub.s32 0, %v336
      %v338 = vrot.slane %v333, %v337
      %vm340 = vcmask 64512
      %v342 = vsel %vm340, %v330, 0
      %v345 = vsel %vm340, %v331, 0
      %347 = vmatprep.subr.bf16.mxu0 0
      %348 = vmatpush1.bf16.xpose.msra.mxu0 0
      %349 = vmatprep.subr.bf16.mxu0 0
      %350 = vmatpush1.bf16.xpose.msra.mxu0 0
      %351 = vmatprep.subr.bf16.mxu0 0
      %352 = vmatpush1.bf16.xpose.msra.mxu0 0
      %353 = vmatprep.subr.bf16.mxu0 0
      %354 = vmatpush1.bf16.xpose.msra.mxu0 0
      %355 = vmatprep.subr.bf16.mxu0 0
      %356 = vmatpush1.bf16.xpose.msra.mxu0 0
      %357 = vmatprep.subr.bf16.mxu0 0
      %358 = vmatpush1.bf16.xpose.msra.mxu0 0
      %359 = vmatprep.subr.bf16.mxu0 0
      %360 = vmatpush1.bf16.xpose.msra.mxu0 0
      %361 = vmatprep.subr.bf16.mxu0 0
      %362 = vmatpush1.bf16.xpose.msra.mxu0 %v345
      %363 = vmatprep.subr.bf16.mxu0 0
      %364 = vmatpush2.bf16.xpose.msra.mxu0 0
      %365 = vmatprep.subr.bf16.mxu0 0
      %366 = vmatpush2.bf16.xpose.msra.mxu0 0
      %367 = vmatprep.subr.bf16.mxu0 0
      %368 = vmatpush2.bf16.xpose.msra.mxu0 0
      %369 = vmatprep.subr.bf16.mxu0 0
      %370 = vmatpush2.bf16.xpose.msra.mxu0 0
      %371 = vmatprep.subr.bf16.mxu0 0
      %372 = vmatpush2.bf16.xpose.msra.mxu0 0
      %373 = vmatprep.subr.bf16.mxu0 0
      %374 = vmatpush2.bf16.xpose.msra.mxu0 0
      %375 = vmatprep.subr.bf16.mxu0 0
      %376 = vmatpush2.bf16.xpose.msra.mxu0 0
      %377 = vmatprep.subr.bf16.mxu0 0
      %378 = vmatpush2.bf16.xpose.msra.mxu0 0
      %379 = vmatprep.mubr.bf16.mxu0 0
      %380 = vmatmul.mubr.bf16.gmra.mxu0 %v342
      %v381 = vpop.f32.mrf.mxu0
      %v382 = vadd.f32 %v338, %v381
      %v383 = vpop.f32.mrf.mxu0
      %v384 = vpop.f32.mrf.mxu0
      %v385 = vpop.f32.mrf.mxu0
      %386 = vdwg.mxu0
      %v387 = vld [vmem:[#allocation2] sm:$0xff]
      %v388 = vsel %vm340, %v382, -inf
      %389 = vmax.xlane.f32.xlu0 %v388
      %v390 = vpop.xlane.xlu0 %389
      %v391 = vmax.f32 %v387, %v390
      %v392 = vsub.f32 %v387, %v391
      %v393 = vmul.f32 %v392, 1.442695
      %v394 = vpow.pop %v393
      %396 = vset.pattern.permute.xlu0 0
      %397 = vperm.xlu0 %396, %v391
      %v398 = vpop.permute.xlu0 %397
      %v400 = vsub.f32 %v382, %v398
      %v401 = vmul.f32 %v400, 1.442695
      %v402 = vpow.pop %v401
      %v403 = vld [vmem:[#allocation3] sm:$0xff]
      %v404 = vmul.f32 %v394, %v403
      %v405 = vsel %vm340, %v402, 0.0
      %406 = vadd.xlane.f32.xlu0 %v405
      %v407 = vpop.xlane.xlu0 %406
      %v408 = vadd.f32 %v404, %v407
      %vm409 = vcmask 7168
      %410 = vst.msk [vmem:[#allocation3] sm:$0xff] %vm409, %v408
      %411 = vst.msk [vmem:[#allocation2] sm:$0xff] %vm409, %v391
      %v412 = vpack.c.bf16 %v402, %v402
      %v414 = vsel %vm340, %v412, 0
      %vm416 = vcmask 1043456
      %v418 = vsel %vm416, %v332, 0
      %420 = vmatprep.subr.bf16.mxu0 0
      %421 = vmatpush1.bf16.msra.mxu0 0
      %422 = vmatprep.subr.bf16.mxu0 0
      %423 = vmatpush1.bf16.msra.mxu0 0
      %424 = vmatprep.subr.bf16.mxu0 0
      %425 = vmatpush1.bf16.msra.mxu0 0
      %426 = vmatprep.subr.bf16.mxu0 0
      %427 = vmatpush1.bf16.msra.mxu0 0
      %428 = vmatprep.subr.bf16.mxu0 0
      %429 = vmatpush1.bf16.msra.mxu0 0
      %430 = vmatprep.subr.bf16.mxu0 0
      %431 = vmatpush1.bf16.msra.mxu0 0
      %432 = vmatprep.subr.bf16.mxu0 0
      %433 = vmatpush1.bf16.msra.mxu0 0
      %434 = vmatprep.subr.bf16.mxu0 0
      %435 = vmatpush1.bf16.msra.mxu0 %v418
      %436 = vmatprep.subr.bf16.mxu0 0
      %437 = vmatpush2.bf16.msra.mxu0 0
      %438 = vmatprep.subr.bf16.mxu0 0
      %439 = vmatpush2.bf16.msra.mxu0 0
      %440 = vmatprep.subr.bf16.mxu0 0
      %441 = vmatpush2.bf16.msra.mxu0 0
      %442 = vmatprep.subr.bf16.mxu0 0
      %443 = vmatpush2.bf16.msra.mxu0 0
      %444 = vmatprep.subr.bf16.mxu0 0
      %445 = vmatpush2.bf16.msra.mxu0 0
      %446 = vmatprep.subr.bf16.mxu0 0
      %447 = vmatpush2.bf16.msra.mxu0 0
      %448 = vmatprep.subr.bf16.mxu0 0
      %449 = vmatpush2.bf16.msra.mxu0 0
      %450 = vmatprep.subr.bf16.mxu0 0
      %451 = vmatpush2.bf16.msra.mxu0 0
      %452 = vmatprep.mubr.bf16.mxu0 0
      %453 = vmatmul.mubr.bf16.gmra.mxu0 %v414
      %v454 = vpop.f32.mrf.mxu0
      %v455 = vadd.f32 0.0, %v454
      %v456 = vpop.f32.mrf.mxu0
      %v457 = vpop.f32.mrf.mxu0
      %v458 = vpop.f32.mrf.mxu0
      %459 = vdwg.mxu0
      %v460 = vld [vmem:[#allocation4] sm:$0xff]
      %462 = vset.pattern.permute.xlu0 0
      %463 = vperm.xlu0 %462, %v394
      %v464 = vpop.permute.xlu0 %463
      %v466 = vmul.f32 %v464, %v460
      %v467 = vadd.f32 %v466, %v455
      %468 = vst.msk [vmem:[#allocation4] sm:$0xff] %vm340, %v467
      %v470 = vunpack.c.l.b16 %v330
      %v471 = vpack.c.b16 %v470, %v470
      %472 = vrot.lane.b32.xlu0 %v471, 120
      %v473 = vpop.permute.xlu0 %472
      %v475 = vunpack.c.l.b16 %v331
      %v476 = vpack.c.b16 %v475, %v475
      %477 = vrot.lane.b32.xlu0 %v476, 120
      %v478 = vpop.permute.xlu0 %477
      %v480 = vsel %vm340, %v473, 0
      %v483 = vsel %vm340, %v478, 0
      %485 = vmatprep.subr.bf16.mxu0 0
      %486 = vmatpush1.bf16.xpose.msra.mxu0 0
      %487 = vmatprep.subr.bf16.mxu0 0
      %488 = vmatpush1.bf16.xpose.msra.mxu0 0
      %489 = vmatprep.subr.bf16.mxu0 0
      %490 = vmatpush1.bf16.xpose.msra.mxu0 0
      %491 = vmatprep.subr.bf16.mxu0 0
      %492 = vmatpush1.bf16.xpose.msra.mxu0 0
      %493 = vmatprep.subr.bf16.mxu0 0
      %494 = vmatpush1.bf16.xpose.msra.mxu0 0
      %495 = vmatprep.subr.bf16.mxu0 0
      %496 = vmatpush1.bf16.xpose.msra.mxu0 0
      %497 = vmatprep.subr.bf16.mxu0 0
      %498 = vmatpush1.bf16.xpose.msra.mxu0 0
      %499 = vmatprep.subr.bf16.mxu0 0
      %500 = vmatpush1.bf16.xpose.msra.mxu0 %v483
      %501 = vmatprep.subr.bf16.mxu0 0
      %502 = vmatpush2.bf16.xpose.msra.mxu0 0
      %503 = vmatprep.subr.bf16.mxu0 0
      %504 = vmatpush2.bf16.xpose.msra.mxu0 0
      %505 = vmatprep.subr.bf16.mxu0 0
      %506 = vmatpush2.bf16.xpose.msra.mxu0 0
      %507 = vmatprep.subr.bf16.mxu0 0
      %508 = vmatpush2.bf16.xpose.msra.mxu0 0
      %509 = vmatprep.subr.bf16.mxu0 0
      %510 = vmatpush2.bf16.xpose.msra.mxu0 0
      %511 = vmatprep.subr.bf16.mxu0 0
      %512 = vmatpush2.bf16.xpose.msra.mxu0 0
      %513 = vmatprep.subr.bf16.mxu0 0
      %514 = vmatpush2.bf16.xpose.msra.mxu0 0
      %515 = vmatprep.subr.bf16.mxu0 0
      %516 = vmatpush2.bf16.xpose.msra.mxu0 0
      %517 = vmatprep.mubr.bf16.mxu0 0
      %518 = vmatmul.mubr.bf16.gmra.mxu0 %v480
      %v519 = vpop.f32.mrf.mxu0
      %v520 = vadd.f32 %v338, %v519
      %v521 = vpop.f32.mrf.mxu0
      %v522 = vpop.f32.mrf.mxu0
      %v523 = vpop.f32.mrf.mxu0
      %524 = vdwg.mxu0
      %s525 = scalar_lea.vmem [#allocation2], 8
      %v526 = vld [vmem:[%s525] sm:$0xff]
      %v527 = vsel %vm340, %v520, -inf
      %528 = vmax.xlane.f32.xlu0 %v527
      %v529 = vpop.xlane.xlu0 %528
      %v530 = vmax.f32 %v526, %v529
      %v531 = vsub.f32 %v526, %v530
      %v532 = vmul.f32 %v531, 1.442695
      %v533 = vpow.pop %v532
      %535 = vset.pattern.permute.xlu0 0
      %536 = vperm.xlu0 %535, %v530
      %v537 = vpop.permute.xlu0 %536
      %v539 = vsub.f32 %v520, %v537
      %v540 = vmul.f32 %v539, 1.442695
      %v541 = vpow.pop %v540
      %s542 = scalar_lea.vmem [#allocation3], 8
      %v543 = vld [vmem:[%s542] sm:$0xff]
      %v544 = vmul.f32 %v533, %v543
      %v545 = vsel %vm340, %v541, 0.0
      %546 = vadd.xlane.f32.xlu0 %v545
      %v547 = vpop.xlane.xlu0 %546
      %v548 = vadd.f32 %v544, %v547
      %549 = vst.msk [vmem:[%s542] sm:$0xff] %vm409, %v548
      %550 = vst.msk [vmem:[%s525] sm:$0xff] %vm409, %v530
      %v551 = vpack.c.bf16 %v541, %v541
      %v553 = vunpack.c.l.b16 %v332
      %v554 = vpack.c.b16 %v553, %v553
      %555 = vrot.lane.b32.xlu0 %v554, 120
      %v556 = vpop.permute.xlu0 %555
      %v558 = vsel %vm340, %v551, 0
      %v561 = vsel %vm416, %v556, 0
      %563 = vmatprep.subr.bf16.mxu0 0
      %564 = vmatpush1.bf16.msra.mxu0 0
      %565 = vmatprep.subr.bf16.mxu0 0
      %566 = vmatpush1.bf16.msra.mxu0 0
      %567 = vmatprep.subr.bf16.mxu0 0
      %568 = vmatpush1.bf16.msra.mxu0 0
      %569 = vmatprep.subr.bf16.mxu0 0
      %570 = vmatpush1.bf16.msra.mxu0 0
      %571 = vmatprep.subr.bf16.mxu0 0
      %572 = vmatpush1.bf16.msra.mxu0 0
      %573 = vmatprep.subr.bf16.mxu0 0
      %574 = vmatpush1.bf16.msra.mxu0 0
      %575 = vmatprep.subr.bf16.mxu0 0
      %576 = vmatpush1.bf16.msra.mxu0 0
      %577 = vmatprep.subr.bf16.mxu0 0
      %578 = vmatpush1.bf16.msra.mxu0 %v561
      %579 = vmatprep.subr.bf16.mxu0 0
      %580 = vmatpush2.bf16.msra.mxu0 0
      %581 = vmatprep.subr.bf16.mxu0 0
      %582 = vmatpush2.bf16.msra.mxu0 0
      %583 = vmatprep.subr.bf16.mxu0 0
      %584 = vmatpush2.bf16.msra.mxu0 0
      %585 = vmatprep.subr.bf16.mxu0 0
      %586 = vmatpush2.bf16.msra.mxu0 0
      %587 = vmatprep.subr.bf16.mxu0 0
      %588 = vmatpush2.bf16.msra.mxu0 0
      %589 = vmatprep.subr.bf16.mxu0 0
      %590 = vmatpush2.bf16.msra.mxu0 0
      %591 = vmatprep.subr.bf16.mxu0 0
      %592 = vmatpush2.bf16.msra.mxu0 0
      %593 = vmatprep.subr.bf16.mxu0 0
      %594 = vmatpush2.bf16.msra.mxu0 0
      %595 = vmatprep.mubr.bf16.mxu0 0
      %596 = vmatmul.mubr.bf16.gmra.mxu0 %v558
      %v597 = vpop.f32.mrf.mxu0
      %v598 = vadd.f32 0.0, %v597
      %v599 = vpop.f32.mrf.mxu0
      %v600 = vpop.f32.mrf.mxu0
      %v601 = vpop.f32.mrf.mxu0
      %602 = vdwg.mxu0
      %v603 = vld [vmem:[#allocation4] sm:$0xff]
      %605 = vset.pattern.permute.xlu0 0
      %606 = vperm.xlu0 %605, %v533
      %v607 = vpop.permute.xlu0 %606
      %v609 = vmul.f32 %v607, %v603
      %611 = vrot.lane.b32.xlu0 %v598, 8
      %v612 = vpop.permute.xlu0 %611
      %v614 = vadd.f32 %v609, %v612
      %vm615 = vcmask 130112
      %616 = vst.msk [vmem:[#allocation4] sm:$0xff] %vm615, %v614
      %617 = vrot.lane.b32.xlu0 %v471, 112
      %v618 = vpop.permute.xlu0 %617
      %619 = vrot.lane.b32.xlu0 %v476, 112
      %v620 = vpop.permute.xlu0 %619
      %v622 = vsel %vm340, %v618, 0
      %v625 = vsel %vm340, %v620, 0
      %627 = vmatprep.subr.bf16.mxu0 0
      %628 = vmatpush1.bf16.xpose.msra.mxu0 0
      %629 = vmatprep.subr.bf16.mxu0 0
      %630 = vmatpush1.bf16.xpose.msra.mxu0 0
      %631 = vmatprep.subr.bf16.mxu0 0
      %632 = vmatpush1.bf16.xpose.msra.mxu0 0
      %633 = vmatprep.subr.bf16.mxu0 0
      %634 = vmatpush1.bf16.xpose.msra.mxu0 0
      %635 = vmatprep.subr.bf16.mxu0 0
      %636 = vmatpush1.bf16.xpose.msra.mxu0 0
      %637 = vmatprep.subr.bf16.mxu0 0
      %638 = vmatpush1.bf16.xpose.msra.mxu0 0
      %639 = vmatprep.subr.bf16.mxu0 0
      %640 = vmatpush1.bf16.xpose.msra.mxu0 0
      %641 = vmatprep.subr.bf16.mxu0 0
      %642 = vmatpush1.bf16.xpose.msra.mxu0 %v625
      %643 = vmatprep.subr.bf16.mxu0 0
      %644 = vmatpush2.bf16.xpose.msra.mxu0 0
      %645 = vmatprep.subr.bf16.mxu0 0
      %646 = vmatpush2.bf16.xpose.msra.mxu0 0
      %647 = vmatprep.subr.bf16.mxu0 0
      %648 = vmatpush2.bf16.xpose.msra.mxu0 0
      %649 = vmatprep.subr.bf16.mxu0 0
      %650 = vmatpush2.bf16.xpose.msra.mxu0 0
      %651 = vmatprep.subr.bf16.mxu0 0
      %652 = vmatpush2.bf16.xpose.msra.mxu0 0
      %653 = vmatprep.subr.bf16.mxu0 0
      %654 = vmatpush2.bf16.xpose.msra.mxu0 0
      %655 = vmatprep.subr.bf16.mxu0 0
      %656 = vmatpush2.bf16.xpose.msra.mxu0 0
      %657 = vmatprep.subr.bf16.mxu0 0
      %658 = vmatpush2.bf16.xpose.msra.mxu0 0
      %659 = vmatprep.mubr.bf16.mxu0 0
      %660 = vmatmul.mubr.bf16.gmra.mxu0 %v622
      %v661 = vpop.f32.mrf.mxu0
      %v662 = vadd.f32 %v338, %v661
      %v663 = vpop.f32.mrf.mxu0
      %v664 = vpop.f32.mrf.mxu0
      %v665 = vpop.f32.mrf.mxu0
      %666 = vdwg.mxu0
      %s667 = scalar_lea.vmem [#allocation2], 16
      %v668 = vld [vmem:[%s667] sm:$0xff]
      %v669 = vsel %vm340, %v662, -inf
      %670 = vmax.xlane.f32.xlu0 %v669
      %v671 = vpop.xlane.xlu0 %670
      %v672 = vmax.f32 %v668, %v671
      %v673 = vsub.f32 %v668, %v672
      %v674 = vmul.f32 %v673, 1.442695
      %v675 = vpow.pop %v674
      %677 = vset.pattern.permute.xlu0 0
      %678 = vperm.xlu0 %677, %v672
      %v679 = vpop.permute.xlu0 %678
      %v681 = vsub.f32 %v662, %v679
      %v682 = vmul.f32 %v681, 1.442695
      %v683 = vpow.pop %v682
      %s684 = scalar_lea.vmem [#allocation3], 16
      %v685 = vld [vmem:[%s684] sm:$0xff]
      %v686 = vmul.f32 %v675, %v685
      %v687 = vsel %vm340, %v683, 0.0
      %688 = vadd.xlane.f32.xlu0 %v687
      %v689 = vpop.xlane.xlu0 %688
      %v690 = vadd.f32 %v686, %v689
      %691 = vst.msk [vmem:[%s684] sm:$0xff] %vm409, %v690
      %692 = vst.msk [vmem:[%s667] sm:$0xff] %vm409, %v672
      %v693 = vpack.c.bf16 %v683, %v683
      %694 = vrot.lane.b32.xlu0 %v554, 112
      %v695 = vpop.permute.xlu0 %694
      %v697 = vsel %vm340, %v693, 0
      %v700 = vsel %vm416, %v695, 0
      %702 = vmatprep.subr.bf16.mxu0 0
      %703 = vmatpush1.bf16.msra.mxu0 0
      %704 = vmatprep.subr.bf16.mxu0 0
      %705 = vmatpush1.bf16.msra.mxu0 0
      %706 = vmatprep.subr.bf16.mxu0 0
      %707 = vmatpush1.bf16.msra.mxu0 0
      %708 = vmatprep.subr.bf16.mxu0 0
      %709 = vmatpush1.bf16.msra.mxu0 0
      %710 = vmatprep.subr.bf16.mxu0 0
      %711 = vmatpush1.bf16.msra.mxu0 0
      %712 = vmatprep.subr.bf16.mxu0 0
      %713 = vmatpush1.bf16.msra.mxu0 0
      %714 = vmatprep.subr.bf16.mxu0 0
      %715 = vmatpush1.bf16.msra.mxu0 0
      %716 = vmatprep.subr.bf16.mxu0 0
      %717 = vmatpush1.bf16.msra.mxu0 %v700
      %718 = vmatprep.subr.bf16.mxu0 0
      %719 = vmatpush2.bf16.msra.mxu0 0
      %720 = vmatprep.subr.bf16.mxu0 0
      %721 = vmatpush2.bf16.msra.mxu0 0
      %722 = vmatprep.subr.bf16.mxu0 0
      %723 = vmatpush2.bf16.msra.mxu0 0
      %724 = vmatprep.subr.bf16.mxu0 0
      %725 = vmatpush2.bf16.msra.mxu0 0
      %726 = vmatprep.subr.bf16.mxu0 0
      %727 = vmatpush2.bf16.msra.mxu0 0
      %728 = vmatprep.subr.bf16.mxu0 0
      %729 = vmatpush2.bf16.msra.mxu0 0
      %730 = vmatprep.subr.bf16.mxu0 0
      %731 = vmatpush2.bf16.msra.mxu0 0
      %732 = vmatprep.subr.bf16.mxu0 0
      %733 = vmatpush2.bf16.msra.mxu0 0
      %734 = vmatprep.mubr.bf16.mxu0 0
      %735 = vmatmul.mubr.bf16.gmra.mxu0 %v697
      %v736 = vpop.f32.mrf.mxu0
      %v737 = vadd.f32 0.0, %v736
      %v738 = vpop.f32.mrf.mxu0
      %v739 = vpop.f32.mrf.mxu0
      %v740 = vpop.f32.mrf.mxu0
      %741 = vdwg.mxu0
      %v742 = vld [vmem:[#allocation4] sm:$0xff]
      %744 = vset.pattern.permute.xlu0 0
      %745 = vperm.xlu0 %744, %v675
      %v746 = vpop.permute.xlu0 %745
      %v748 = vmul.f32 %v746, %v742
      %750 = vrot.lane.b32.xlu0 %v737, 16
      %v751 = vpop.permute.xlu0 %750
      %v753 = vadd.f32 %v748, %v751
      %vm754 = vcmask 195712
      %755 = vst.msk [vmem:[#allocation4] sm:$0xff] %vm754, %v753
      %756 = vrot.lane.b32.xlu0 %v471, 104
      %v757 = vpop.permute.xlu0 %756
      %758 = vrot.lane.b32.xlu0 %v476, 104
      %v759 = vpop.permute.xlu0 %758
      %v761 = vsel %vm340, %v757, 0
      %v764 = vsel %vm340, %v759, 0
      %766 = vmatprep.subr.bf16.mxu0 0
      %767 = vmatpush1.bf16.xpose.msra.mxu0 0
      %768 = vmatprep.subr.bf16.mxu0 0
      %769 = vmatpush1.bf16.xpose.msra.mxu0 0
      %770 = vmatprep.subr.bf16.mxu0 0
      %771 = vmatpush1.bf16.xpose.msra.mxu0 0
      %772 = vmatprep.subr.bf16.mxu0 0
      %773 = vmatpush1.bf16.xpose.msra.mxu0 0
      %774 = vmatprep.subr.bf16.mxu0 0
      %775 = vmatpush1.bf16.xpose.msra.mxu0 0
      %776 = vmatprep.subr.bf16.mxu0 0
      %777 = vmatpush1.bf16.xpose.msra.mxu0 0
      %778 = vmatprep.subr.bf16.mxu0 0
      %779 = vmatpush1.bf16.xpose.msra.mxu0 0
      %780 = vmatprep.subr.bf16.mxu0 0
      %781 = vmatpush1.bf16.xpose.msra.mxu0 %v764
      %782 = vmatprep.subr.bf16.mxu0 0
      %783 = vmatpush2.bf16.xpose.msra.mxu0 0
      %784 = vmatprep.subr.bf16.mxu0 0
      %785 = vmatpush2.bf16.xpose.msra.mxu0 0
      %786 = vmatprep.subr.bf16.mxu0 0
      %787 = vmatpush2.bf16.xpose.msra.mxu0 0
      %788 = vmatprep.subr.bf16.mxu0 0
      %789 = vmatpush2.bf16.xpose.msra.mxu0 0
      %790 = vmatprep.subr.bf16.mxu0 0
      %791 = vmatpush2.bf16.xpose.msra.mxu0 0
      %792 = vmatprep.subr.bf16.mxu0 0
      %793 = vmatpush2.bf16.xpose.msra.mxu0 0
      %794 = vmatprep.subr.bf16.mxu0 0
      %795 = vmatpush2.bf16.xpose.msra.mxu0 0
      %796 = vmatprep.subr.bf16.mxu0 0
      %797 = vmatpush2.bf16.xpose.msra.mxu0 0
      %798 = vmatprep.mubr.bf16.mxu0 0
      %799 = vmatmul.mubr.bf16.gmra.mxu0 %v761
      %v800 = vpop.f32.mrf.mxu0
      %v801 = vadd.f32 %v338, %v800
      %v802 = vpop.f32.mrf.mxu0
      %v803 = vpop.f32.mrf.mxu0
      %v804 = vpop.f32.mrf.mxu0
      %805 = vdwg.mxu0
      %s806 = scalar_lea.vmem [#allocation2], 24
      %v807 = vld [vmem:[%s806] sm:$0xff]
      %v808 = vsel %vm340, %v801, -inf
      %809 = vmax.xlane.f32.xlu0 %v808
      %v810 = vpop.xlane.xlu0 %809
      %v811 = vmax.f32 %v807, %v810
      %v812 = vsub.f32 %v807, %v811
      %v813 = vmul.f32 %v812, 1.442695
      %v814 = vpow.pop %v813
      %816 = vset.pattern.permute.xlu0 0
      %817 = vperm.xlu0 %816, %v811
      %v818 = vpop.permute.xlu0 %817
      %v820 = vsub.f32 %v801, %v818
      %v821 = vmul.f32 %v820, 1.442695
      %v822 = vpow.pop %v821
      %s823 = scalar_lea.vmem [#allocation3], 24
      %v824 = vld [vmem:[%s823] sm:$0xff]
      %v825 = vmul.f32 %v814, %v824
      %v826 = vsel %vm340, %v822, 0.0
      %827 = vadd.xlane.f32.xlu0 %v826
      %v828 = vpop.xlane.xlu0 %827
      %v829 = vadd.f32 %v825, %v828
      %830 = vst.msk [vmem:[%s823] sm:$0xff] %vm409, %v829
      %831 = vst.msk [vmem:[%s806] sm:$0xff] %vm409, %v811
      %v832 = vpack.c.bf16 %v822, %v822
      %833 = vrot.lane.b32.xlu0 %v554, 104
      %v834 = vpop.permute.xlu0 %833
      %v836 = vsel %vm340, %v832, 0
      %v839 = vsel %vm416, %v834, 0
      %841 = vmatprep.subr.bf16.mxu0 0
      %842 = vmatpush1.bf16.msra.mxu0 0
      %843 = vmatprep.subr.bf16.mxu0 0
      %844 = vmatpush1.bf16.msra.mxu0 0
      %845 = vmatprep.subr.bf16.mxu0 0
      %846 = vmatpush1.bf16.msra.mxu0 0
      %847 = vmatprep.subr.bf16.mxu0 0
      %848 = vmatpush1.bf16.msra.mxu0 0
      %849 = vmatprep.subr.bf16.mxu0 0
      %850 = vmatpush1.bf16.msra.mxu0 0
      %851 = vmatprep.subr.bf16.mxu0 0
      %852 = vmatpush1.bf16.msra.mxu0 0
      %853 = vmatprep.subr.bf16.mxu0 0
      %854 = vmatpush1.bf16.msra.mxu0 0
      %855 = vmatprep.subr.bf16.mxu0 0
      %856 = vmatpush1.bf16.msra.mxu0 %v839
      %857 = vmatprep.subr.bf16.mxu0 0
      %858 = vmatpush2.bf16.msra.mxu0 0
      %859 = vmatprep.subr.bf16.mxu0 0
      %860 = vmatpush2.bf16.msra.mxu0 0
      %861 = vmatprep.subr.bf16.mxu0 0
      %862 = vmatpush2.bf16.msra.mxu0 0
      %863 = vmatprep.subr.bf16.mxu0 0
      %864 = vmatpush2.bf16.msra.mxu0 0
      %865 = vmatprep.subr.bf16.mxu0 0
      %866 = vmatpush2.bf16.msra.mxu0 0
      %867 = vmatprep.subr.bf16.mxu0 0
      %868 = vmatpush2.bf16.msra.mxu0 0
      %869 = vmatprep.subr.bf16.mxu0 0
      %870 = vmatpush2.bf16.msra.mxu0 0
      %871 = vmatprep.subr.bf16.mxu0 0
      %872 = vmatpush2.bf16.msra.mxu0 0
      %873 = vmatprep.mubr.bf16.mxu0 0
      %874 = vmatmul.mubr.bf16.gmra.mxu0 %v836
      %v875 = vpop.f32.mrf.mxu0
      %v876 = vadd.f32 0.0, %v875
      %v877 = vpop.f32.mrf.mxu0
      %v878 = vpop.f32.mrf.mxu0
      %v879 = vpop.f32.mrf.mxu0
      %880 = vdwg.mxu0
      %v881 = vld [vmem:[#allocation4] sm:$0xff]
      %883 = vset.pattern.permute.xlu0 0
      %884 = vperm.xlu0 %883, %v814
      %v885 = vpop.permute.xlu0 %884
      %v887 = vmul.f32 %v885, %v881
      %889 = vrot.lane.b32.xlu0 %v876, 24
      %v890 = vpop.permute.xlu0 %889
      %v892 = vadd.f32 %v887, %v890
      %vm893 = vcmask 261312
      %894 = vst.msk [vmem:[#allocation4] sm:$0xff] %vm893, %v892
      // Predicated region
      $region41: #{graformer_forward.38} parent=35 // pred_check
        %p895 = pneg %p314
      $region42: #{graformer_forward.38} parent=35 // pred_check_branch
        %897 = sbr.rel (%p895) target = $region44
      $region43: #{graformer_forward.38} parent=35 // pred_region
        %v898 = vld [vmem:[#allocation4] sm:$0xff]
        %v899 = vld [vmem:[#allocation3] sm:$0xff]
        %901 = vset.pattern.permute.xlu0 0
        %902 = vperm.xlu0 %901, %v899
        %v903 = vpop.permute.xlu0 %902
        %v905 = vrcp.pop %v903
        %v906 = vmul.f32 %v898, %v905
        %907 = vst.msk [vmem:[#allocation4] sm:$0xff] %vm340, %v906
        %v908 = vld [vmem:[#allocation4] sm:$0xff]
        %v909 = vld [vmem:[%s542] sm:$0xff]
        %911 = vset.pattern.permute.xlu0 0
        %912 = vperm.xlu0 %911, %v909
        %v913 = vpop.permute.xlu0 %912
        %v915 = vrcp.pop %v913
        %v916 = vmul.f32 %v908, %v915
        %917 = vst.msk [vmem:[#allocation4] sm:$0xff] %vm615, %v916
        %v918 = vld [vmem:[#allocation4] sm:$0xff]
        %v919 = vld [vmem:[%s684] sm:$0xff]
        %921 = vset.pattern.permute.xlu0 0
        %922 = vperm.xlu0 %921, %v919
        %v923 = vpop.permute.xlu0 %922
        %v925 = vrcp.pop %v923
        %v926 = vmul.f32 %v918, %v925
        %927 = vst.msk [vmem:[#allocation4] sm:$0xff] %vm754, %v926
        %v928 = vld [vmem:[#allocation4] sm:$0xff]
        %v929 = vld [vmem:[%s823] sm:$0xff]
        %931 = vset.pattern.permute.xlu0 0
        %932 = vperm.xlu0 %931, %v929
        %v933 = vpop.permute.xlu0 %932
        %v935 = vrcp.pop %v933
        %v936 = vmul.f32 %v928, %v935
        %937 = vst.msk [vmem:[#allocation4] sm:$0xff] %vm893, %v936
        %v938 = vld [vmem:[#allocation4] sm:$0xff]
        %v939 = vpack.c.bf16 %v938, %v938
        %vm940 = vcmask 257024
        %941 = vst.msk [vmem:[%s311] sm:$0xf] %vm940, %v939
      $region44: #{graformer_forward.38} parent=35 // pred_fallthru
        _
      %p942 = scmp.lt.s32.totalorder %s20, 1
      %s943 = scalar_select %p942, %s20, 1
      %p944 = scmp.lt.s32.totalorder %s21, 0
      %s945 = scalar_select %p944, %s21, 0
      %s946 = sadd.s32 %s945, %s943
      %s947 = smul.addr %s946, 4
      %s948 = scalar_lea.vmem %s4, %s947
      // Predicated region
      $region45: #{graformer_forward.38} parent=35 // pred_check
        %p949 = pneg %p166
      $region46: #{graformer_forward.38} parent=35 // pred_check_branch
        %951 = sbr.rel (%p949) target = $region48
      $region47: #{graformer_forward.38} parent=35 // pred_region
        _
      $region48: #{graformer_forward.38} parent=35 // pred_fallthru
        _
    $region36: #{graformer_forward.38} parent=5 // pred_fallthru
      _
    %p952 = scmp.le.s32.totalorder 2, %s10
    // Predicated region
    $region49: #{graformer_forward.38} parent=5 // pred_check
      %p953 = pneg %p952
    $region50: #{graformer_forward.38} parent=5 // pred_check_branch
      %955 = sbr.rel (%p953) target = $region52
    $region51: #{graformer_forward.38} parent=5 // pred_region
      %s956 = ssub.s32 %s10, 2
      // Predicated region
      $region53: #{graformer_forward.38} parent=51 // pred_check
        %p957 = pneg %p172
      $region54: #{graformer_forward.38} parent=51 // pred_check_branch
        %959 = sbr.rel (%p957) target = $region56
      $region55: #{graformer_forward.38} parent=51 // pred_region
        %p960 = scmp.lt.s32.totalorder %s23, 1
        %s961 = scalar_select %p960, %s23, 1
        %p962 = scmp.lt.s32.totalorder %s24, 0
        %s963 = scalar_select %p962, %s24, 0
        %s964 = sadd.s32 %s963, %s961
        %s965 = smul.addr %s964, 4
        %s966 = scalar_lea.vmem %s4, %s965
      $region56: #{graformer_forward.38} parent=51 // pred_fallthru
        _
    $region52: #{graformer_forward.38} parent=5 // pred_fallthru
      _
  $region6: #{graformer_forward.38} parent=0 // loop_footer
    %s14 = sadd.s32 1, %s10
  $region7: #{graformer_forward.38} parent=0 // loop_footer_branch
    %9 = sbr.rel target = $region3
  $region8: #{graformer_forward.38} parent=0 // loop_exit
    _

// kernel: graformer_forward.40
$region0: #{graformer_forward.40}
  #allocation0 [shape = 'u32[]', space=smem, size = 0x4, offset = 0x4, fixed_abs, tag = 'smem constant byte address 0x4 - core index']
  #allocation1 [shape = 'u32[144,128]{1,0:T(1,128)}', space=vmem, size = 0x12000, scoped, tag = 'internal scratch']
  #allocation2 [shape = 'f32[16,32]{1,0:T(8,128)}', space=vmem, size = 0x2000, scoped, tag = 'scratch operand']
  %s0 = inlined_call_operand.vmem [shape: bf16[16,32], index: 0, kind: input, shape index: {}]
  %s1 = inlined_call_operand.vmem [shape: bf16[32,64], index: 1, kind: input, shape index: {}]
  %s2 = inlined_call_operand.vmem [shape: f32[1,64], index: 2, kind: input, shape index: {}]
  %s3 = inlined_call_operand.vmem [shape: bf16[64,32], index: 3, kind: input, shape index: {}]
  %s4 = inlined_call_operand.vmem [shape: f32[1,32], index: 4, kind: input, shape index: {}]
  %s5 = inlined_call_operand.vmem [shape: f32[1,32], index: 5, kind: input, shape index: {}]
  %s6 = inlined_call_operand.vmem [shape: f32[1,32], index: 6, kind: input, shape index: {}]
  %s7 = inlined_call_operand.vmem [shape: bf16[16,32], index: 7, kind: output, shape index: {}]
  %s8 = sld [smem:[#allocation0]]
  $region46: #{graformer_forward.40} parent=0
    _
  %s10 = ssub.s32 1, %s8
  %s11 = scalar_select 0, %s10, %s8
  // Predicated region
  $region2: #{graformer_forward.40} parent=0 // pred_check
    _
  $region3: #{graformer_forward.40} parent=0 // pred_check_branch
    %13 = sbr.rel (0) target = $region5
  $region4: #{graformer_forward.40} parent=0 // pred_region
    _
  $region5: #{graformer_forward.40} parent=0 // pred_fallthru
    _
  // Predicated region
  $region6: #{graformer_forward.40} parent=0 // pred_check
    _
  $region7: #{graformer_forward.40} parent=0 // pred_check_branch
    %15 = sbr.rel (0) target = $region9
  $region8: #{graformer_forward.40} parent=0 // pred_region
    _
  $region9: #{graformer_forward.40} parent=0 // pred_fallthru
    _
  // Predicated region
  $region10: #{graformer_forward.40} parent=0 // pred_check
    _
  $region11: #{graformer_forward.40} parent=0 // pred_check_branch
    %17 = sbr.rel (0) target = $region13
  $region12: #{graformer_forward.40} parent=0 // pred_region
    _
  $region13: #{graformer_forward.40} parent=0 // pred_fallthru
    _
  // Predicated region
  $region14: #{graformer_forward.40} parent=0 // pred_check
    _
  $region15: #{graformer_forward.40} parent=0 // pred_check_branch
    %19 = sbr.rel (0) target = $region17
  $region16: #{graformer_forward.40} parent=0 // pred_region
    _
  $region17: #{graformer_forward.40} parent=0 // pred_fallthru
    _
  // Predicated region
  $region18: #{graformer_forward.40} parent=0 // pred_check
    _
  $region19: #{graformer_forward.40} parent=0 // pred_check_branch
    %21 = sbr.rel (0) target = $region21
  $region20: #{graformer_forward.40} parent=0 // pred_region
    _
  $region21: #{graformer_forward.40} parent=0 // pred_fallthru
    _
  // Predicated region
  $region22: #{graformer_forward.40} parent=0 // pred_check
    _
  $region23: #{graformer_forward.40} parent=0 // pred_check_branch
    %23 = sbr.rel (0) target = $region25
  $region24: #{graformer_forward.40} parent=0 // pred_region
    _
  $region25: #{graformer_forward.40} parent=0 // pred_fallthru
    _
  // Predicated region
  $region26: #{graformer_forward.40} parent=0 // pred_check
    _
  $region27: #{graformer_forward.40} parent=0 // pred_check_branch
    %25 = sbr.rel (0) target = $region29
  $region28: #{graformer_forward.40} parent=0 // pred_region
    _
  $region29: #{graformer_forward.40} parent=0 // pred_fallthru
    _
  %p27 = scmp.eq.s32.totalorder 0, 0
  // Predicated region
  $region30: #{graformer_forward.40} parent=0 // pred_check
    %p28 = pneg %p27
  $region31: #{graformer_forward.40} parent=0 // pred_check_branch
    %30 = sbr.rel (%p28) target = $region33
  $region32: #{graformer_forward.40} parent=0 // pred_region
    %vm31 = vcmask 261120
    %32 = vst.msk [vmem:[#allocation2] sm:$0xff] %vm31, 0.0
    %33 = vst.msk [vmem:[#allocation2 + $0x8] sm:$0xff] %vm31, 0.0
  $region33: #{graformer_forward.40} parent=0 // pred_fallthru
    _
  %v34 = vld [vmem:[%s0] sm:$0xf]
  %v35 = vld [vmem:[%s0 + $0x4] sm:$0xf]
  %v36 = vld [vmem:[%s1] sm:$0xf]
  %v37 = vld [vmem:[%s1 + $0x4] sm:$0xf]
  %v38 = vld [vmem:[%s1 + $0x8] sm:$0xf]
  %v39 = vld [vmem:[%s1 + $0xc] sm:$0xf]
  %v40 = vld [vmem:[%s2] sm:$0x1]
  %v42 = vlaneseq
  %v43 = vshrl.u32 %v42, 7
  %v44 = vsub.s32 0, %v43
  %v45 = vrot.slane %v40, %v44
  %v49 = vunpack.c.l.b16 %v34
  %v50 = vunpack.c.l.b16 %v35
  %v51 = vpack.c.b16 %v50, %v49
  %v56 = vunpack.c.l.b16 %v36
  %v57 = vunpack.c.l.b16 %v37
  %v58 = vunpack.c.l.b16 %v38
  %v59 = vunpack.c.l.b16 %v39
  %v60 = vpack.c.b16 %v57, %v56
  %v61 = vpack.c.b16 %v59, %v58
  %vm64 = vcmask 261120
  %v66 = vsel %vm64, %v51, 0
  %68 = vmatprep.subr.bf16.mxu0 0
  %69 = vmatpush1.bf16.msra.mxu0 0
  %70 = vmatprep.subr.bf16.mxu0 0
  %71 = vmatpush1.bf16.msra.mxu0 0
  %72 = vmatprep.subr.bf16.mxu0 0
  %73 = vmatpush1.bf16.msra.mxu0 0
  %74 = vmatprep.subr.bf16.mxu0 0
  %75 = vmatpush1.bf16.msra.mxu0 0
  %76 = vmatprep.subr.bf16.mxu0 0
  %77 = vmatpush1.bf16.msra.mxu0 0
  %78 = vmatprep.subr.bf16.mxu0 0
  %79 = vmatpush1.bf16.msra.mxu0 0
  %80 = vmatprep.subr.bf16.mxu0 0
  %81 = vmatpush1.bf16.msra.mxu0 %v61
  %82 = vmatprep.subr.bf16.mxu0 0
  %83 = vmatpush1.bf16.msra.mxu0 %v60
  %84 = vmatprep.subr.bf16.mxu0 0
  %85 = vmatpush2.bf16.msra.mxu0 0
  %86 = vmatprep.subr.bf16.mxu0 0
  %87 = vmatpush2.bf16.msra.mxu0 0
  %88 = vmatprep.subr.bf16.mxu0 0
  %89 = vmatpush2.bf16.msra.mxu0 0
  %90 = vmatprep.subr.bf16.mxu0 0
  %91 = vmatpush2.bf16.msra.mxu0 0
  %92 = vmatprep.subr.bf16.mxu0 0
  %93 = vmatpush2.bf16.msra.mxu0 0
  %94 = vmatprep.subr.bf16.mxu0 0
  %95 = vmatpush2.bf16.msra.mxu0 0
  %96 = vmatprep.subr.bf16.mxu0 0
  %97 = vmatpush2.bf16.msra.mxu0 0
  %98 = vmatprep.subr.bf16.mxu0 0
  %99 = vmatpush2.bf16.msra.mxu0 0
  %100 = vmatprep.mubr.bf16.mxu0 0
  %101 = vmatmul.mubr.bf16.gmra.mxu0 %v66
  %v102 = vpop.f32.mrf.mxu0
  %v103 = vadd.f32 %v45, %v102
  %v104 = vpop.f32.mrf.mxu0
  %v105 = vpop.f32.mrf.mxu0
  %v106 = vadd.f32 %v45, %v105
  %v107 = vpop.f32.mrf.mxu0
  %108 = vdwg.mxu0
  %v109 = vmul.f32 %v103, 0.5
  %v110 = vmul.f32 %v106, 0.5
  %v111 = vmul.f32 %v103, 0.70710677
  %v112 = vmul.f32 %v106, 0.70710677
  %v113 = verf.f32.pop %v111
  %v114 = verf.f32.pop %v112
  %v115 = vadd.f32 %v113, 1.0
  %v116 = vadd.f32 %v114, 1.0
  %v117 = vmul.f32 %v109, %v115
  %v118 = vmul.f32 %v110, %v116
  %v119 = vld [vmem:[#allocation2] sm:$0xff]
  %v120 = vld [vmem:[#allocation2 + $0x8] sm:$0xff]
  %v121 = vpack.c.bf16 %v118, %v117
  %v122 = vld [vmem:[%s3] sm:$0xf]
  %v123 = vld [vmem:[%s3 + $0x4] sm:$0xf]
  %v124 = vld [vmem:[%s3 + $0x8] sm:$0xf]
  %v125 = vld [vmem:[%s3 + $0xc] sm:$0xf]
  %v126 = vld [vmem:[%s3 + $0x10] sm:$0xf]
  %v127 = vld [vmem:[%s3 + $0x14] sm:$0xf]
  %v128 = vld [vmem:[%s3 + $0x18] sm:$0xf]
  %v129 = vld [vmem:[%s3 + $0x1c] sm:$0xf]
  %v138 = vunpack.c.l.b16 %v122
  %v139 = vunpack.c.l.b16 %v123
  %v140 = vunpack.c.l.b16 %v124
  %v141 = vunpack.c.l.b16 %v125
  %v142 = vunpack.c.l.b16 %v126
  %v143 = vunpack.c.l.b16 %v127
  %v144 = vunpack.c.l.b16 %v128
  %v145 = vunpack.c.l.b16 %v129
  %v146 = vpack.c.b16 %v139, %v138
  %v147 = vpack.c.b16 %v141, %v140
  %v148 = vpack.c.b16 %v143, %v142
  %v149 = vpack.c.b16 %v145, %v144
  %vm154 = vcmask 523264
  %v156 = vsel %vm154, %v121, 0
  %158 = vmatprep.subr.bf16.mxu0 0
  %159 = vmatpush1.bf16.msra.mxu0 0
  %160 = vmatprep.subr.bf16.mxu0 0
  %161 = vmatpush1.bf16.msra.mxu0 0
  %162 = vmatprep.subr.bf16.mxu0 0
  %163 = vmatpush1.bf16.msra.mxu0 0
  %164 = vmatprep.subr.bf16.mxu0 0
  %165 = vmatpush1.bf16.msra.mxu0 0
  %166 = vmatprep.subr.bf16.mxu0 0
  %167 = vmatpush1.bf16.msra.mxu0 %v149
  %168 = vmatprep.subr.bf16.mxu0 0
  %169 = vmatpush1.bf16.msra.mxu0 %v148
  %170 = vmatprep.subr.bf16.mxu0 0
  %171 = vmatpush1.bf16.msra.mxu0 %v147
  %172 = vmatprep.subr.bf16.mxu0 0
  %173 = vmatpush1.bf16.msra.mxu0 %v146
  %174 = vmatprep.subr.bf16.mxu0 0
  %175 = vmatpush2.bf16.msra.mxu0 0
  %176 = vmatprep.subr.bf16.mxu0 0
  %177 = vmatpush2.bf16.msra.mxu0 0
  %178 = vmatprep.subr.bf16.mxu0 0
  %179 = vmatpush2.bf16.msra.mxu0 0
  %180 = vmatprep.subr.bf16.mxu0 0
  %181 = vmatpush2.bf16.msra.mxu0 0
  %182 = vmatprep.subr.bf16.mxu0 0
  %183 = vmatpush2.bf16.msra.mxu0 0
  %184 = vmatprep.subr.bf16.mxu0 0
  %185 = vmatpush2.bf16.msra.mxu0 0
  %186 = vmatprep.subr.bf16.mxu0 0
  %187 = vmatpush2.bf16.msra.mxu0 0
  %188 = vmatprep.subr.bf16.mxu0 0
  %189 = vmatpush2.bf16.msra.mxu0 0
  %190 = vmatprep.mubr.bf16.mxu0 0
  %191 = vmatmul.mubr.bf16.gmra.mxu0 %v156
  %v192 = vpop.f32.mrf.mxu0
  %v193 = vadd.f32 0.0, %v192
  %v194 = vpop.f32.mrf.mxu0
  %v195 = vpop.f32.mrf.mxu0
  %v196 = vadd.f32 0.0, %v195
  %v197 = vpop.f32.mrf.mxu0
  %198 = vdwg.mxu0
  %v199 = vadd.f32 %v119, %v193
  %v200 = vadd.f32 %v120, %v196
  %201 = vst.msk [vmem:[#allocation2] sm:$0xff] %vm64, %v199
  %202 = vst.msk [vmem:[#allocation2 + $0x8] sm:$0xff] %vm64, %v200
  // Predicated region
  $region34: #{graformer_forward.40} parent=0 // pred_check
    %p203 = pneg %p27
  $region35: #{graformer_forward.40} parent=0 // pred_check_branch
    %205 = sbr.rel (%p203) target = $region37
  $region36: #{graformer_forward.40} parent=0 // pred_region
    %v206 = vld [vmem:[#allocation2] sm:$0xff]
    %v207 = vld [vmem:[#allocation2 + $0x8] sm:$0xff]
    %v208 = vld [vmem:[%s4] sm:$0x1]
    %v210 = vlaneseq
    %v211 = vshrl.u32 %v210, 7
    %v212 = vsub.s32 0, %v211
    %v213 = vrot.slane %v208, %v212
    %v215 = vadd.f32 %v206, %v213
    %v216 = vadd.f32 %v207, %v213
    %v217 = vunpack.c.l.bf16 %v34
    %v218 = vunpack.c.l.bf16 %v35
    %v219 = vadd.f32 %v215, %v217
    %v220 = vadd.f32 %v216, %v218
    %v221 = vsel %vm64, %v219, 0.0
    %222 = vadd.xlane.f32.xlu0 %v221
    %v223 = vpop.xlane.xlu0 %222
    %v224 = vsel %vm64, %v220, 0.0
    %225 = vadd.xlane.f32.xlu0 %v224
    %v226 = vpop.xlane.xlu0 %225
    %v227 = vrcp.pop 32.0
    %v228 = vmul.f32 %v223, %v227
    %v229 = vmul.f32 %v226, %v227
    %v230 = vsub.f32 %v219, %v228
    %v231 = vsub.f32 %v220, %v229
    %v232 = vmul.f32 %v230, %v230
    %v233 = vmul.f32 %v231, %v231
    %v234 = vsel %vm64, %v232, 0.0
    %235 = vadd.xlane.f32.xlu0 %v234
    %v236 = vpop.xlane.xlu0 %235
    %v237 = vsel %vm64, %v233, 0.0
    %238 = vadd.xlane.f32.xlu0 %v237
    %v239 = vpop.xlane.xlu0 %238
    %v240 = vmul.f32 %v236, %v227
    %v241 = vmul.f32 %v239, %v227
    %v242 = vadd.f32 %v240, 1e-05
    %v243 = vadd.f32 %v241, 1e-05
    %v244 = vrsqrt.pop %v242
    %v245 = vrsqrt.pop %v243
    %v246 = vmul.f32 %v230, %v244
    %v247 = vmul.f32 %v231, %v245
    %v248 = vld [vmem:[%s5] sm:$0x1]
    %v250 = vlaneseq
    %v251 = vshrl.u32 %v250, 7
    %v252 = vsub.s32 0, %v251
    %v253 = vrot.slane %v248, %v252
    %v255 = vmul.f32 %v246, %v253
    %v256 = vmul.f32 %v247, %v253
    %v257 = vld [vmem:[%s6] sm:$0x1]
    %v259 = vlaneseq
    %v260 = vshrl.u32 %v259, 7
    %v261 = vsub.s32 0, %v260
    %v262 = vrot.slane %v257, %v261
    %v264 = vadd.f32 %v255, %v262
    %v265 = vadd.f32 %v256, %v262
    %v266 = vpack.c.bf16 %v265, %v264
    %v268 = vunpack.c.l.b16 %v266
    %v269 = vunpack.c.h.b16 %v266
    %v270 = vpack.c.b16 %v268, %v268
    %v271 = vpack.c.b16 %v269, %v269
    %vm274 = vcmask 257024
    %275 = vst.msk [vmem:[%s7] sm:$0xf] %vm274, %v270
    %276 = vst.msk [vmem:[%s7 + $0x4] sm:$0xf] %vm274, %v271
  $region37: #{graformer_forward.40} parent=0 // pred_fallthru
    _
  // Predicated region
  $region38: #{graformer_forward.40} parent=0 // pred_check
    _
  $region39: #{graformer_forward.40} parent=0 // pred_check_branch
    %278 = sbr.rel (0) target = $region41
  $region40: #{graformer_forward.40} parent=0 // pred_region
    _
  $region41: #{graformer_forward.40} parent=0 // pred_fallthru
    _
  // Predicated region
  $region42: #{graformer_forward.40} parent=0 // pred_check
    _
  $region43: #{graformer_forward.40} parent=0 // pred_check_branch
    %280 = sbr.rel (0) target = $region45
  $region44: #{graformer_forward.40} parent=0 // pred_region
    _
  $region45: #{graformer_forward.40} parent=0 // pred_fallthru
    _

// kernel: graformer_forward.69
$region0: #{graformer_forward.69}
  #allocation0 [shape = 'u32[]', space=smem, size = 0x4, offset = 0x4, fixed_abs, tag = 'smem constant byte address 0x4 - core index']
  #allocation1 [shape = 'u32[144,128]{1,0:T(1,128)}', space=vmem, size = 0x12000, scoped, tag = 'internal scratch']
  #allocation2 [shape = 'f32[16,128]{1,0:T(8,128)}', space=vmem, size = 0x2000, scoped, tag = 'scratch operand']
  %s0 = inlined_call_operand.vmem [shape: bf16[16,32], index: 0, kind: input, shape index: {}]
  %s1 = inlined_call_operand.vmem [shape: bf16[16,32], index: 1, kind: input, shape index: {}]
  %s2 = inlined_call_operand.vmem [shape: bf16[32,128], index: 2, kind: input, shape index: {}]
  %s3 = inlined_call_operand.vmem [shape: f32[1,128], index: 3, kind: input, shape index: {}]
  %s4 = inlined_call_operand.hbm [shape: f32[16,128], index: 4, kind: output, shape index: {}]
  %s5 = sld [smem:[#allocation0]]
  $region34: #{graformer_forward.69} parent=0
    _
  %s7 = ssub.s32 1, %s5
  %s8 = scalar_select 0, %s7, %s5
  $region1: #{graformer_forward.69} parent=0
    #allocation3 [shape = 'u8[8192]{0}', space=vmem, size = 0x2000, scoped, tag = 'output window, operand 0, single buffered']
    #allocation4 [shape = 's32[1]{0}', space=sflag, size = 0x4, scoped, tag = 'scoped memory for graformer_forward.69']
    %9 = vsyncpa [#allocation4], 0
    // Predicated region
    $region2: #{graformer_forward.69} parent=1 // pred_check
      _
    $region3: #{graformer_forward.69} parent=1 // pred_check_branch
      %11 = sbr.rel (0) target = $region5
    $region4: #{graformer_forward.69} parent=1 // pred_region
      _
    $region5: #{graformer_forward.69} parent=1 // pred_fallthru
      _
    // Predicated region
    $region6: #{graformer_forward.69} parent=1 // pred_check
      _
    $region7: #{graformer_forward.69} parent=1 // pred_check_branch
      %13 = sbr.rel (0) target = $region9
    $region8: #{graformer_forward.69} parent=1 // pred_region
      _
    $region9: #{graformer_forward.69} parent=1 // pred_fallthru
      _
    // Predicated region
    $region10: #{graformer_forward.69} parent=1 // pred_check
      _
    $region11: #{graformer_forward.69} parent=1 // pred_check_branch
      %15 = sbr.rel (0) target = $region13
    $region12: #{graformer_forward.69} parent=1 // pred_region
      _
    $region13: #{graformer_forward.69} parent=1 // pred_fallthru
      _
    // Predicated region
    $region14: #{graformer_forward.69} parent=1 // pred_check
      _
    $region15: #{graformer_forward.69} parent=1 // pred_check_branch
      %17 = sbr.rel (0) target = $region17
    $region16: #{graformer_forward.69} parent=1 // pred_region
      _
    $region17: #{graformer_forward.69} parent=1 // pred_fallthru
      _
    %p19 = scmp.eq.s32.totalorder 0, 0
    // Predicated region
    $region18: #{graformer_forward.69} parent=1 // pred_check
      %p20 = pneg %p19
    $region19: #{graformer_forward.69} parent=1 // pred_check_branch
      %22 = sbr.rel (%p20) target = $region21
    $region20: #{graformer_forward.69} parent=1 // pred_region
      %23 = vst [vmem:[#allocation2] sm:$0xff] 0.0
      %24 = vst [vmem:[#allocation2 + $0x8] sm:$0xff] 0.0
    $region21: #{graformer_forward.69} parent=1 // pred_fallthru
      _
    %v25 = vld [vmem:[%s0] sm:$0xf]
    %v26 = vld [vmem:[%s0 + $0x4] sm:$0xf]
    %v27 = vld [vmem:[%s1] sm:$0xf]
    %v28 = vld [vmem:[%s1 + $0x4] sm:$0xf]
    %v29 = vadd.bf16 %v25, %v27
    %v30 = vadd.bf16 %v26, %v28
    %v31 = vld [vmem:[#allocation2] sm:$0xff]
    %v32 = vld [vmem:[#allocation2 + $0x8] sm:$0xff]
    %v33 = vld [vmem:[%s2] sm:$0xf]
    %v34 = vld [vmem:[%s2 + $0x4] sm:$0xf]
    %v35 = vld [vmem:[%s2 + $0x8] sm:$0xf]
    %v36 = vld [vmem:[%s2 + $0xc] sm:$0xf]
    %v39 = vunpack.c.l.b16 %v29
    %v40 = vunpack.c.l.b16 %v30
    %v41 = vpack.c.b16 %v40, %v39
    %v46 = vunpack.c.l.b16 %v33
    %v47 = vunpack.c.l.b16 %v34
    %v48 = vunpack.c.l.b16 %v35
    %v49 = vunpack.c.l.b16 %v36
    %v50 = vpack.c.b16 %v47, %v46
    %v51 = vpack.c.b16 %v49, %v48
    %vm54 = vcmask 261120
    %v56 = vsel %vm54, %v41, 0
    %58 = vmatprep.subr.bf16.mxu0 0
    %59 = vmatpush1.bf16.msra.mxu0 0
    %60 = vmatprep.subr.bf16.mxu0 0
    %61 = vmatpush1.bf16.msra.mxu0 0
    %62 = vmatprep.subr.bf16.mxu0 0
    %63 = vmatpush1.bf16.msra.mxu0 0
    %64 = vmatprep.subr.bf16.mxu0 0
    %65 = vmatpush1.bf16.msra.mxu0 0
    %66 = vmatprep.subr.bf16.mxu0 0
    %67 = vmatpush1.bf16.msra.mxu0 0
    %68 = vmatprep.subr.bf16.mxu0 0
    %69 = vmatpush1.bf16.msra.mxu0 0
    %70 = vmatprep.subr.bf16.mxu0 0
    %71 = vmatpush1.bf16.msra.mxu0 %v51
    %72 = vmatprep.subr.bf16.mxu0 0
    %73 = vmatpush1.bf16.msra.mxu0 %v50
    %74 = vmatprep.subr.bf16.mxu0 0
    %75 = vmatpush2.bf16.msra.mxu0 0
    %76 = vmatprep.subr.bf16.mxu0 0
    %77 = vmatpush2.bf16.msra.mxu0 0
    %78 = vmatprep.subr.bf16.mxu0 0
    %79 = vmatpush2.bf16.msra.mxu0 0
    %80 = vmatprep.subr.bf16.mxu0 0
    %81 = vmatpush2.bf16.msra.mxu0 0
    %82 = vmatprep.subr.bf16.mxu0 0
    %83 = vmatpush2.bf16.msra.mxu0 0
    %84 = vmatprep.subr.bf16.mxu0 0
    %85 = vmatpush2.bf16.msra.mxu0 0
    %86 = vmatprep.subr.bf16.mxu0 0
    %87 = vmatpush2.bf16.msra.mxu0 0
    %88 = vmatprep.subr.bf16.mxu0 0
    %89 = vmatpush2.bf16.msra.mxu0 0
    %90 = vmatprep.mubr.bf16.mxu0 0
    %91 = vmatmul.mubr.bf16.gmra.mxu0 %v56
    %v92 = vpop.f32.mrf.mxu0
    %v93 = vadd.f32 0.0, %v92
    %v94 = vpop.f32.mrf.mxu0
    %v95 = vpop.f32.mrf.mxu0
    %v96 = vadd.f32 0.0, %v95
    %v97 = vpop.f32.mrf.mxu0
    %98 = vdwg.mxu0
    %v99 = vadd.f32 %v31, %v93
    %v100 = vadd.f32 %v32, %v96
    %101 = vst [vmem:[#allocation2] sm:$0xff] %v99
    %102 = vst [vmem:[#allocation2 + $0x8] sm:$0xff] %v100
    // Predicated region
    $region22: #{graformer_forward.69} parent=1 // pred_check
      %p103 = pneg %p19
    $region23: #{graformer_forward.69} parent=1 // pred_check_branch
      %105 = sbr.rel (%p103) target = $region25
    $region24: #{graformer_forward.69} parent=1 // pred_region
      %v106 = vld [vmem:[#allocation2] sm:$0xff]
      %v107 = vld [vmem:[#allocation2 + $0x8] sm:$0xff]
      %v108 = vld [vmem:[%s3] sm:$0x1]
      %v110 = vlaneseq
      %v111 = vshrl.u32 %v110, 7
      %v112 = vsub.s32 0, %v111
      %v113 = vrot.slane %v108, %v112
      %v115 = vadd.f32 %v106, %v113
      %v116 = vadd.f32 %v107, %v113
      %117 = vst [vmem:[#allocation3] sm:$0xff] %v115
      %118 = vst [vmem:[#allocation3 + $0x8] sm:$0xff] %v116
    $region25: #{graformer_forward.69} parent=1 // pred_fallthru
      _
    // Predicated region
    $region26: #{graformer_forward.69} parent=1 // pred_check
      _
    $region27: #{graformer_forward.69} parent=1 // pred_check_branch
      %120 = sbr.rel (0) target = $region29
    $region28: #{graformer_forward.69} parent=1 // pred_region
      %s122 = ssub.s32 256, 256
      %123 = vsyncadd [#allocation4], %s122
      %s124 = sshll.u32 [#allocation3], 4
      %s125 = int_to_ptr.vmem [resolvable:$true] %s124
      %130 = dma.vmem_to_hbm [thread:$0]  %s125, 256, %s4, [#allocation4], 128, 128, 8
    $region29: #{graformer_forward.69} parent=1 // pred_fallthru
      _
    // Predicated region
    $region30: #{graformer_forward.69} parent=1 // pred_check
      _
    $region31: #{graformer_forward.69} parent=1 // pred_check_branch
      %132 = sbr.rel (0) target = $region33
    $region32: #{graformer_forward.69} parent=1 // pred_region
      %133 = dma.done [#allocation4], 256
    $region33: #{graformer_forward.69} parent=1 // pred_fallthru
      _
    %134 = vsyncpa [#allocation4], 1

// kernel: graformer_forward.50
$region0: #{graformer_forward.50}
  #allocation0 [shape = 'u32[]', space=smem, size = 0x4, offset = 0x4, fixed_abs, tag = 'smem constant byte address 0x4 - core index']
  #allocation1 [shape = 'u32[144,128]{1,0:T(1,128)}', space=vmem, size = 0x12000, scoped, tag = 'internal scratch']
  #allocation2 [shape = 'f32[4,8,1]{2,1,0:T(8,128)}', space=vmem, size = 0x4000, scoped, tag = 'scratch operand']
  #allocation3 [shape = 'f32[4,8,1]{2,1,0:T(8,128)}', space=vmem, size = 0x4000, scoped, tag = 'scratch operand']
  #allocation4 [shape = 'f32[8,32]{1,0:T(8,128)}', space=vmem, size = 0x1000, scoped, tag = 'scratch operand']
  %s0 = inlined_call_operand.vmem [shape: f32[2,1,8], index: 0, kind: input, shape index: {}]
  %s1 = inlined_call_operand.vmem [shape: bf16[2,8,32], index: 1, kind: input, shape index: {}]
  %s2 = inlined_call_operand.vmem [shape: bf16[2,8,32], index: 2, kind: input, shape index: {}]
  %s3 = inlined_call_operand.vmem [shape: bf16[2,8,32], index: 3, kind: input, shape index: {}]
  %s4 = inlined_call_operand.vmem [shape: bf16[2,8,32], index: 4, kind: output, shape index: {}]
  %s5 = sld [smem:[#allocation0]]
  $region57: #{graformer_forward.50} parent=0
    _
  %s7 = ssub.s32 1, %s5
  %s8 = scalar_select 0, %s7, %s5
  loop: start=0, step=1, limit=4
  $region2: #{graformer_forward.50} parent=0 // loop_pre_header
    _
  $region3: #{graformer_forward.50} parent=0 // loop_header
    %s10 = sphi 0, %s14
    %p11 = scmp.ge.s32.totalorder %s10, 4
    %s17 = sphi 0, %s36
    %s18 = sphi 0, %s32
    %s19 = sphi 0, %s28
    %s20 = sphi 0, %s17
    %s21 = sphi 0, %s18
    %s22 = sphi 0, %s19
    %s23 = sphi 0, %s20
    %s24 = sphi 0, %s21
    %s25 = sphi 0, %s22
    %s41 = sphi 0, %s43
    %s44 = sphi 0, %s41
    %s45 = sphi 0, %s44
    %s61 = sphi 0, %s45
    %s69 = sphi 0, %s71
    %s72 = sphi 0, %s69
    %s73 = sphi 0, %s72
    %s89 = sphi 0, %s73
    %s97 = sphi 0, %s99
    %s100 = sphi 0, %s97
    %s101 = sphi 0, %s100
    %s117 = sphi 0, %s101
    %s125 = sphi 0, %s127
    %s128 = sphi 0, %s125
    %s129 = sphi 0, %s128
    %s145 = sphi 0, %s129
    %s153 = sphi 0, %s155
    %s156 = sphi 0, %s153
    %s157 = sphi 0, %s156
    %s173 = sphi 0, %s157
  $region4: #{graformer_forward.50} parent=0 // loop_header_branch
    %13 = sbr.rel (%p11) target = $region8
  $region5: #{graformer_forward.50} parent=0 // loop_body
    %s15 = ssub.s32 %s10, 1
    %s16 = ssub.s32 %s10, 2
    %s26 = sadd.s32 1, %s19
    %p27 = scmp.ge.s32.totalorder %s26, 1
    %s28 = scalar_select %p27, 0, %s26
    %s29 = sadd.s32 1, %s18
    %s30 = scalar_select %p27, %s29, %s18
    %p31 = scmp.ge.s32.totalorder %s30, 1
    %s32 = scalar_select %p31, 0, %s30
    %s33 = sadd.s32 1, %s17
    %s34 = scalar_select %p31, %s33, %s17
    %p35 = scmp.ge.s32.totalorder %s34, 2
    %s36 = scalar_select %p35, 0, %s34
    %s37 = ssub.s32 %s17, %s36
    %s38 = ssub.s32 %s19, %s28
    %s39 = sor.u32 %s37, %s38
    %p40 = scmp.eq.s32.totalorder %s39, 0
    %s42 = sadd.s32 %s41, 1
    %s43 = scalar_select %p40, %s41, %s42
    %p46 = pneg %p40
    %p47 = scmp.eq.s32.totalorder %s10, 1
    %p48 = por %p46, %p47
    %p49 = scmp.ne.s32.totalorder %s41, %s44
    %p50 = scmp.eq.s32.totalorder %s10, 0
    %p51 = por %p49, %p50
    %p52 = scmp.ne.s32.totalorder %s41, %s44
    %p53 = scmp.eq.s32.totalorder %s15, 1
    %p54 = por %p52, %p53
    %p55 = scmp.ne.s32.totalorder %s44, %s45
    %p56 = scmp.eq.s32.totalorder %s15, 0
    %p57 = por %p55, %p56
    %p58 = scmp.ne.s32.totalorder %s44, %s45
    %p59 = scmp.eq.s32.totalorder %s16, 1
    %p60 = por %p58, %p59
    %p62 = scmp.ne.s32.totalorder %s45, %s61
    %p63 = scmp.eq.s32.totalorder %s16, 0
    %p64 = por %p62, %p63
    %s65 = ssub.s32 %s17, %s36
    %s66 = ssub.s32 %s18, %s32
    %s67 = sor.u32 %s65, %s66
    %p68 = scmp.eq.s32.totalorder %s67, 0
    %s70 = sadd.s32 %s69, 1
    %s71 = scalar_select %p68, %s69, %s70
    %p74 = pneg %p68
    %p75 = scmp.eq.s32.totalorder %s10, 1
    %p76 = por %p74, %p75
    %p77 = scmp.ne.s32.totalorder %s69, %s72
    %p78 = scmp.eq.s32.totalorder %s10, 0
    %p79 = por %p77, %p78
    %p80 = scmp.ne.s32.totalorder %s69, %s72
    %p81 = scmp.eq.s32.totalorder %s15, 1
    %p82 = por %p80, %p81
    %p83 = scmp.ne.s32.totalorder %s72, %s73
    %p84 = scmp.eq.s32.totalorder %s15, 0
    %p85 = por %p83, %p84
    %p86 = scmp.ne.s32.totalorder %s72, %s73
    %p87 = scmp.eq.s32.totalorder %s16, 1
    %p88 = por %p86, %p87
    %p90 = scmp.ne.s32.totalorder %s73, %s89
    %p91 = scmp.eq.s32.totalorder %s16, 0
    %p92 = por %p90, %p91
    %s93 = ssub.s32 %s17, %s36
    %s94 = ssub.s32 %s19, %s28
    %s95 = sor.u32 %s93, %s94
    %p96 = scmp.eq.s32.totalorder %s95, 0
    %s98 = sadd.s32 %s97, 1
    %s99 = scalar_select %p96, %s97, %s98
    %p102 = pneg %p96
    %p103 = scmp.eq.s32.totalorder %s10, 1
    %p104 = por %p102, %p103
    %p105 = scmp.ne.s32.totalorder %s97, %s100
    %p106 = scmp.eq.s32.totalorder %s10, 0
    %p107 = por %p105, %p106
    %p108 = scmp.ne.s32.totalorder %s97, %s100
    %p109 = scmp.eq.s32.totalorder %s15, 1
    %p110 = por %p108, %p109
    %p111 = scmp.ne.s32.totalorder %s100, %s101
    %p112 = scmp.eq.s32.totalorder %s15, 0
    %p113 = por %p111, %p112
    %p114 = scmp.ne.s32.totalorder %s100, %s101
    %p115 = scmp.eq.s32.totalorder %s16, 1
    %p116 = por %p114, %p115
    %p118 = scmp.ne.s32.totalorder %s101, %s117
    %p119 = scmp.eq.s32.totalorder %s16, 0
    %p120 = por %p118, %p119
    %s121 = ssub.s32 %s17, %s36
    %s122 = ssub.s32 %s19, %s28
    %s123 = sor.u32 %s121, %s122
    %p124 = scmp.eq.s32.totalorder %s123, 0
    %s126 = sadd.s32 %s125, 1
    %s127 = scalar_select %p124, %s125, %s126
    %p130 = pneg %p124
    %p131 = scmp.eq.s32.totalorder %s10, 1
    %p132 = por %p130, %p131
    %p133 = scmp.ne.s32.totalorder %s125, %s128
    %p134 = scmp.eq.s32.totalorder %s10, 0
    %p135 = por %p133, %p134
    %p136 = scmp.ne.s32.totalorder %s125, %s128
    %p137 = scmp.eq.s32.totalorder %s15, 1
    %p138 = por %p136, %p137
    %p139 = scmp.ne.s32.totalorder %s128, %s129
    %p140 = scmp.eq.s32.totalorder %s15, 0
    %p141 = por %p139, %p140
    %p142 = scmp.ne.s32.totalorder %s128, %s129
    %p143 = scmp.eq.s32.totalorder %s16, 1
    %p144 = por %p142, %p143
    %p146 = scmp.ne.s32.totalorder %s129, %s145
    %p147 = scmp.eq.s32.totalorder %s16, 0
    %p148 = por %p146, %p147
    %s149 = ssub.s32 %s17, %s36
    %s150 = ssub.s32 %s18, %s32
    %s151 = sor.u32 %s149, %s150
    %p152 = scmp.eq.s32.totalorder %s151, 0
    %s154 = sadd.s32 %s153, 1
    %s155 = scalar_select %p152, %s153, %s154
    %p158 = pneg %p152
    %p159 = scmp.eq.s32.totalorder %s10, 1
    %p160 = por %p158, %p159
    %p161 = scmp.ne.s32.totalorder %s153, %s156
    %p162 = scmp.eq.s32.totalorder %s10, 0
    %p163 = por %p161, %p162
    %p164 = scmp.ne.s32.totalorder %s153, %s156
    %p165 = scmp.eq.s32.totalorder %s15, 1
    %p166 = por %p164, %p165
    %p167 = scmp.ne.s32.totalorder %s156, %s157
    %p168 = scmp.eq.s32.totalorder %s15, 0
    %p169 = por %p167, %p168
    %p170 = scmp.ne.s32.totalorder %s156, %s157
    %p171 = scmp.eq.s32.totalorder %s16, 1
    %p172 = por %p170, %p171
    %p174 = scmp.ne.s32.totalorder %s157, %s173
    %p175 = scmp.eq.s32.totalorder %s16, 0
    %p176 = por %p174, %p175
    %p177 = scmp.le.s32.totalorder 1, %s10
    %p178 = scmp.lt.s32.totalorder %s10, 3
    %p179 = pnand %p177, %p178
    %p180 = pneg %p179
    // Predicated region
    $region9: #{graformer_forward.50} parent=5 // pred_check
      _
    $region10: #{graformer_forward.50} parent=5 // pred_check_branch
      %182 = sbr.rel (%p179) target = $region12
    $region11: #{graformer_forward.50} parent=5 // pred_region
      %s183 = ssub.s32 %s10, 1
    $region12: #{graformer_forward.50} parent=5 // pred_fallthru
      _
    %p184 = scmp.lt.s32.totalorder %s10, 2
    // Predicated region
    $region13: #{graformer_forward.50} parent=5 // pred_check
      %p185 = pneg %p184
    $region14: #{graformer_forward.50} parent=5 // pred_check_branch
      %187 = sbr.rel (%p185) target = $region16
    $region15: #{graformer_forward.50} parent=5 // pred_region
      // Predicated region
      $region17: #{graformer_forward.50} parent=15 // pred_check
        %p188 = pneg %p51
      $region18: #{graformer_forward.50} parent=15 // pred_check_branch
        %190 = sbr.rel (%p188) target = $region20
      $region19: #{graformer_forward.50} parent=15 // pred_region
        %p191 = scmp.lt.s32.totalorder %s17, 1
        %s192 = scalar_select %p191, %s17, 1
        %p193 = scmp.lt.s32.totalorder %s19, 0
        %s194 = scalar_select %p193, %s19, 0
        %s195 = sadd.s32 %s194, %s192
        %s196 = scalar_lea.vmem %s0, %s195
      $region20: #{graformer_forward.50} parent=15 // pred_fallthru
        _
      // Predicated region
      $region21: #{graformer_forward.50} parent=15 // pred_check
        %p197 = pneg %p79
      $region22: #{graformer_forward.50} parent=15 // pred_check_branch
        %199 = sbr.rel (%p197) target = $region24
      $region23: #{graformer_forward.50} parent=15 // pred_region
        %p200 = scmp.lt.s32.totalorder %s17, 1
        %s201 = scalar_select %p200, %s17, 1
        %p202 = scmp.lt.s32.totalorder %s18, 0
        %s203 = scalar_select %p202, %s18, 0
        %s204 = sadd.s32 %s203, %s201
        %s205 = smul.addr %s204, 4
        %s206 = scalar_lea.vmem %s1, %s205
      $region24: #{graformer_forward.50} parent=15 // pred_fallthru
        _
      // Predicated region
      $region25: #{graformer_forward.50} parent=15 // pred_check
        %p207 = pneg %p107
      $region26: #{graformer_forward.50} parent=15 // pred_check_branch
        %209 = sbr.rel (%p207) target = $region28
      $region27: #{graformer_forward.50} parent=15 // pred_region
        %p210 = scmp.lt.s32.totalorder %s17, 1
        %s211 = scalar_select %p210, %s17, 1
        %p212 = scmp.lt.s32.totalorder %s19, 0
        %s213 = scalar_select %p212, %s19, 0
        %s214 = sadd.s32 %s213, %s211
        %s215 = smul.addr %s214, 4
        %s216 = scalar_lea.vmem %s2, %s215
      $region28: #{graformer_forward.50} parent=15 // pred_fallthru
        _
      // Predicated region
      $region29: #{graformer_forward.50} parent=15 // pred_check
        %p217 = pneg %p135
      $region30: #{graformer_forward.50} parent=15 // pred_check_branch
        %219 = sbr.rel (%p217) target = $region32
      $region31: #{graformer_forward.50} parent=15 // pred_region
        %p220 = scmp.lt.s32.totalorder %s17, 1
        %s221 = scalar_select %p220, %s17, 1
        %p222 = scmp.lt.s32.totalorder %s19, 0
        %s223 = scalar_select %p222, %s19, 0
        %s224 = sadd.s32 %s223, %s221
        %s225 = smul.addr %s224, 4
        %s226 = scalar_lea.vmem %s3, %s225
      $region32: #{graformer_forward.50} parent=15 // pred_fallthru
        _
    $region16: #{graformer_forward.50} parent=5 // pred_fallthru
      _
    %p227 = scmp.le.s32.totalorder 1, %s10
    %p228 = scmp.lt.s32.totalorder %s10, 3
    %p229 = pnand %p227, %p228
    %p230 = pneg %p229
    // Predicated region
    $region33: #{graformer_forward.50} parent=5 // pred_check
      _
    $region34: #{graformer_forward.50} parent=5 // pred_check_branch
      %232 = sbr.rel (%p229) target = $region36
    $region35: #{graformer_forward.50} parent=5 // pred_region
      %s233 = ssub.s32 %s10, 1
      %p234 = scmp.lt.s32.totalorder %s20, 1
      %s235 = scalar_select %p234, %s20, 1
      %p236 = scmp.lt.s32.totalorder %s22, 0
      %s237 = scalar_select %p236, %s22, 0
      %s238 = sadd.s32 %s237, %s235
      %s239 = scalar_lea.vmem %s0, %s238
      %p240 = pneg %p57
      %p241 = pneg %p54
      %p242 = scmp.lt.s32.totalorder %s20, 1
      %s243 = scalar_select %p242, %s20, 1
      %p244 = scmp.lt.s32.totalorder %s21, 0
      %s245 = scalar_select %p244, %s21, 0
      %s246 = sadd.s32 %s245, %s243
      %s247 = smul.addr %s246, 4
      %s248 = scalar_lea.vmem %s1, %s247
      %p249 = pneg %p85
      %p250 = pneg %p82
      %p251 = scmp.lt.s32.totalorder %s20, 1
      %s252 = scalar_select %p251, %s20, 1
      %p253 = scmp.lt.s32.totalorder %s22, 0
      %s254 = scalar_select %p253, %s22, 0
      %s255 = sadd.s32 %s254, %s252
      %s256 = smul.addr %s255, 4
      %s257 = scalar_lea.vmem %s2, %s256
      %p258 = pneg %p113
      %p259 = pneg %p110
      %p260 = scmp.lt.s32.totalorder %s20, 1
      %s261 = scalar_select %p260, %s20, 1
      %p262 = scmp.lt.s32.totalorder %s22, 0
      %s263 = scalar_select %p262, %s22, 0
      %s264 = sadd.s32 %s263, %s261
      %s265 = smul.addr %s264, 4
      %s266 = scalar_lea.vmem %s3, %s265
      %p267 = pneg %p141
      %p268 = pneg %p138
      %p269 = pneg %p169
      %p270 = pneg %p166
      %p271 = scmp.lt.s32.totalorder %s20, 1
      %s272 = scalar_select %p271, %s20, 1
      %p273 = scmp.lt.s32.totalorder %s21, 0
      %s274 = scalar_select %p273, %s21, 0
      %s275 = sadd.s32 %s274, %s272
      %s276 = smul.addr %s275, 4
      %s277 = scalar_lea.vmem %s4, %s276
      %p278 = scmp.lt.s32.totalorder %s20, 1
      %s279 = scalar_select %p278, %s20, 1
      %p280 = scmp.lt.s32.totalorder %s22, 0
      %s281 = scalar_select %p280, %s22, 0
      %s282 = sadd.s32 %s281, %s279
      %s283 = scalar_lea.vmem %s0, %s282
      %p284 = scmp.lt.s32.totalorder %s20, 1
      %s285 = scalar_select %p284, %s20, 1
      %p286 = scmp.lt.s32.totalorder %s21, 0
      %s287 = scalar_select %p286, %s21, 0
      %s288 = sadd.s32 %s287, %s285
      %s289 = smul.addr %s288, 4
      %s290 = scalar_lea.vmem %s1, %s289
      %p291 = scmp.lt.s32.totalorder %s20, 1
      %s292 = scalar_select %p291, %s20, 1
      %p293 = scmp.lt.s32.totalorder %s22, 0
      %s294 = scalar_select %p293, %s22, 0
      %s295 = sadd.s32 %s294, %s292
      %s296 = smul.addr %s295, 4
      %s297 = scalar_lea.vmem %s2, %s296
      %p298 = scmp.lt.s32.totalorder %s20, 1
      %s299 = scalar_select %p298, %s20, 1
      %p300 = scmp.lt.s32.totalorder %s22, 0
      %s301 = scalar_select %p300, %s22, 0
      %s302 = sadd.s32 %s301, %s299
      %s303 = smul.addr %s302, 4
      %s304 = scalar_lea.vmem %s3, %s303
      %p305 = scmp.lt.s32.totalorder %s20, 1
      %s306 = scalar_select %p305, %s20, 1
      %p307 = scmp.lt.s32.totalorder %s21, 0
      %s308 = scalar_select %p307, %s21, 0
      %s309 = sadd.s32 %s308, %s306
      %s310 = smul.addr %s309, 4
      %s311 = scalar_lea.vmem %s4, %s310
      %p314 = scmp.eq.s32.totalorder %s22, 0
      // Predicated region
      $region37: #{graformer_forward.50} parent=35 // pred_check
        %p315 = pneg %p314
      $region38: #{graformer_forward.50} parent=35 // pred_check_branch
        %317 = sbr.rel (%p315) target = $region40
      $region39: #{graformer_forward.50} parent=35 // pred_region
        %vm318 = vcmask 7168
        %319 = vst.msk [vmem:[#allocation2] sm:$0xff] %vm318, -1e+30
        %320 = vst.msk [vmem:[#allocation2 + $0x8] sm:$0xff] %vm318, -1e+30
        %321 = vst.msk [vmem:[#allocation2 + $0x10] sm:$0xff] %vm318, -1e+30
        %322 = vst.msk [vmem:[#allocation2 + $0x18] sm:$0xff] %vm318, -1e+30
        %323 = vst.msk [vmem:[#allocation3] sm:$0xff] %vm318, 0.0
        %324 = vst.msk [vmem:[#allocation3 + $0x8] sm:$0xff] %vm318, 0.0
        %325 = vst.msk [vmem:[#allocation3 + $0x10] sm:$0xff] %vm318, 0.0
        %326 = vst.msk [vmem:[#allocation3 + $0x18] sm:$0xff] %vm318, 0.0
        %vm327 = vcmask 261120
        %328 = vst.msk [vmem:[#allocation4] sm:$0xff] %vm327, 0.0
      $region40: #{graformer_forward.50} parent=35 // pred_fallthru
        _
      %v329 = vld [vmem:[%s290] sm:$0xf]
      %v330 = vmul.bf16 %v329, 1052065461
      %v331 = vld [vmem:[%s297] sm:$0xf]
      %v332 = vld [vmem:[%s304] sm:$0xf]
      %v333 = vld [vmem:[%s283] sm:$0x1]
      %s334 = smul.u32 %s21, 8
      %s335 = smul.u32 %s22, 8
      %v336 = vlaneseq
      %v337 = vshrl.u32 %v336, 7
      %v338 = vstv %s334
      %v339 = vadd.s32 %v338, %v337
      %v340 = vlaneseq
      %v341 = vand.u32 %v340, 127
      %v342 = vstv %s335
      %v343 = vadd.s32 %v342, %v341
      %vm344 = vcmp.ge.s32.totalorder %v339, %v343
      %v345 = vsel %vm344, 0.0, -1e+09
      %v347 = vlaneseq
      %v348 = vshrl.u32 %v347, 7
      %v349 = vsub.s32 0, %v348
      %v350 = vrot.slane %v333, %v349
      %v352 = vadd.f32 %v350, %v345
      %vm353 = vcmask 64512
      %v355 = vsel %vm353, %v330, 0
      %v358 = vsel %vm353, %v331, 0
      %360 = vmatprep.subr.bf16.mxu0 0
      %361 = vmatpush1.bf16.xpose.msra.mxu0 0
      %362 = vmatprep.subr.bf16.mxu0 0
      %363 = vmatpush1.bf16.xpose.msra.mxu0 0
      %364 = vmatprep.subr.bf16.mxu0 0
      %365 = vmatpush1.bf16.xpose.msra.mxu0 0
      %366 = vmatprep.subr.bf16.mxu0 0
      %367 = vmatpush1.bf16.xpose.msra.mxu0 0
      %368 = vmatprep.subr.bf16.mxu0 0
      %369 = vmatpush1.bf16.xpose.msra.mxu0 0
      %370 = vmatprep.subr.bf16.mxu0 0
      %371 = vmatpush1.bf16.xpose.msra.mxu0 0
      %372 = vmatprep.subr.bf16.mxu0 0
      %373 = vmatpush1.bf16.xpose.msra.mxu0 0
      %374 = vmatprep.subr.bf16.mxu0 0
      %375 = vmatpush1.bf16.xpose.msra.mxu0 %v358
      %376 = vmatprep.subr.bf16.mxu0 0
      %377 = vmatpush2.bf16.xpose.msra.mxu0 0
      %378 = vmatprep.subr.bf16.mxu0 0
      %379 = vmatpush2.bf16.xpose.msra.mxu0 0
      %380 = vmatprep.subr.bf16.mxu0 0
      %381 = vmatpush2.bf16.xpose.msra.mxu0 0
      %382 = vmatprep.subr.bf16.mxu0 0
      %383 = vmatpush2.bf16.xpose.msra.mxu0 0
      %384 = vmatprep.subr.bf16.mxu0 0
      %385 = vmatpush2.bf16.xpose.msra.mxu0 0
      %386 = vmatprep.subr.bf16.mxu0 0
      %387 = vmatpush2.bf16.xpose.msra.mxu0 0
      %388 = vmatprep.subr.bf16.mxu0 0
      %389 = vmatpush2.bf16.xpose.msra.mxu0 0
      %390 = vmatprep.subr.bf16.mxu0 0
      %391 = vmatpush2.bf16.xpose.msra.mxu0 0
      %392 = vmatprep.mubr.bf16.mxu0 0
      %393 = vmatmul.mubr.bf16.gmra.mxu0 %v355
      %v394 = vpop.f32.mrf.mxu0
      %v395 = vadd.f32 %v352, %v394
      %v396 = vpop.f32.mrf.mxu0
      %v397 = vpop.f32.mrf.mxu0
      %v398 = vpop.f32.mrf.mxu0
      %399 = vdwg.mxu0
      %v400 = vld [vmem:[#allocation2] sm:$0xff]
      %v401 = vsel %vm353, %v395, -inf
      %402 = vmax.xlane.f32.xlu0 %v401
      %v403 = vpop.xlane.xlu0 %402
      %v404 = vmax.f32 %v400, %v403
      %v405 = vsub.f32 %v400, %v404
      %v406 = vmul.f32 %v405, 1.442695
      %v407 = vpow.pop %v406
      %409 = vset.pattern.permute.xlu0 0
      %410 = vperm.xlu0 %409, %v404
      %v411 = vpop.permute.xlu0 %410
      %v413 = vsub.f32 %v395, %v411
      %v414 = vmul.f32 %v413, 1.442695
      %v415 = vpow.pop %v414
      %v416 = vld [vmem:[#allocation3] sm:$0xff]
      %v417 = vmul.f32 %v407, %v416
      %v418 = vsel %vm353, %v415, 0.0
      %419 = vadd.xlane.f32.xlu0 %v418
      %v420 = vpop.xlane.xlu0 %419
      %v421 = vadd.f32 %v417, %v420
      %vm422 = vcmask 7168
      %423 = vst.msk [vmem:[#allocation3] sm:$0xff] %vm422, %v421
      %424 = vst.msk [vmem:[#allocation2] sm:$0xff] %vm422, %v404
      %v425 = vpack.c.bf16 %v415, %v415
      %v427 = vsel %vm353, %v425, 0
      %vm429 = vcmask 1043456
      %v431 = vsel %vm429, %v332, 0
      %433 = vmatprep.subr.bf16.mxu0 0
      %434 = vmatpush1.bf16.msra.mxu0 0
      %435 = vmatprep.subr.bf16.mxu0 0
      %436 = vmatpush1.bf16.msra.mxu0 0
      %437 = vmatprep.subr.bf16.mxu0 0
      %438 = vmatpush1.bf16.msra.mxu0 0
      %439 = vmatprep.subr.bf16.mxu0 0
      %440 = vmatpush1.bf16.msra.mxu0 0
      %441 = vmatprep.subr.bf16.mxu0 0
      %442 = vmatpush1.bf16.msra.mxu0 0
      %443 = vmatprep.subr.bf16.mxu0 0
      %444 = vmatpush1.bf16.msra.mxu0 0
      %445 = vmatprep.subr.bf16.mxu0 0
      %446 = vmatpush1.bf16.msra.mxu0 0
      %447 = vmatprep.subr.bf16.mxu0 0
      %448 = vmatpush1.bf16.msra.mxu0 %v431
      %449 = vmatprep.subr.bf16.mxu0 0
      %450 = vmatpush2.bf16.msra.mxu0 0
      %451 = vmatprep.subr.bf16.mxu0 0
      %452 = vmatpush2.bf16.msra.mxu0 0
      %453 = vmatprep.subr.bf16.mxu0 0
      %454 = vmatpush2.bf16.msra.mxu0 0
      %455 = vmatprep.subr.bf16.mxu0 0
      %456 = vmatpush2.bf16.msra.mxu0 0
      %457 = vmatprep.subr.bf16.mxu0 0
      %458 = vmatpush2.bf16.msra.mxu0 0
      %459 = vmatprep.subr.bf16.mxu0 0
      %460 = vmatpush2.bf16.msra.mxu0 0
      %461 = vmatprep.subr.bf16.mxu0 0
      %462 = vmatpush2.bf16.msra.mxu0 0
      %463 = vmatprep.subr.bf16.mxu0 0
      %464 = vmatpush2.bf16.msra.mxu0 0
      %465 = vmatprep.mubr.bf16.mxu0 0
      %466 = vmatmul.mubr.bf16.gmra.mxu0 %v427
      %v467 = vpop.f32.mrf.mxu0
      %v468 = vadd.f32 0.0, %v467
      %v469 = vpop.f32.mrf.mxu0
      %v470 = vpop.f32.mrf.mxu0
      %v471 = vpop.f32.mrf.mxu0
      %472 = vdwg.mxu0
      %v473 = vld [vmem:[#allocation4] sm:$0xff]
      %475 = vset.pattern.permute.xlu0 0
      %476 = vperm.xlu0 %475, %v407
      %v477 = vpop.permute.xlu0 %476
      %v479 = vmul.f32 %v477, %v473
      %v480 = vadd.f32 %v479, %v468
      %481 = vst.msk [vmem:[#allocation4] sm:$0xff] %vm353, %v480
      %v483 = vunpack.c.l.b16 %v330
      %v484 = vpack.c.b16 %v483, %v483
      %485 = vrot.lane.b32.xlu0 %v484, 120
      %v486 = vpop.permute.xlu0 %485
      %v488 = vunpack.c.l.b16 %v331
      %v489 = vpack.c.b16 %v488, %v488
      %490 = vrot.lane.b32.xlu0 %v489, 120
      %v491 = vpop.permute.xlu0 %490
      %v493 = vsel %vm353, %v486, 0
      %v496 = vsel %vm353, %v491, 0
      %498 = vmatprep.subr.bf16.mxu0 0
      %499 = vmatpush1.bf16.xpose.msra.mxu0 0
      %500 = vmatprep.subr.bf16.mxu0 0
      %501 = vmatpush1.bf16.xpose.msra.mxu0 0
      %502 = vmatprep.subr.bf16.mxu0 0
      %503 = vmatpush1.bf16.xpose.msra.mxu0 0
      %504 = vmatprep.subr.bf16.mxu0 0
      %505 = vmatpush1.bf16.xpose.msra.mxu0 0
      %506 = vmatprep.subr.bf16.mxu0 0
      %507 = vmatpush1.bf16.xpose.msra.mxu0 0
      %508 = vmatprep.subr.bf16.mxu0 0
      %509 = vmatpush1.bf16.xpose.msra.mxu0 0
      %510 = vmatprep.subr.bf16.mxu0 0
      %511 = vmatpush1.bf16.xpose.msra.mxu0 0
      %512 = vmatprep.subr.bf16.mxu0 0
      %513 = vmatpush1.bf16.xpose.msra.mxu0 %v496
      %514 = vmatprep.subr.bf16.mxu0 0
      %515 = vmatpush2.bf16.xpose.msra.mxu0 0
      %516 = vmatprep.subr.bf16.mxu0 0
      %517 = vmatpush2.bf16.xpose.msra.mxu0 0
      %518 = vmatprep.subr.bf16.mxu0 0
      %519 = vmatpush2.bf16.xpose.msra.mxu0 0
      %520 = vmatprep.subr.bf16.mxu0 0
      %521 = vmatpush2.bf16.xpose.msra.mxu0 0
      %522 = vmatprep.subr.bf16.mxu0 0
      %523 = vmatpush2.bf16.xpose.msra.mxu0 0
      %524 = vmatprep.subr.bf16.mxu0 0
      %525 = vmatpush2.bf16.xpose.msra.mxu0 0
      %526 = vmatprep.subr.bf16.mxu0 0
      %527 = vmatpush2.bf16.xpose.msra.mxu0 0
      %528 = vmatprep.subr.bf16.mxu0 0
      %529 = vmatpush2.bf16.xpose.msra.mxu0 0
      %530 = vmatprep.mubr.bf16.mxu0 0
      %531 = vmatmul.mubr.bf16.gmra.mxu0 %v493
      %v532 = vpop.f32.mrf.mxu0
      %v533 = vadd.f32 %v352, %v532
      %v534 = vpop.f32.mrf.mxu0
      %v535 = vpop.f32.mrf.mxu0
      %v536 = vpop.f32.mrf.mxu0
      %537 = vdwg.mxu0
      %s538 = scalar_lea.vmem [#allocation2], 8
      %v539 = vld [vmem:[%s538] sm:$0xff]
      %v540 = vsel %vm353, %v533, -inf
      %541 = vmax.xlane.f32.xlu0 %v540
      %v542 = vpop.xlane.xlu0 %541
      %v543 = vmax.f32 %v539, %v542
      %v544 = vsub.f32 %v539, %v543
      %v545 = vmul.f32 %v544, 1.442695
      %v546 = vpow.pop %v545
      %548 = vset.pattern.permute.xlu0 0
      %549 = vperm.xlu0 %548, %v543
      %v550 = vpop.permute.xlu0 %549
      %v552 = vsub.f32 %v533, %v550
      %v553 = vmul.f32 %v552, 1.442695
      %v554 = vpow.pop %v553
      %s555 = scalar_lea.vmem [#allocation3], 8
      %v556 = vld [vmem:[%s555] sm:$0xff]
      %v557 = vmul.f32 %v546, %v556
      %v558 = vsel %vm353, %v554, 0.0
      %559 = vadd.xlane.f32.xlu0 %v558
      %v560 = vpop.xlane.xlu0 %559
      %v561 = vadd.f32 %v557, %v560
      %562 = vst.msk [vmem:[%s555] sm:$0xff] %vm422, %v561
      %563 = vst.msk [vmem:[%s538] sm:$0xff] %vm422, %v543
      %v564 = vpack.c.bf16 %v554, %v554
      %v566 = vunpack.c.l.b16 %v332
      %v567 = vpack.c.b16 %v566, %v566
      %568 = vrot.lane.b32.xlu0 %v567, 120
      %v569 = vpop.permute.xlu0 %568
      %v571 = vsel %vm353, %v564, 0
      %v574 = vsel %vm429, %v569, 0
      %576 = vmatprep.subr.bf16.mxu0 0
      %577 = vmatpush1.bf16.msra.mxu0 0
      %578 = vmatprep.subr.bf16.mxu0 0
      %579 = vmatpush1.bf16.msra.mxu0 0
      %580 = vmatprep.subr.bf16.mxu0 0
      %581 = vmatpush1.bf16.msra.mxu0 0
      %582 = vmatprep.subr.bf16.mxu0 0
      %583 = vmatpush1.bf16.msra.mxu0 0
      %584 = vmatprep.subr.bf16.mxu0 0
      %585 = vmatpush1.bf16.msra.mxu0 0
      %586 = vmatprep.subr.bf16.mxu0 0
      %587 = vmatpush1.bf16.msra.mxu0 0
      %588 = vmatprep.subr.bf16.mxu0 0
      %589 = vmatpush1.bf16.msra.mxu0 0
      %590 = vmatprep.subr.bf16.mxu0 0
      %591 = vmatpush1.bf16.msra.mxu0 %v574
      %592 = vmatprep.subr.bf16.mxu0 0
      %593 = vmatpush2.bf16.msra.mxu0 0
      %594 = vmatprep.subr.bf16.mxu0 0
      %595 = vmatpush2.bf16.msra.mxu0 0
      %596 = vmatprep.subr.bf16.mxu0 0
      %597 = vmatpush2.bf16.msra.mxu0 0
      %598 = vmatprep.subr.bf16.mxu0 0
      %599 = vmatpush2.bf16.msra.mxu0 0
      %600 = vmatprep.subr.bf16.mxu0 0
      %601 = vmatpush2.bf16.msra.mxu0 0
      %602 = vmatprep.subr.bf16.mxu0 0
      %603 = vmatpush2.bf16.msra.mxu0 0
      %604 = vmatprep.subr.bf16.mxu0 0
      %605 = vmatpush2.bf16.msra.mxu0 0
      %606 = vmatprep.subr.bf16.mxu0 0
      %607 = vmatpush2.bf16.msra.mxu0 0
      %608 = vmatprep.mubr.bf16.mxu0 0
      %609 = vmatmul.mubr.bf16.gmra.mxu0 %v571
      %v610 = vpop.f32.mrf.mxu0
      %v611 = vadd.f32 0.0, %v610
      %v612 = vpop.f32.mrf.mxu0
      %v613 = vpop.f32.mrf.mxu0
      %v614 = vpop.f32.mrf.mxu0
      %615 = vdwg.mxu0
      %v616 = vld [vmem:[#allocation4] sm:$0xff]
      %618 = vset.pattern.permute.xlu0 0
      %619 = vperm.xlu0 %618, %v546
      %v620 = vpop.permute.xlu0 %619
      %v622 = vmul.f32 %v620, %v616
      %624 = vrot.lane.b32.xlu0 %v611, 8
      %v625 = vpop.permute.xlu0 %624
      %v627 = vadd.f32 %v622, %v625
      %vm628 = vcmask 130112
      %629 = vst.msk [vmem:[#allocation4] sm:$0xff] %vm628, %v627
      %630 = vrot.lane.b32.xlu0 %v484, 112
      %v631 = vpop.permute.xlu0 %630
      %632 = vrot.lane.b32.xlu0 %v489, 112
      %v633 = vpop.permute.xlu0 %632
      %v635 = vsel %vm353, %v631, 0
      %v638 = vsel %vm353, %v633, 0
      %640 = vmatprep.subr.bf16.mxu0 0
      %641 = vmatpush1.bf16.xpose.msra.mxu0 0
      %642 = vmatprep.subr.bf16.mxu0 0
      %643 = vmatpush1.bf16.xpose.msra.mxu0 0
      %644 = vmatprep.subr.bf16.mxu0 0
      %645 = vmatpush1.bf16.xpose.msra.mxu0 0
      %646 = vmatprep.subr.bf16.mxu0 0
      %647 = vmatpush1.bf16.xpose.msra.mxu0 0
      %648 = vmatprep.subr.bf16.mxu0 0
      %649 = vmatpush1.bf16.xpose.msra.mxu0 0
      %650 = vmatprep.subr.bf16.mxu0 0
      %651 = vmatpush1.bf16.xpose.msra.mxu0 0
      %652 = vmatprep.subr.bf16.mxu0 0
      %653 = vmatpush1.bf16.xpose.msra.mxu0 0
      %654 = vmatprep.subr.bf16.mxu0 0
      %655 = vmatpush1.bf16.xpose.msra.mxu0 %v638
      %656 = vmatprep.subr.bf16.mxu0 0
      %657 = vmatpush2.bf16.xpose.msra.mxu0 0
      %658 = vmatprep.subr.bf16.mxu0 0
      %659 = vmatpush2.bf16.xpose.msra.mxu0 0
      %660 = vmatprep.subr.bf16.mxu0 0
      %661 = vmatpush2.bf16.xpose.msra.mxu0 0
      %662 = vmatprep.subr.bf16.mxu0 0
      %663 = vmatpush2.bf16.xpose.msra.mxu0 0
      %664 = vmatprep.subr.bf16.mxu0 0
      %665 = vmatpush2.bf16.xpose.msra.mxu0 0
      %666 = vmatprep.subr.bf16.mxu0 0
      %667 = vmatpush2.bf16.xpose.msra.mxu0 0
      %668 = vmatprep.subr.bf16.mxu0 0
      %669 = vmatpush2.bf16.xpose.msra.mxu0 0
      %670 = vmatprep.subr.bf16.mxu0 0
      %671 = vmatpush2.bf16.xpose.msra.mxu0 0
      %672 = vmatprep.mubr.bf16.mxu0 0
      %673 = vmatmul.mubr.bf16.gmra.mxu0 %v635
      %v674 = vpop.f32.mrf.mxu0
      %v675 = vadd.f32 %v352, %v674
      %v676 = vpop.f32.mrf.mxu0
      %v677 = vpop.f32.mrf.mxu0
      %v678 = vpop.f32.mrf.mxu0
      %679 = vdwg.mxu0
      %s680 = scalar_lea.vmem [#allocation2], 16
      %v681 = vld [vmem:[%s680] sm:$0xff]
      %v682 = vsel %vm353, %v675, -inf
      %683 = vmax.xlane.f32.xlu0 %v682
      %v684 = vpop.xlane.xlu0 %683
      %v685 = vmax.f32 %v681, %v684
      %v686 = vsub.f32 %v681, %v685
      %v687 = vmul.f32 %v686, 1.442695
      %v688 = vpow.pop %v687
      %690 = vset.pattern.permute.xlu0 0
      %691 = vperm.xlu0 %690, %v685
      %v692 = vpop.permute.xlu0 %691
      %v694 = vsub.f32 %v675, %v692
      %v695 = vmul.f32 %v694, 1.442695
      %v696 = vpow.pop %v695
      %s697 = scalar_lea.vmem [#allocation3], 16
      %v698 = vld [vmem:[%s697] sm:$0xff]
      %v699 = vmul.f32 %v688, %v698
      %v700 = vsel %vm353, %v696, 0.0
      %701 = vadd.xlane.f32.xlu0 %v700
      %v702 = vpop.xlane.xlu0 %701
      %v703 = vadd.f32 %v699, %v702
      %704 = vst.msk [vmem:[%s697] sm:$0xff] %vm422, %v703
      %705 = vst.msk [vmem:[%s680] sm:$0xff] %vm422, %v685
      %v706 = vpack.c.bf16 %v696, %v696
      %707 = vrot.lane.b32.xlu0 %v567, 112
      %v708 = vpop.permute.xlu0 %707
      %v710 = vsel %vm353, %v706, 0
      %v713 = vsel %vm429, %v708, 0
      %715 = vmatprep.subr.bf16.mxu0 0
      %716 = vmatpush1.bf16.msra.mxu0 0
      %717 = vmatprep.subr.bf16.mxu0 0
      %718 = vmatpush1.bf16.msra.mxu0 0
      %719 = vmatprep.subr.bf16.mxu0 0
      %720 = vmatpush1.bf16.msra.mxu0 0
      %721 = vmatprep.subr.bf16.mxu0 0
      %722 = vmatpush1.bf16.msra.mxu0 0
      %723 = vmatprep.subr.bf16.mxu0 0
      %724 = vmatpush1.bf16.msra.mxu0 0
      %725 = vmatprep.subr.bf16.mxu0 0
      %726 = vmatpush1.bf16.msra.mxu0 0
      %727 = vmatprep.subr.bf16.mxu0 0
      %728 = vmatpush1.bf16.msra.mxu0 0
      %729 = vmatprep.subr.bf16.mxu0 0
      %730 = vmatpush1.bf16.msra.mxu0 %v713
      %731 = vmatprep.subr.bf16.mxu0 0
      %732 = vmatpush2.bf16.msra.mxu0 0
      %733 = vmatprep.subr.bf16.mxu0 0
      %734 = vmatpush2.bf16.msra.mxu0 0
      %735 = vmatprep.subr.bf16.mxu0 0
      %736 = vmatpush2.bf16.msra.mxu0 0
      %737 = vmatprep.subr.bf16.mxu0 0
      %738 = vmatpush2.bf16.msra.mxu0 0
      %739 = vmatprep.subr.bf16.mxu0 0
      %740 = vmatpush2.bf16.msra.mxu0 0
      %741 = vmatprep.subr.bf16.mxu0 0
      %742 = vmatpush2.bf16.msra.mxu0 0
      %743 = vmatprep.subr.bf16.mxu0 0
      %744 = vmatpush2.bf16.msra.mxu0 0
      %745 = vmatprep.subr.bf16.mxu0 0
      %746 = vmatpush2.bf16.msra.mxu0 0
      %747 = vmatprep.mubr.bf16.mxu0 0
      %748 = vmatmul.mubr.bf16.gmra.mxu0 %v710
      %v749 = vpop.f32.mrf.mxu0
      %v750 = vadd.f32 0.0, %v749
      %v751 = vpop.f32.mrf.mxu0
      %v752 = vpop.f32.mrf.mxu0
      %v753 = vpop.f32.mrf.mxu0
      %754 = vdwg.mxu0
      %v755 = vld [vmem:[#allocation4] sm:$0xff]
      %757 = vset.pattern.permute.xlu0 0
      %758 = vperm.xlu0 %757, %v688
      %v759 = vpop.permute.xlu0 %758
      %v761 = vmul.f32 %v759, %v755
      %763 = vrot.lane.b32.xlu0 %v750, 16
      %v764 = vpop.permute.xlu0 %763
      %v766 = vadd.f32 %v761, %v764
      %vm767 = vcmask 195712
      %768 = vst.msk [vmem:[#allocation4] sm:$0xff] %vm767, %v766
      %769 = vrot.lane.b32.xlu0 %v484, 104
      %v770 = vpop.permute.xlu0 %769
      %771 = vrot.lane.b32.xlu0 %v489, 104
      %v772 = vpop.permute.xlu0 %771
      %v774 = vsel %vm353, %v770, 0
      %v777 = vsel %vm353, %v772, 0
      %779 = vmatprep.subr.bf16.mxu0 0
      %780 = vmatpush1.bf16.xpose.msra.mxu0 0
      %781 = vmatprep.subr.bf16.mxu0 0
      %782 = vmatpush1.bf16.xpose.msra.mxu0 0
      %783 = vmatprep.subr.bf16.mxu0 0
      %784 = vmatpush1.bf16.xpose.msra.mxu0 0
      %785 = vmatprep.subr.bf16.mxu0 0
      %786 = vmatpush1.bf16.xpose.msra.mxu0 0
      %787 = vmatprep.subr.bf16.mxu0 0
      %788 = vmatpush1.bf16.xpose.msra.mxu0 0
      %789 = vmatprep.subr.bf16.mxu0 0
      %790 = vmatpush1.bf16.xpose.msra.mxu0 0
      %791 = vmatprep.subr.bf16.mxu0 0
      %792 = vmatpush1.bf16.xpose.msra.mxu0 0
      %793 = vmatprep.subr.bf16.mxu0 0
      %794 = vmatpush1.bf16.xpose.msra.mxu0 %v777
      %795 = vmatprep.subr.bf16.mxu0 0
      %796 = vmatpush2.bf16.xpose.msra.mxu0 0
      %797 = vmatprep.subr.bf16.mxu0 0
      %798 = vmatpush2.bf16.xpose.msra.mxu0 0
      %799 = vmatprep.subr.bf16.mxu0 0
      %800 = vmatpush2.bf16.xpose.msra.mxu0 0
      %801 = vmatprep.subr.bf16.mxu0 0
      %802 = vmatpush2.bf16.xpose.msra.mxu0 0
      %803 = vmatprep.subr.bf16.mxu0 0
      %804 = vmatpush2.bf16.xpose.msra.mxu0 0
      %805 = vmatprep.subr.bf16.mxu0 0
      %806 = vmatpush2.bf16.xpose.msra.mxu0 0
      %807 = vmatprep.subr.bf16.mxu0 0
      %808 = vmatpush2.bf16.xpose.msra.mxu0 0
      %809 = vmatprep.subr.bf16.mxu0 0
      %810 = vmatpush2.bf16.xpose.msra.mxu0 0
      %811 = vmatprep.mubr.bf16.mxu0 0
      %812 = vmatmul.mubr.bf16.gmra.mxu0 %v774
      %v813 = vpop.f32.mrf.mxu0
      %v814 = vadd.f32 %v352, %v813
      %v815 = vpop.f32.mrf.mxu0
      %v816 = vpop.f32.mrf.mxu0
      %v817 = vpop.f32.mrf.mxu0
      %818 = vdwg.mxu0
      %s819 = scalar_lea.vmem [#allocation2], 24
      %v820 = vld [vmem:[%s819] sm:$0xff]
      %v821 = vsel %vm353, %v814, -inf
      %822 = vmax.xlane.f32.xlu0 %v821
      %v823 = vpop.xlane.xlu0 %822
      %v824 = vmax.f32 %v820, %v823
      %v825 = vsub.f32 %v820, %v824
      %v826 = vmul.f32 %v825, 1.442695
      %v827 = vpow.pop %v826
      %829 = vset.pattern.permute.xlu0 0
      %830 = vperm.xlu0 %829, %v824
      %v831 = vpop.permute.xlu0 %830
      %v833 = vsub.f32 %v814, %v831
      %v834 = vmul.f32 %v833, 1.442695
      %v835 = vpow.pop %v834
      %s836 = scalar_lea.vmem [#allocation3], 24
      %v837 = vld [vmem:[%s836] sm:$0xff]
      %v838 = vmul.f32 %v827, %v837
      %v839 = vsel %vm353, %v835, 0.0
      %840 = vadd.xlane.f32.xlu0 %v839
      %v841 = vpop.xlane.xlu0 %840
      %v842 = vadd.f32 %v838, %v841
      %843 = vst.msk [vmem:[%s836] sm:$0xff] %vm422, %v842
      %844 = vst.msk [vmem:[%s819] sm:$0xff] %vm422, %v824
      %v845 = vpack.c.bf16 %v835, %v835
      %846 = vrot.lane.b32.xlu0 %v567, 104
      %v847 = vpop.permute.xlu0 %846
      %v849 = vsel %vm353, %v845, 0
      %v852 = vsel %vm429, %v847, 0
      %854 = vmatprep.subr.bf16.mxu0 0
      %855 = vmatpush1.bf16.msra.mxu0 0
      %856 = vmatprep.subr.bf16.mxu0 0
      %857 = vmatpush1.bf16.msra.mxu0 0
      %858 = vmatprep.subr.bf16.mxu0 0
      %859 = vmatpush1.bf16.msra.mxu0 0
      %860 = vmatprep.subr.bf16.mxu0 0
      %861 = vmatpush1.bf16.msra.mxu0 0
      %862 = vmatprep.subr.bf16.mxu0 0
      %863 = vmatpush1.bf16.msra.mxu0 0
      %864 = vmatprep.subr.bf16.mxu0 0
      %865 = vmatpush1.bf16.msra.mxu0 0
      %866 = vmatprep.subr.bf16.mxu0 0
      %867 = vmatpush1.bf16.msra.mxu0 0
      %868 = vmatprep.subr.bf16.mxu0 0
      %869 = vmatpush1.bf16.msra.mxu0 %v852
      %870 = vmatprep.subr.bf16.mxu0 0
      %871 = vmatpush2.bf16.msra.mxu0 0
      %872 = vmatprep.subr.bf16.mxu0 0
      %873 = vmatpush2.bf16.msra.mxu0 0
      %874 = vmatprep.subr.bf16.mxu0 0
      %875 = vmatpush2.bf16.msra.mxu0 0
      %876 = vmatprep.subr.bf16.mxu0 0
      %877 = vmatpush2.bf16.msra.mxu0 0
      %878 = vmatprep.subr.bf16.mxu0 0
      %879 = vmatpush2.bf16.msra.mxu0 0
      %880 = vmatprep.subr.bf16.mxu0 0
      %881 = vmatpush2.bf16.msra.mxu0 0
      %882 = vmatprep.subr.bf16.mxu0 0
      %883 = vmatpush2.bf16.msra.mxu0 0
      %884 = vmatprep.subr.bf16.mxu0 0
      %885 = vmatpush2.bf16.msra.mxu0 0
      %886 = vmatprep.mubr.bf16.mxu0 0
      %887 = vmatmul.mubr.bf16.gmra.mxu0 %v849
      %v888 = vpop.f32.mrf.mxu0
      %v889 = vadd.f32 0.0, %v888
      %v890 = vpop.f32.mrf.mxu0
      %v891 = vpop.f32.mrf.mxu0
      %v892 = vpop.f32.mrf.mxu0
      %893 = vdwg.mxu0
      %v894 = vld [vmem:[#allocation4] sm:$0xff]
      %896 = vset.pattern.permute.xlu0 0
      %897 = vperm.xlu0 %896, %v827
      %v898 = vpop.permute.xlu0 %897
      %v900 = vmul.f32 %v898, %v894
      %902 = vrot.lane.b32.xlu0 %v889, 24
      %v903 = vpop.permute.xlu0 %902
      %v905 = vadd.f32 %v900, %v903
      %vm906 = vcmask 261312
      %907 = vst.msk [vmem:[#allocation4] sm:$0xff] %vm906, %v905
      // Predicated region
      $region41: #{graformer_forward.50} parent=35 // pred_check
        %p908 = pneg %p314
      $region42: #{graformer_forward.50} parent=35 // pred_check_branch
        %910 = sbr.rel (%p908) target = $region44
      $region43: #{graformer_forward.50} parent=35 // pred_region
        %v911 = vld [vmem:[#allocation4] sm:$0xff]
        %v912 = vld [vmem:[#allocation3] sm:$0xff]
        %914 = vset.pattern.permute.xlu0 0
        %915 = vperm.xlu0 %914, %v912
        %v916 = vpop.permute.xlu0 %915
        %v918 = vrcp.pop %v916
        %v919 = vmul.f32 %v911, %v918
        %920 = vst.msk [vmem:[#allocation4] sm:$0xff] %vm353, %v919
        %v921 = vld [vmem:[#allocation4] sm:$0xff]
        %v922 = vld [vmem:[%s555] sm:$0xff]
        %924 = vset.pattern.permute.xlu0 0
        %925 = vperm.xlu0 %924, %v922
        %v926 = vpop.permute.xlu0 %925
        %v928 = vrcp.pop %v926
        %v929 = vmul.f32 %v921, %v928
        %930 = vst.msk [vmem:[#allocation4] sm:$0xff] %vm628, %v929
        %v931 = vld [vmem:[#allocation4] sm:$0xff]
        %v932 = vld [vmem:[%s697] sm:$0xff]
        %934 = vset.pattern.permute.xlu0 0
        %935 = vperm.xlu0 %934, %v932
        %v936 = vpop.permute.xlu0 %935
        %v938 = vrcp.pop %v936
        %v939 = vmul.f32 %v931, %v938
        %940 = vst.msk [vmem:[#allocation4] sm:$0xff] %vm767, %v939
        %v941 = vld [vmem:[#allocation4] sm:$0xff]
        %v942 = vld [vmem:[%s836] sm:$0xff]
        %944 = vset.pattern.permute.xlu0 0
        %945 = vperm.xlu0 %944, %v942
        %v946 = vpop.permute.xlu0 %945
        %v948 = vrcp.pop %v946
        %v949 = vmul.f32 %v941, %v948
        %950 = vst.msk [vmem:[#allocation4] sm:$0xff] %vm906, %v949
        %v951 = vld [vmem:[#allocation4] sm:$0xff]
        %v952 = vpack.c.bf16 %v951, %v951
        %vm953 = vcmask 257024
        %954 = vst.msk [vmem:[%s311] sm:$0xf] %vm953, %v952
      $region44: #{graformer_forward.50} parent=35 // pred_fallthru
        _
      %p955 = scmp.lt.s32.totalorder %s20, 1
      %s956 = scalar_select %p955, %s20, 1
      %p957 = scmp.lt.s32.totalorder %s21, 0
      %s958 = scalar_select %p957, %s21, 0
      %s959 = sadd.s32 %s958, %s956
      %s960 = smul.addr %s959, 4
      %s961 = scalar_lea.vmem %s4, %s960
      // Predicated region
      $region45: #{graformer_forward.50} parent=35 // pred_check
        %p962 = pneg %p166
      $region46: #{graformer_forward.50} parent=35 // pred_check_branch
        %964 = sbr.rel (%p962) target = $region48
      $region47: #{graformer_forward.50} parent=35 // pred_region
        _
      $region48: #{graformer_forward.50} parent=35 // pred_fallthru
        _
    $region36: #{graformer_forward.50} parent=5 // pred_fallthru
      _
    %p965 = scmp.le.s32.totalorder 2, %s10
    // Predicated region
    $region49: #{graformer_forward.50} parent=5 // pred_check
      %p966 = pneg %p965
    $region50: #{graformer_forward.50} parent=5 // pred_check_branch
      %968 = sbr.rel (%p966) target = $region52
    $region51: #{graformer_forward.50} parent=5 // pred_region
      %s969 = ssub.s32 %s10, 2
      // Predicated region
      $region53: #{graformer_forward.50} parent=51 // pred_check
        %p970 = pneg %p172
      $region54: #{graformer_forward.50} parent=51 // pred_check_branch
        %972 = sbr.rel (%p970) target = $region56
      $region55: #{graformer_forward.50} parent=51 // pred_region
        %p973 = scmp.lt.s32.totalorder %s23, 1
        %s974 = scalar_select %p973, %s23, 1
        %p975 = scmp.lt.s32.totalorder %s24, 0
        %s976 = scalar_select %p975, %s24, 0
        %s977 = sadd.s32 %s976, %s974
        %s978 = smul.addr %s977, 4
        %s979 = scalar_lea.vmem %s4, %s978
      $region56: #{graformer_forward.50} parent=51 // pred_fallthru
        _
    $region52: #{graformer_forward.50} parent=5 // pred_fallthru
      _
  $region6: #{graformer_forward.50} parent=0 // loop_footer
    %s14 = sadd.s32 1, %s10
  $region7: #{graformer_forward.50} parent=0 // loop_footer_branch
    %9 = sbr.rel target = $region3
  $region8: #{graformer_forward.50} parent=0 // loop_exit
    _

// kernel: graformer_forward.55
$region0: #{graformer_forward.55}
  #allocation0 [shape = 'u32[]', space=smem, size = 0x4, offset = 0x4, fixed_abs, tag = 'smem constant byte address 0x4 - core index']
  #allocation1 [shape = 'u32[144,128]{1,0:T(1,128)}', space=vmem, size = 0x12000, scoped, tag = 'internal scratch']
  #allocation2 [shape = 'f32[4,8,1]{2,1,0:T(8,128)}', space=vmem, size = 0x4000, scoped, tag = 'scratch operand']
  #allocation3 [shape = 'f32[4,8,1]{2,1,0:T(8,128)}', space=vmem, size = 0x4000, scoped, tag = 'scratch operand']
  #allocation4 [shape = 'f32[8,32]{1,0:T(8,128)}', space=vmem, size = 0x1000, scoped, tag = 'scratch operand']
  %s0 = inlined_call_operand.vmem [shape: bf16[2,8,32], index: 0, kind: input, shape index: {}]
  %s1 = inlined_call_operand.vmem [shape: bf16[2,8,32], index: 1, kind: input, shape index: {}]
  %s2 = inlined_call_operand.vmem [shape: bf16[2,8,32], index: 2, kind: input, shape index: {}]
  %s3 = inlined_call_operand.vmem [shape: bf16[2,8,32], index: 3, kind: output, shape index: {}]
  %s4 = sld [smem:[#allocation0]]
  $region53: #{graformer_forward.55} parent=0
    _
  %s6 = ssub.s32 1, %s4
  %s7 = scalar_select 0, %s6, %s4
  loop: start=0, step=1, limit=4
  $region2: #{graformer_forward.55} parent=0 // loop_pre_header
    _
  $region3: #{graformer_forward.55} parent=0 // loop_header
    %s9 = sphi 0, %s13
    %p10 = scmp.ge.s32.totalorder %s9, 4
    %s16 = sphi 0, %s35
    %s17 = sphi 0, %s31
    %s18 = sphi 0, %s27
    %s19 = sphi 0, %s16
    %s20 = sphi 0, %s17
    %s21 = sphi 0, %s18
    %s22 = sphi 0, %s19
    %s23 = sphi 0, %s20
    %s24 = sphi 0, %s21
    %s40 = sphi 0, %s42
    %s43 = sphi 0, %s40
    %s44 = sphi 0, %s43
    %s60 = sphi 0, %s44
    %s68 = sphi 0, %s70
    %s71 = sphi 0, %s68
    %s72 = sphi 0, %s71
    %s88 = sphi 0, %s72
    %s96 = sphi 0, %s98
    %s99 = sphi 0, %s96
    %s100 = sphi 0, %s99
    %s116 = sphi 0, %s100
    %s124 = sphi 0, %s126
    %s127 = sphi 0, %s124
    %s128 = sphi 0, %s127
    %s144 = sphi 0, %s128
  $region4: #{graformer_forward.55} parent=0 // loop_header_branch
    %12 = sbr.rel (%p10) target = $region8
  $region5: #{graformer_forward.55} parent=0 // loop_body
    %s14 = ssub.s32 %s9, 1
    %s15 = ssub.s32 %s9, 2
    %s25 = sadd.s32 1, %s18
    %p26 = scmp.ge.s32.totalorder %s25, 1
    %s27 = scalar_select %p26, 0, %s25
    %s28 = sadd.s32 1, %s17
    %s29 = scalar_select %p26, %s28, %s17
    %p30 = scmp.ge.s32.totalorder %s29, 1
    %s31 = scalar_select %p30, 0, %s29
    %s32 = sadd.s32 1, %s16
    %s33 = scalar_select %p30, %s32, %s16
    %p34 = scmp.ge.s32.totalorder %s33, 2
    %s35 = scalar_select %p34, 0, %s33
    %s36 = ssub.s32 %s16, %s35
    %s37 = ssub.s32 %s17, %s31
    %s38 = sor.u32 %s36, %s37
    %p39 = scmp.eq.s32.totalorder %s38, 0
    %s41 = sadd.s32 %s40, 1
    %s42 = scalar_select %p39, %s40, %s41
    %p45 = pneg %p39
    %p46 = scmp.eq.s32.totalorder %s9, 1
    %p47 = por %p45, %p46
    %p48 = scmp.ne.s32.totalorder %s40, %s43
    %p49 = scmp.eq.s32.totalorder %s9, 0
    %p50 = por %p48, %p49
    %p51 = scmp.ne.s32.totalorder %s40, %s43
    %p52 = scmp.eq.s32.totalorder %s14, 1
    %p53 = por %p51, %p52
    %p54 = scmp.ne.s32.totalorder %s43, %s44
    %p55 = scmp.eq.s32.totalorder %s14, 0
    %p56 = por %p54, %p55
    %p57 = scmp.ne.s32.totalorder %s43, %s44
    %p58 = scmp.eq.s32.totalorder %s15, 1
    %p59 = por %p57, %p58
    %p61 = scmp.ne.s32.totalorder %s44, %s60
    %p62 = scmp.eq.s32.totalorder %s15, 0
    %p63 = por %p61, %p62
    %s64 = ssub.s32 %s16, %s35
    %s65 = ssub.s32 %s18, %s27
    %s66 = sor.u32 %s64, %s65
    %p67 = scmp.eq.s32.totalorder %s66, 0
    %s69 = sadd.s32 %s68, 1
    %s70 = scalar_select %p67, %s68, %s69
    %p73 = pneg %p67
    %p74 = scmp.eq.s32.totalorder %s9, 1
    %p75 = por %p73, %p74
    %p76 = scmp.ne.s32.totalorder %s68, %s71
    %p77 = scmp.eq.s32.totalorder %s9, 0
    %p78 = por %p76, %p77
    %p79 = scmp.ne.s32.totalorder %s68, %s71
    %p80 = scmp.eq.s32.totalorder %s14, 1
    %p81 = por %p79, %p80
    %p82 = scmp.ne.s32.totalorder %s71, %s72
    %p83 = scmp.eq.s32.totalorder %s14, 0
    %p84 = por %p82, %p83
    %p85 = scmp.ne.s32.totalorder %s71, %s72
    %p86 = scmp.eq.s32.totalorder %s15, 1
    %p87 = por %p85, %p86
    %p89 = scmp.ne.s32.totalorder %s72, %s88
    %p90 = scmp.eq.s32.totalorder %s15, 0
    %p91 = por %p89, %p90
    %s92 = ssub.s32 %s16, %s35
    %s93 = ssub.s32 %s18, %s27
    %s94 = sor.u32 %s92, %s93
    %p95 = scmp.eq.s32.totalorder %s94, 0
    %s97 = sadd.s32 %s96, 1
    %s98 = scalar_select %p95, %s96, %s97
    %p101 = pneg %p95
    %p102 = scmp.eq.s32.totalorder %s9, 1
    %p103 = por %p101, %p102
    %p104 = scmp.ne.s32.totalorder %s96, %s99
    %p105 = scmp.eq.s32.totalorder %s9, 0
    %p106 = por %p104, %p105
    %p107 = scmp.ne.s32.totalorder %s96, %s99
    %p108 = scmp.eq.s32.totalorder %s14, 1
    %p109 = por %p107, %p108
    %p110 = scmp.ne.s32.totalorder %s99, %s100
    %p111 = scmp.eq.s32.totalorder %s14, 0
    %p112 = por %p110, %p111
    %p113 = scmp.ne.s32.totalorder %s99, %s100
    %p114 = scmp.eq.s32.totalorder %s15, 1
    %p115 = por %p113, %p114
    %p117 = scmp.ne.s32.totalorder %s100, %s116
    %p118 = scmp.eq.s32.totalorder %s15, 0
    %p119 = por %p117, %p118
    %s120 = ssub.s32 %s16, %s35
    %s121 = ssub.s32 %s17, %s31
    %s122 = sor.u32 %s120, %s121
    %p123 = scmp.eq.s32.totalorder %s122, 0
    %s125 = sadd.s32 %s124, 1
    %s126 = scalar_select %p123, %s124, %s125
    %p129 = pneg %p123
    %p130 = scmp.eq.s32.totalorder %s9, 1
    %p131 = por %p129, %p130
    %p132 = scmp.ne.s32.totalorder %s124, %s127
    %p133 = scmp.eq.s32.totalorder %s9, 0
    %p134 = por %p132, %p133
    %p135 = scmp.ne.s32.totalorder %s124, %s127
    %p136 = scmp.eq.s32.totalorder %s14, 1
    %p137 = por %p135, %p136
    %p138 = scmp.ne.s32.totalorder %s127, %s128
    %p139 = scmp.eq.s32.totalorder %s14, 0
    %p140 = por %p138, %p139
    %p141 = scmp.ne.s32.totalorder %s127, %s128
    %p142 = scmp.eq.s32.totalorder %s15, 1
    %p143 = por %p141, %p142
    %p145 = scmp.ne.s32.totalorder %s128, %s144
    %p146 = scmp.eq.s32.totalorder %s15, 0
    %p147 = por %p145, %p146
    %p148 = scmp.le.s32.totalorder 1, %s9
    %p149 = scmp.lt.s32.totalorder %s9, 3
    %p150 = pnand %p148, %p149
    %p151 = pneg %p150
    // Predicated region
    $region9: #{graformer_forward.55} parent=5 // pred_check
      _
    $region10: #{graformer_forward.55} parent=5 // pred_check_branch
      %153 = sbr.rel (%p150) target = $region12
    $region11: #{graformer_forward.55} parent=5 // pred_region
      %s154 = ssub.s32 %s9, 1
    $region12: #{graformer_forward.55} parent=5 // pred_fallthru
      _
    %p155 = scmp.lt.s32.totalorder %s9, 2
    // Predicated region
    $region13: #{graformer_forward.55} parent=5 // pred_check
      %p156 = pneg %p155
    $region14: #{graformer_forward.55} parent=5 // pred_check_branch
      %158 = sbr.rel (%p156) target = $region16
    $region15: #{graformer_forward.55} parent=5 // pred_region
      // Predicated region
      $region17: #{graformer_forward.55} parent=15 // pred_check
        %p159 = pneg %p50
      $region18: #{graformer_forward.55} parent=15 // pred_check_branch
        %161 = sbr.rel (%p159) target = $region20
      $region19: #{graformer_forward.55} parent=15 // pred_region
        %p162 = scmp.lt.s32.totalorder %s16, 1
        %s163 = scalar_select %p162, %s16, 1
        %p164 = scmp.lt.s32.totalorder %s17, 0
        %s165 = scalar_select %p164, %s17, 0
        %s166 = sadd.s32 %s165, %s163
        %s167 = smul.addr %s166, 4
        %s168 = scalar_lea.vmem %s0, %s167
      $region20: #{graformer_forward.55} parent=15 // pred_fallthru
        _
      // Predicated region
      $region21: #{graformer_forward.55} parent=15 // pred_check
        %p169 = pneg %p78
      $region22: #{graformer_forward.55} parent=15 // pred_check_branch
        %171 = sbr.rel (%p169) target = $region24
      $region23: #{graformer_forward.55} parent=15 // pred_region
        %p172 = scmp.lt.s32.totalorder %s16, 1
        %s173 = scalar_select %p172, %s16, 1
        %p174 = scmp.lt.s32.totalorder %s18, 0
        %s175 = scalar_select %p174, %s18, 0
        %s176 = sadd.s32 %s175, %s173
        %s177 = smul.addr %s176, 4
        %s178 = scalar_lea.vmem %s1, %s177
      $region24: #{graformer_forward.55} parent=15 // pred_fallthru
        _
      // Predicated region
      $region25: #{graformer_forward.55} parent=15 // pred_check
        %p179 = pneg %p106
      $region26: #{graformer_forward.55} parent=15 // pred_check_branch
        %181 = sbr.rel (%p179) target = $region28
      $region27: #{graformer_forward.55} parent=15 // pred_region
        %p182 = scmp.lt.s32.totalorder %s16, 1
        %s183 = scalar_select %p182, %s16, 1
        %p184 = scmp.lt.s32.totalorder %s18, 0
        %s185 = scalar_select %p184, %s18, 0
        %s186 = sadd.s32 %s185, %s183
        %s187 = smul.addr %s186, 4
        %s188 = scalar_lea.vmem %s2, %s187
      $region28: #{graformer_forward.55} parent=15 // pred_fallthru
        _
    $region16: #{graformer_forward.55} parent=5 // pred_fallthru
      _
    %p189 = scmp.le.s32.totalorder 1, %s9
    %p190 = scmp.lt.s32.totalorder %s9, 3
    %p191 = pnand %p189, %p190
    %p192 = pneg %p191
    // Predicated region
    $region29: #{graformer_forward.55} parent=5 // pred_check
      _
    $region30: #{graformer_forward.55} parent=5 // pred_check_branch
      %194 = sbr.rel (%p191) target = $region32
    $region31: #{graformer_forward.55} parent=5 // pred_region
      %s195 = ssub.s32 %s9, 1
      %p196 = scmp.lt.s32.totalorder %s19, 1
      %s197 = scalar_select %p196, %s19, 1
      %p198 = scmp.lt.s32.totalorder %s20, 0
      %s199 = scalar_select %p198, %s20, 0
      %s200 = sadd.s32 %s199, %s197
      %s201 = smul.addr %s200, 4
      %s202 = scalar_lea.vmem %s0, %s201
      %p203 = pneg %p56
      %p204 = pneg %p53
      %p205 = scmp.lt.s32.totalorder %s19, 1
      %s206 = scalar_select %p205, %s19, 1
      %p207 = scmp.lt.s32.totalorder %s21, 0
      %s208 = scalar_select %p207, %s21, 0
      %s209 = sadd.s32 %s208, %s206
      %s210 = smul.addr %s209, 4
      %s211 = scalar_lea.vmem %s1, %s210
      %p212 = pneg %p84
      %p213 = pneg %p81
      %p214 = scmp.lt.s32.totalorder %s19, 1
      %s215 = scalar_select %p214, %s19, 1
      %p216 = scmp.lt.s32.totalorder %s21, 0
      %s217 = scalar_select %p216, %s21, 0
      %s218 = sadd.s32 %s217, %s215
      %s219 = smul.addr %s218, 4
      %s220 = scalar_lea.vmem %s2, %s219
      %p221 = pneg %p112
      %p222 = pneg %p109
      %p223 = pneg %p140
      %p224 = pneg %p137
      %p225 = scmp.lt.s32.totalorder %s19, 1
      %s226 = scalar_select %p225, %s19, 1
      %p227 = scmp.lt.s32.totalorder %s20, 0
      %s228 = scalar_select %p227, %s20, 0
      %s229 = sadd.s32 %s228, %s226
      %s230 = smul.addr %s229, 4
      %s231 = scalar_lea.vmem %s3, %s230
      %p232 = scmp.lt.s32.totalorder %s19, 1
      %s233 = scalar_select %p232, %s19, 1
      %p234 = scmp.lt.s32.totalorder %s20, 0
      %s235 = scalar_select %p234, %s20, 0
      %s236 = sadd.s32 %s235, %s233
      %s237 = smul.addr %s236, 4
      %s238 = scalar_lea.vmem %s0, %s237
      %p239 = scmp.lt.s32.totalorder %s19, 1
      %s240 = scalar_select %p239, %s19, 1
      %p241 = scmp.lt.s32.totalorder %s21, 0
      %s242 = scalar_select %p241, %s21, 0
      %s243 = sadd.s32 %s242, %s240
      %s244 = smul.addr %s243, 4
      %s245 = scalar_lea.vmem %s1, %s244
      %p246 = scmp.lt.s32.totalorder %s19, 1
      %s247 = scalar_select %p246, %s19, 1
      %p248 = scmp.lt.s32.totalorder %s21, 0
      %s249 = scalar_select %p248, %s21, 0
      %s250 = sadd.s32 %s249, %s247
      %s251 = smul.addr %s250, 4
      %s252 = scalar_lea.vmem %s2, %s251
      %p253 = scmp.lt.s32.totalorder %s19, 1
      %s254 = scalar_select %p253, %s19, 1
      %p255 = scmp.lt.s32.totalorder %s20, 0
      %s256 = scalar_select %p255, %s20, 0
      %s257 = sadd.s32 %s256, %s254
      %s258 = smul.addr %s257, 4
      %s259 = scalar_lea.vmem %s3, %s258
      %p262 = scmp.eq.s32.totalorder %s21, 0
      // Predicated region
      $region33: #{graformer_forward.55} parent=31 // pred_check
        %p263 = pneg %p262
      $region34: #{graformer_forward.55} parent=31 // pred_check_branch
        %265 = sbr.rel (%p263) target = $region36
      $region35: #{graformer_forward.55} parent=31 // pred_region
        %vm266 = vcmask 7168
        %267 = vst.msk [vmem:[#allocation2] sm:$0xff] %vm266, -1e+30
        %268 = vst.msk [vmem:[#allocation2 + $0x8] sm:$0xff] %vm266, -1e+30
        %269 = vst.msk [vmem:[#allocation2 + $0x10] sm:$0xff] %vm266, -1e+30
        %270 = vst.msk [vmem:[#allocation2 + $0x18] sm:$0xff] %vm266, -1e+30
        %271 = vst.msk [vmem:[#allocation3] sm:$0xff] %vm266, 0.0
        %272 = vst.msk [vmem:[#allocation3 + $0x8] sm:$0xff] %vm266, 0.0
        %273 = vst.msk [vmem:[#allocation3 + $0x10] sm:$0xff] %vm266, 0.0
        %274 = vst.msk [vmem:[#allocation3 + $0x18] sm:$0xff] %vm266, 0.0
        %vm275 = vcmask 261120
        %276 = vst.msk [vmem:[#allocation4] sm:$0xff] %vm275, 0.0
      $region36: #{graformer_forward.55} parent=31 // pred_fallthru
        _
      %v277 = vld [vmem:[%s238] sm:$0xf]
      %v278 = vmul.bf16 %v277, 1052065461
      %v279 = vld [vmem:[%s245] sm:$0xf]
      %v280 = vld [vmem:[%s252] sm:$0xf]
      %vm281 = vcmask 64512
      %v283 = vsel %vm281, %v278, 0
      %v286 = vsel %vm281, %v279, 0
      %288 = vmatprep.subr.bf16.mxu0 0
      %289 = vmatpush1.bf16.xpose.msra.mxu0 0
      %290 = vmatprep.subr.bf16.mxu0 0
      %291 = vmatpush1.bf16.xpose.msra.mxu0 0
      %292 = vmatprep.subr.bf16.mxu0 0
      %293 = vmatpush1.bf16.xpose.msra.mxu0 0
      %294 = vmatprep.subr.bf16.mxu0 0
      %295 = vmatpush1.bf16.xpose.msra.mxu0 0
      %296 = vmatprep.subr.bf16.mxu0 0
      %297 = vmatpush1.bf16.xpose.msra.mxu0 0
      %298 = vmatprep.subr.bf16.mxu0 0
      %299 = vmatpush1.bf16.xpose.msra.mxu0 0
      %300 = vmatprep.subr.bf16.mxu0 0
      %301 = vmatpush1.bf16.xpose.msra.mxu0 0
      %302 = vmatprep.subr.bf16.mxu0 0
      %303 = vmatpush1.bf16.xpose.msra.mxu0 %v286
      %304 = vmatprep.subr.bf16.mxu0 0
      %305 = vmatpush2.bf16.xpose.msra.mxu0 0
      %306 = vmatprep.subr.bf16.mxu0 0
      %307 = vmatpush2.bf16.xpose.msra.mxu0 0
      %308 = vmatprep.subr.bf16.mxu0 0
      %309 = vmatpush2.bf16.xpose.msra.mxu0 0
      %310 = vmatprep.subr.bf16.mxu0 0
      %311 = vmatpush2.bf16.xpose.msra.mxu0 0
      %312 = vmatprep.subr.bf16.mxu0 0
      %313 = vmatpush2.bf16.xpose.msra.mxu0 0
      %314 = vmatprep.subr.bf16.mxu0 0
      %315 = vmatpush2.bf16.xpose.msra.mxu0 0
      %316 = vmatprep.subr.bf16.mxu0 0
      %317 = vmatpush2.bf16.xpose.msra.mxu0 0
      %318 = vmatprep.subr.bf16.mxu0 0
      %319 = vmatpush2.bf16.xpose.msra.mxu0 0
      %320 = vmatprep.mubr.bf16.mxu0 0
      %321 = vmatmul.mubr.bf16.gmra.mxu0 %v283
      %v322 = vpop.f32.mrf.mxu0
      %v323 = vadd.f32 0.0, %v322
      %v324 = vpop.f32.mrf.mxu0
      %v325 = vpop.f32.mrf.mxu0
      %v326 = vpop.f32.mrf.mxu0
      %327 = vdwg.mxu0
      %v328 = vld [vmem:[#allocation2] sm:$0xff]
      %v329 = vsel %vm281, %v323, -inf
      %330 = vmax.xlane.f32.xlu0 %v329
      %v331 = vpop.xlane.xlu0 %330
      %v332 = vmax.f32 %v328, %v331
      %v333 = vsub.f32 %v328, %v332
      %v334 = vmul.f32 %v333, 1.442695
      %v335 = vpow.pop %v334
      %337 = vset.pattern.permute.xlu0 0
      %338 = vperm.xlu0 %337, %v332
      %v339 = vpop.permute.xlu0 %338
      %v341 = vsub.f32 %v323, %v339
      %v342 = vmul.f32 %v341, 1.442695
      %v343 = vpow.pop %v342
      %v344 = vld [vmem:[#allocation3] sm:$0xff]
      %v345 = vmul.f32 %v335, %v344
      %v346 = vsel %vm281, %v343, 0.0
      %347 = vadd.xlane.f32.xlu0 %v346
      %v348 = vpop.xlane.xlu0 %347
      %v349 = vadd.f32 %v345, %v348
      %vm350 = vcmask 7168
      %351 = vst.msk [vmem:[#allocation3] sm:$0xff] %vm350, %v349
      %352 = vst.msk [vmem:[#allocation2] sm:$0xff] %vm350, %v332
      %v353 = vpack.c.bf16 %v343, %v343
      %v355 = vsel %vm281, %v353, 0
      %vm357 = vcmask 1043456
      %v359 = vsel %vm357, %v280, 0
      %361 = vmatprep.subr.bf16.mxu0 0
      %362 = vmatpush1.bf16.msra.mxu0 0
      %363 = vmatprep.subr.bf16.mxu0 0
      %364 = vmatpush1.bf16.msra.mxu0 0
      %365 = vmatprep.subr.bf16.mxu0 0
      %366 = vmatpush1.bf16.msra.mxu0 0
      %367 = vmatprep.subr.bf16.mxu0 0
      %368 = vmatpush1.bf16.msra.mxu0 0
      %369 = vmatprep.subr.bf16.mxu0 0
      %370 = vmatpush1.bf16.msra.mxu0 0
      %371 = vmatprep.subr.bf16.mxu0 0
      %372 = vmatpush1.bf16.msra.mxu0 0
      %373 = vmatprep.subr.bf16.mxu0 0
      %374 = vmatpush1.bf16.msra.mxu0 0
      %375 = vmatprep.subr.bf16.mxu0 0
      %376 = vmatpush1.bf16.msra.mxu0 %v359
      %377 = vmatprep.subr.bf16.mxu0 0
      %378 = vmatpush2.bf16.msra.mxu0 0
      %379 = vmatprep.subr.bf16.mxu0 0
      %380 = vmatpush2.bf16.msra.mxu0 0
      %381 = vmatprep.subr.bf16.mxu0 0
      %382 = vmatpush2.bf16.msra.mxu0 0
      %383 = vmatprep.subr.bf16.mxu0 0
      %384 = vmatpush2.bf16.msra.mxu0 0
      %385 = vmatprep.subr.bf16.mxu0 0
      %386 = vmatpush2.bf16.msra.mxu0 0
      %387 = vmatprep.subr.bf16.mxu0 0
      %388 = vmatpush2.bf16.msra.mxu0 0
      %389 = vmatprep.subr.bf16.mxu0 0
      %390 = vmatpush2.bf16.msra.mxu0 0
      %391 = vmatprep.subr.bf16.mxu0 0
      %392 = vmatpush2.bf16.msra.mxu0 0
      %393 = vmatprep.mubr.bf16.mxu0 0
      %394 = vmatmul.mubr.bf16.gmra.mxu0 %v355
      %v395 = vpop.f32.mrf.mxu0
      %v396 = vadd.f32 0.0, %v395
      %v397 = vpop.f32.mrf.mxu0
      %v398 = vpop.f32.mrf.mxu0
      %v399 = vpop.f32.mrf.mxu0
      %400 = vdwg.mxu0
      %v401 = vld [vmem:[#allocation4] sm:$0xff]
      %403 = vset.pattern.permute.xlu0 0
      %404 = vperm.xlu0 %403, %v335
      %v405 = vpop.permute.xlu0 %404
      %v407 = vmul.f32 %v405, %v401
      %v408 = vadd.f32 %v407, %v396
      %409 = vst.msk [vmem:[#allocation4] sm:$0xff] %vm281, %v408
      %v411 = vunpack.c.l.b16 %v278
      %v412 = vpack.c.b16 %v411, %v411
      %413 = vrot.lane.b32.xlu0 %v412, 120
      %v414 = vpop.permute.xlu0 %413
      %v416 = vunpack.c.l.b16 %v279
      %v417 = vpack.c.b16 %v416, %v416
      %418 = vrot.lane.b32.xlu0 %v417, 120
      %v419 = vpop.permute.xlu0 %418
      %v421 = vsel %vm281, %v414, 0
      %v424 = vsel %vm281, %v419, 0
      %426 = vmatprep.subr.bf16.mxu0 0
      %427 = vmatpush1.bf16.xpose.msra.mxu0 0
      %428 = vmatprep.subr.bf16.mxu0 0
      %429 = vmatpush1.bf16.xpose.msra.mxu0 0
      %430 = vmatprep.subr.bf16.mxu0 0
      %431 = vmatpush1.bf16.xpose.msra.mxu0 0
      %432 = vmatprep.subr.bf16.mxu0 0
      %433 = vmatpush1.bf16.xpose.msra.mxu0 0
      %434 = vmatprep.subr.bf16.mxu0 0
      %435 = vmatpush1.bf16.xpose.msra.mxu0 0
      %436 = vmatprep.subr.bf16.mxu0 0
      %437 = vmatpush1.bf16.xpose.msra.mxu0 0
      %438 = vmatprep.subr.bf16.mxu0 0
      %439 = vmatpush1.bf16.xpose.msra.mxu0 0
      %440 = vmatprep.subr.bf16.mxu0 0
      %441 = vmatpush1.bf16.xpose.msra.mxu0 %v424
      %442 = vmatprep.subr.bf16.mxu0 0
      %443 = vmatpush2.bf16.xpose.msra.mxu0 0
      %444 = vmatprep.subr.bf16.mxu0 0
      %445 = vmatpush2.bf16.xpose.msra.mxu0 0
      %446 = vmatprep.subr.bf16.mxu0 0
      %447 = vmatpush2.bf16.xpose.msra.mxu0 0
      %448 = vmatprep.subr.bf16.mxu0 0
      %449 = vmatpush2.bf16.xpose.msra.mxu0 0
      %450 = vmatprep.subr.bf16.mxu0 0
      %451 = vmatpush2.bf16.xpose.msra.mxu0 0
      %452 = vmatprep.subr.bf16.mxu0 0
      %453 = vmatpush2.bf16.xpose.msra.mxu0 0
      %454 = vmatprep.subr.bf16.mxu0 0
      %455 = vmatpush2.bf16.xpose.msra.mxu0 0
      %456 = vmatprep.subr.bf16.mxu0 0
      %457 = vmatpush2.bf16.xpose.msra.mxu0 0
      %458 = vmatprep.mubr.bf16.mxu0 0
      %459 = vmatmul.mubr.bf16.gmra.mxu0 %v421
      %v460 = vpop.f32.mrf.mxu0
      %v461 = vadd.f32 0.0, %v460
      %v462 = vpop.f32.mrf.mxu0
      %v463 = vpop.f32.mrf.mxu0
      %v464 = vpop.f32.mrf.mxu0
      %465 = vdwg.mxu0
      %s466 = scalar_lea.vmem [#allocation2], 8
      %v467 = vld [vmem:[%s466] sm:$0xff]
      %v468 = vsel %vm281, %v461, -inf
      %469 = vmax.xlane.f32.xlu0 %v468
      %v470 = vpop.xlane.xlu0 %469
      %v471 = vmax.f32 %v467, %v470
      %v472 = vsub.f32 %v467, %v471
      %v473 = vmul.f32 %v472, 1.442695
      %v474 = vpow.pop %v473
      %476 = vset.pattern.permute.xlu0 0
      %477 = vperm.xlu0 %476, %v471
      %v478 = vpop.permute.xlu0 %477
      %v480 = vsub.f32 %v461, %v478
      %v481 = vmul.f32 %v480, 1.442695
      %v482 = vpow.pop %v481
      %s483 = scalar_lea.vmem [#allocation3], 8
      %v484 = vld [vmem:[%s483] sm:$0xff]
      %v485 = vmul.f32 %v474, %v484
      %v486 = vsel %vm281, %v482, 0.0
      %487 = vadd.xlane.f32.xlu0 %v486
      %v488 = vpop.xlane.xlu0 %487
      %v489 = vadd.f32 %v485, %v488
      %490 = vst.msk [vmem:[%s483] sm:$0xff] %vm350, %v489
      %491 = vst.msk [vmem:[%s466] sm:$0xff] %vm350, %v471
      %v492 = vpack.c.bf16 %v482, %v482
      %v494 = vunpack.c.l.b16 %v280
      %v495 = vpack.c.b16 %v494, %v494
      %496 = vrot.lane.b32.xlu0 %v495, 120
      %v497 = vpop.permute.xlu0 %496
      %v499 = vsel %vm281, %v492, 0
      %v502 = vsel %vm357, %v497, 0
      %504 = vmatprep.subr.bf16.mxu0 0
      %505 = vmatpush1.bf16.msra.mxu0 0
      %506 = vmatprep.subr.bf16.mxu0 0
      %507 = vmatpush1.bf16.msra.mxu0 0
      %508 = vmatprep.subr.bf16.mxu0 0
      %509 = vmatpush1.bf16.msra.mxu0 0
      %510 = vmatprep.subr.bf16.mxu0 0
      %511 = vmatpush1.bf16.msra.mxu0 0
      %512 = vmatprep.subr.bf16.mxu0 0
      %513 = vmatpush1.bf16.msra.mxu0 0
      %514 = vmatprep.subr.bf16.mxu0 0
      %515 = vmatpush1.bf16.msra.mxu0 0
      %516 = vmatprep.subr.bf16.mxu0 0
      %517 = vmatpush1.bf16.msra.mxu0 0
      %518 = vmatprep.subr.bf16.mxu0 0
      %519 = vmatpush1.bf16.msra.mxu0 %v502
      %520 = vmatprep.subr.bf16.mxu0 0
      %521 = vmatpush2.bf16.msra.mxu0 0
      %522 = vmatprep.subr.bf16.mxu0 0
      %523 = vmatpush2.bf16.msra.mxu0 0
      %524 = vmatprep.subr.bf16.mxu0 0
      %525 = vmatpush2.bf16.msra.mxu0 0
      %526 = vmatprep.subr.bf16.mxu0 0
      %527 = vmatpush2.bf16.msra.mxu0 0
      %528 = vmatprep.subr.bf16.mxu0 0
      %529 = vmatpush2.bf16.msra.mxu0 0
      %530 = vmatprep.subr.bf16.mxu0 0
      %531 = vmatpush2.bf16.msra.mxu0 0
      %532 = vmatprep.subr.bf16.mxu0 0
      %533 = vmatpush2.bf16.msra.mxu0 0
      %534 = vmatprep.subr.bf16.mxu0 0
      %535 = vmatpush2.bf16.msra.mxu0 0
      %536 = vmatprep.mubr.bf16.mxu0 0
      %537 = vmatmul.mubr.bf16.gmra.mxu0 %v499
      %v538 = vpop.f32.mrf.mxu0
      %v539 = vadd.f32 0.0, %v538
      %v540 = vpop.f32.mrf.mxu0
      %v541 = vpop.f32.mrf.mxu0
      %v542 = vpop.f32.mrf.mxu0
      %543 = vdwg.mxu0
      %v544 = vld [vmem:[#allocation4] sm:$0xff]
      %546 = vset.pattern.permute.xlu0 0
      %547 = vperm.xlu0 %546, %v474
      %v548 = vpop.permute.xlu0 %547
      %v550 = vmul.f32 %v548, %v544
      %552 = vrot.lane.b32.xlu0 %v539, 8
      %v553 = vpop.permute.xlu0 %552
      %v555 = vadd.f32 %v550, %v553
      %vm556 = vcmask 130112
      %557 = vst.msk [vmem:[#allocation4] sm:$0xff] %vm556, %v555
      %558 = vrot.lane.b32.xlu0 %v412, 112
      %v559 = vpop.permute.xlu0 %558
      %560 = vrot.lane.b32.xlu0 %v417, 112
      %v561 = vpop.permute.xlu0 %560
      %v563 = vsel %vm281, %v559, 0
      %v566 = vsel %vm281, %v561, 0
      %568 = vmatprep.subr.bf16.mxu0 0
      %569 = vmatpush1.bf16.xpose.msra.mxu0 0
      %570 = vmatprep.subr.bf16.mxu0 0
      %571 = vmatpush1.bf16.xpose.msra.mxu0 0
      %572 = vmatprep.subr.bf16.mxu0 0
      %573 = vmatpush1.bf16.xpose.msra.mxu0 0
      %574 = vmatprep.subr.bf16.mxu0 0
      %575 = vmatpush1.bf16.xpose.msra.mxu0 0
      %576 = vmatprep.subr.bf16.mxu0 0
      %577 = vmatpush1.bf16.xpose.msra.mxu0 0
      %578 = vmatprep.subr.bf16.mxu0 0
      %579 = vmatpush1.bf16.xpose.msra.mxu0 0
      %580 = vmatprep.subr.bf16.mxu0 0
      %581 = vmatpush1.bf16.xpose.msra.mxu0 0
      %582 = vmatprep.subr.bf16.mxu0 0
      %583 = vmatpush1.bf16.xpose.msra.mxu0 %v566
      %584 = vmatprep.subr.bf16.mxu0 0
      %585 = vmatpush2.bf16.xpose.msra.mxu0 0
      %586 = vmatprep.subr.bf16.mxu0 0
      %587 = vmatpush2.bf16.xpose.msra.mxu0 0
      %588 = vmatprep.subr.bf16.mxu0 0
      %589 = vmatpush2.bf16.xpose.msra.mxu0 0
      %590 = vmatprep.subr.bf16.mxu0 0
      %591 = vmatpush2.bf16.xpose.msra.mxu0 0
      %592 = vmatprep.subr.bf16.mxu0 0
      %593 = vmatpush2.bf16.xpose.msra.mxu0 0
      %594 = vmatprep.subr.bf16.mxu0 0
      %595 = vmatpush2.bf16.xpose.msra.mxu0 0
      %596 = vmatprep.subr.bf16.mxu0 0
      %597 = vmatpush2.bf16.xpose.msra.mxu0 0
      %598 = vmatprep.subr.bf16.mxu0 0
      %599 = vmatpush2.bf16.xpose.msra.mxu0 0
      %600 = vmatprep.mubr.bf16.mxu0 0
      %601 = vmatmul.mubr.bf16.gmra.mxu0 %v563
      %v602 = vpop.f32.mrf.mxu0
      %v603 = vadd.f32 0.0, %v602
      %v604 = vpop.f32.mrf.mxu0
      %v605 = vpop.f32.mrf.mxu0
      %v606 = vpop.f32.mrf.mxu0
      %607 = vdwg.mxu0
      %s608 = scalar_lea.vmem [#allocation2], 16
      %v609 = vld [vmem:[%s608] sm:$0xff]
      %v610 = vsel %vm281, %v603, -inf
      %611 = vmax.xlane.f32.xlu0 %v610
      %v612 = vpop.xlane.xlu0 %611
      %v613 = vmax.f32 %v609, %v612
      %v614 = vsub.f32 %v609, %v613
      %v615 = vmul.f32 %v614, 1.442695
      %v616 = vpow.pop %v615
      %618 = vset.pattern.permute.xlu0 0
      %619 = vperm.xlu0 %618, %v613
      %v620 = vpop.permute.xlu0 %619
      %v622 = vsub.f32 %v603, %v620
      %v623 = vmul.f32 %v622, 1.442695
      %v624 = vpow.pop %v623
      %s625 = scalar_lea.vmem [#allocation3], 16
      %v626 = vld [vmem:[%s625] sm:$0xff]
      %v627 = vmul.f32 %v616, %v626
      %v628 = vsel %vm281, %v624, 0.0
      %629 = vadd.xlane.f32.xlu0 %v628
      %v630 = vpop.xlane.xlu0 %629
      %v631 = vadd.f32 %v627, %v630
      %632 = vst.msk [vmem:[%s625] sm:$0xff] %vm350, %v631
      %633 = vst.msk [vmem:[%s608] sm:$0xff] %vm350, %v613
      %v634 = vpack.c.bf16 %v624, %v624
      %635 = vrot.lane.b32.xlu0 %v495, 112
      %v636 = vpop.permute.xlu0 %635
      %v638 = vsel %vm281, %v634, 0
      %v641 = vsel %vm357, %v636, 0
      %643 = vmatprep.subr.bf16.mxu0 0
      %644 = vmatpush1.bf16.msra.mxu0 0
      %645 = vmatprep.subr.bf16.mxu0 0
      %646 = vmatpush1.bf16.msra.mxu0 0
      %647 = vmatprep.subr.bf16.mxu0 0
      %648 = vmatpush1.bf16.msra.mxu0 0
      %649 = vmatprep.subr.bf16.mxu0 0
      %650 = vmatpush1.bf16.msra.mxu0 0
      %651 = vmatprep.subr.bf16.mxu0 0
      %652 = vmatpush1.bf16.msra.mxu0 0
      %653 = vmatprep.subr.bf16.mxu0 0
      %654 = vmatpush1.bf16.msra.mxu0 0
      %655 = vmatprep.subr.bf16.mxu0 0
      %656 = vmatpush1.bf16.msra.mxu0 0
      %657 = vmatprep.subr.bf16.mxu0 0
      %658 = vmatpush1.bf16.msra.mxu0 %v641
      %659 = vmatprep.subr.bf16.mxu0 0
      %660 = vmatpush2.bf16.msra.mxu0 0
      %661 = vmatprep.subr.bf16.mxu0 0
      %662 = vmatpush2.bf16.msra.mxu0 0
      %663 = vmatprep.subr.bf16.mxu0 0
      %664 = vmatpush2.bf16.msra.mxu0 0
      %665 = vmatprep.subr.bf16.mxu0 0
      %666 = vmatpush2.bf16.msra.mxu0 0
      %667 = vmatprep.subr.bf16.mxu0 0
      %668 = vmatpush2.bf16.msra.mxu0 0
      %669 = vmatprep.subr.bf16.mxu0 0
      %670 = vmatpush2.bf16.msra.mxu0 0
      %671 = vmatprep.subr.bf16.mxu0 0
      %672 = vmatpush2.bf16.msra.mxu0 0
      %673 = vmatprep.subr.bf16.mxu0 0
      %674 = vmatpush2.bf16.msra.mxu0 0
      %675 = vmatprep.mubr.bf16.mxu0 0
      %676 = vmatmul.mubr.bf16.gmra.mxu0 %v638
      %v677 = vpop.f32.mrf.mxu0
      %v678 = vadd.f32 0.0, %v677
      %v679 = vpop.f32.mrf.mxu0
      %v680 = vpop.f32.mrf.mxu0
      %v681 = vpop.f32.mrf.mxu0
      %682 = vdwg.mxu0
      %v683 = vld [vmem:[#allocation4] sm:$0xff]
      %685 = vset.pattern.permute.xlu0 0
      %686 = vperm.xlu0 %685, %v616
      %v687 = vpop.permute.xlu0 %686
      %v689 = vmul.f32 %v687, %v683
      %691 = vrot.lane.b32.xlu0 %v678, 16
      %v692 = vpop.permute.xlu0 %691
      %v694 = vadd.f32 %v689, %v692
      %vm695 = vcmask 195712
      %696 = vst.msk [vmem:[#allocation4] sm:$0xff] %vm695, %v694
      %697 = vrot.lane.b32.xlu0 %v412, 104
      %v698 = vpop.permute.xlu0 %697
      %699 = vrot.lane.b32.xlu0 %v417, 104
      %v700 = vpop.permute.xlu0 %699
      %v702 = vsel %vm281, %v698, 0
      %v705 = vsel %vm281, %v700, 0
      %707 = vmatprep.subr.bf16.mxu0 0
      %708 = vmatpush1.bf16.xpose.msra.mxu0 0
      %709 = vmatprep.subr.bf16.mxu0 0
      %710 = vmatpush1.bf16.xpose.msra.mxu0 0
      %711 = vmatprep.subr.bf16.mxu0 0
      %712 = vmatpush1.bf16.xpose.msra.mxu0 0
      %713 = vmatprep.subr.bf16.mxu0 0
      %714 = vmatpush1.bf16.xpose.msra.mxu0 0
      %715 = vmatprep.subr.bf16.mxu0 0
      %716 = vmatpush1.bf16.xpose.msra.mxu0 0
      %717 = vmatprep.subr.bf16.mxu0 0
      %718 = vmatpush1.bf16.xpose.msra.mxu0 0
      %719 = vmatprep.subr.bf16.mxu0 0
      %720 = vmatpush1.bf16.xpose.msra.mxu0 0
      %721 = vmatprep.subr.bf16.mxu0 0
      %722 = vmatpush1.bf16.xpose.msra.mxu0 %v705
      %723 = vmatprep.subr.bf16.mxu0 0
      %724 = vmatpush2.bf16.xpose.msra.mxu0 0
      %725 = vmatprep.subr.bf16.mxu0 0
      %726 = vmatpush2.bf16.xpose.msra.mxu0 0
      %727 = vmatprep.subr.bf16.mxu0 0
      %728 = vmatpush2.bf16.xpose.msra.mxu0 0
      %729 = vmatprep.subr.bf16.mxu0 0
      %730 = vmatpush2.bf16.xpose.msra.mxu0 0
      %731 = vmatprep.subr.bf16.mxu0 0
      %732 = vmatpush2.bf16.xpose.msra.mxu0 0
      %733 = vmatprep.subr.bf16.mxu0 0
      %734 = vmatpush2.bf16.xpose.msra.mxu0 0
      %735 = vmatprep.subr.bf16.mxu0 0
      %736 = vmatpush2.bf16.xpose.msra.mxu0 0
      %737 = vmatprep.subr.bf16.mxu0 0
      %738 = vmatpush2.bf16.xpose.msra.mxu0 0
      %739 = vmatprep.mubr.bf16.mxu0 0
      %740 = vmatmul.mubr.bf16.gmra.mxu0 %v702
      %v741 = vpop.f32.mrf.mxu0
      %v742 = vadd.f32 0.0, %v741
      %v743 = vpop.f32.mrf.mxu0
      %v744 = vpop.f32.mrf.mxu0
      %v745 = vpop.f32.mrf.mxu0
      %746 = vdwg.mxu0
      %s747 = scalar_lea.vmem [#allocation2], 24
      %v748 = vld [vmem:[%s747] sm:$0xff]
      %v749 = vsel %vm281, %v742, -inf
      %750 = vmax.xlane.f32.xlu0 %v749
      %v751 = vpop.xlane.xlu0 %750
      %v752 = vmax.f32 %v748, %v751
      %v753 = vsub.f32 %v748, %v752
      %v754 = vmul.f32 %v753, 1.442695
      %v755 = vpow.pop %v754
      %757 = vset.pattern.permute.xlu0 0
      %758 = vperm.xlu0 %757, %v752
      %v759 = vpop.permute.xlu0 %758
      %v761 = vsub.f32 %v742, %v759
      %v762 = vmul.f32 %v761, 1.442695
      %v763 = vpow.pop %v762
      %s764 = scalar_lea.vmem [#allocation3], 24
      %v765 = vld [vmem:[%s764] sm:$0xff]
      %v766 = vmul.f32 %v755, %v765
      %v767 = vsel %vm281, %v763, 0.0
      %768 = vadd.xlane.f32.xlu0 %v767
      %v769 = vpop.xlane.xlu0 %768
      %v770 = vadd.f32 %v766, %v769
      %771 = vst.msk [vmem:[%s764] sm:$0xff] %vm350, %v770
      %772 = vst.msk [vmem:[%s747] sm:$0xff] %vm350, %v752
      %v773 = vpack.c.bf16 %v763, %v763
      %774 = vrot.lane.b32.xlu0 %v495, 104
      %v775 = vpop.permute.xlu0 %774
      %v777 = vsel %vm281, %v773, 0
      %v780 = vsel %vm357, %v775, 0
      %782 = vmatprep.subr.bf16.mxu0 0
      %783 = vmatpush1.bf16.msra.mxu0 0
      %784 = vmatprep.subr.bf16.mxu0 0
      %785 = vmatpush1.bf16.msra.mxu0 0
      %786 = vmatprep.subr.bf16.mxu0 0
      %787 = vmatpush1.bf16.msra.mxu0 0
      %788 = vmatprep.subr.bf16.mxu0 0
      %789 = vmatpush1.bf16.msra.mxu0 0
      %790 = vmatprep.subr.bf16.mxu0 0
      %791 = vmatpush1.bf16.msra.mxu0 0
      %792 = vmatprep.subr.bf16.mxu0 0
      %793 = vmatpush1.bf16.msra.mxu0 0
      %794 = vmatprep.subr.bf16.mxu0 0
      %795 = vmatpush1.bf16.msra.mxu0 0
      %796 = vmatprep.subr.bf16.mxu0 0
      %797 = vmatpush1.bf16.msra.mxu0 %v780
      %798 = vmatprep.subr.bf16.mxu0 0
      %799 = vmatpush2.bf16.msra.mxu0 0
      %800 = vmatprep.subr.bf16.mxu0 0
      %801 = vmatpush2.bf16.msra.mxu0 0
      %802 = vmatprep.subr.bf16.mxu0 0
      %803 = vmatpush2.bf16.msra.mxu0 0
      %804 = vmatprep.subr.bf16.mxu0 0
      %805 = vmatpush2.bf16.msra.mxu0 0
      %806 = vmatprep.subr.bf16.mxu0 0
      %807 = vmatpush2.bf16.msra.mxu0 0
      %808 = vmatprep.subr.bf16.mxu0 0
      %809 = vmatpush2.bf16.msra.mxu0 0
      %810 = vmatprep.subr.bf16.mxu0 0
      %811 = vmatpush2.bf16.msra.mxu0 0
      %812 = vmatprep.subr.bf16.mxu0 0
      %813 = vmatpush2.bf16.msra.mxu0 0
      %814 = vmatprep.mubr.bf16.mxu0 0
      %815 = vmatmul.mubr.bf16.gmra.mxu0 %v777
      %v816 = vpop.f32.mrf.mxu0
      %v817 = vadd.f32 0.0, %v816
      %v818 = vpop.f32.mrf.mxu0
      %v819 = vpop.f32.mrf.mxu0
      %v820 = vpop.f32.mrf.mxu0
      %821 = vdwg.mxu0
      %v822 = vld [vmem:[#allocation4] sm:$0xff]
      %824 = vset.pattern.permute.xlu0 0
      %825 = vperm.xlu0 %824, %v755
      %v826 = vpop.permute.xlu0 %825
      %v828 = vmul.f32 %v826, %v822
      %830 = vrot.lane.b32.xlu0 %v817, 24
      %v831 = vpop.permute.xlu0 %830
      %v833 = vadd.f32 %v828, %v831
      %vm834 = vcmask 261312
      %835 = vst.msk [vmem:[#allocation4] sm:$0xff] %vm834, %v833
      // Predicated region
      $region37: #{graformer_forward.55} parent=31 // pred_check
        %p836 = pneg %p262
      $region38: #{graformer_forward.55} parent=31 // pred_check_branch
        %838 = sbr.rel (%p836) target = $region40
      $region39: #{graformer_forward.55} parent=31 // pred_region
        %v839 = vld [vmem:[#allocation4] sm:$0xff]
        %v840 = vld [vmem:[#allocation3] sm:$0xff]
        %842 = vset.pattern.permute.xlu0 0
        %843 = vperm.xlu0 %842, %v840
        %v844 = vpop.permute.xlu0 %843
        %v846 = vrcp.pop %v844
        %v847 = vmul.f32 %v839, %v846
        %848 = vst.msk [vmem:[#allocation4] sm:$0xff] %vm281, %v847
        %v849 = vld [vmem:[#allocation4] sm:$0xff]
        %v850 = vld [vmem:[%s483] sm:$0xff]
        %852 = vset.pattern.permute.xlu0 0
        %853 = vperm.xlu0 %852, %v850
        %v854 = vpop.permute.xlu0 %853
        %v856 = vrcp.pop %v854
        %v857 = vmul.f32 %v849, %v856
        %858 = vst.msk [vmem:[#allocation4] sm:$0xff] %vm556, %v857
        %v859 = vld [vmem:[#allocation4] sm:$0xff]
        %v860 = vld [vmem:[%s625] sm:$0xff]
        %862 = vset.pattern.permute.xlu0 0
        %863 = vperm.xlu0 %862, %v860
        %v864 = vpop.permute.xlu0 %863
        %v866 = vrcp.pop %v864
        %v867 = vmul.f32 %v859, %v866
        %868 = vst.msk [vmem:[#allocation4] sm:$0xff] %vm695, %v867
        %v869 = vld [vmem:[#allocation4] sm:$0xff]
        %v870 = vld [vmem:[%s764] sm:$0xff]
        %872 = vset.pattern.permute.xlu0 0
        %873 = vperm.xlu0 %872, %v870
        %v874 = vpop.permute.xlu0 %873
        %v876 = vrcp.pop %v874
        %v877 = vmul.f32 %v869, %v876
        %878 = vst.msk [vmem:[#allocation4] sm:$0xff] %vm834, %v877
        %v879 = vld [vmem:[#allocation4] sm:$0xff]
        %v880 = vpack.c.bf16 %v879, %v879
        %vm881 = vcmask 257024
        %882 = vst.msk [vmem:[%s259] sm:$0xf] %vm881, %v880
      $region40: #{graformer_forward.55} parent=31 // pred_fallthru
        _
      %p883 = scmp.lt.s32.totalorder %s19, 1
      %s884 = scalar_select %p883, %s19, 1
      %p885 = scmp.lt.s32.totalorder %s20, 0
      %s886 = scalar_select %p885, %s20, 0
      %s887 = sadd.s32 %s886, %s884
      %s888 = smul.addr %s887, 4
      %s889 = scalar_lea.vmem %s3, %s888
      // Predicated region
      $region41: #{graformer_forward.55} parent=31 // pred_check
        %p890 = pneg %p137
      $region42: #{graformer_forward.55} parent=31 // pred_check_branch
        %892 = sbr.rel (%p890) target = $region44
      $region43: #{graformer_forward.55} parent=31 // pred_region
        _
      $region44: #{graformer_forward.55} parent=31 // pred_fallthru
        _
    $region32: #{graformer_forward.55} parent=5 // pred_fallthru
      _
    %p893 = scmp.le.s32.totalorder 2, %s9
    // Predicated region
    $region45: #{graformer_forward.55} parent=5 // pred_check
      %p894 = pneg %p893
    $region46: #{graformer_forward.55} parent=5 // pred_check_branch
      %896 = sbr.rel (%p894) target = $region48
    $region47: #{graformer_forward.55} parent=5 // pred_region
      %s897 = ssub.s32 %s9, 2
      // Predicated region
      $region49: #{graformer_forward.55} parent=47 // pred_check
        %p898 = pneg %p143
      $region50: #{graformer_forward.55} parent=47 // pred_check_branch
        %900 = sbr.rel (%p898) target = $region52
      $region51: #{graformer_forward.55} parent=47 // pred_region
        %p901 = scmp.lt.s32.totalorder %s22, 1
        %s902 = scalar_select %p901, %s22, 1
        %p903 = scmp.lt.s32.totalorder %s23, 0
        %s904 = scalar_select %p903, %s23, 0
        %s905 = sadd.s32 %s904, %s902
        %s906 = smul.addr %s905, 4
        %s907 = scalar_lea.vmem %s3, %s906
      $region52: #{graformer_forward.55} parent=47 // pred_fallthru
        _
    $region48: #{graformer_forward.55} parent=5 // pred_fallthru
      _
  $region6: #{graformer_forward.55} parent=0 // loop_footer
    %s13 = sadd.s32 1, %s9
  $region7: #{graformer_forward.55} parent=0 // loop_footer_branch
    %8 = sbr.rel target = $region3
  $region8: #{graformer_forward.55} parent=0 // loop_exit
    _

</llo_original>
